<compile_context>
chip_gen: v7x
topology: tpu7x:2x2x1
jax: 0.10.0
libtpu: 0.0.40
codegen_flags: <defaults>
</compile_context>

<pallas_src>
import functools

import jax
import jax.numpy as jnp
from jax import lax
from jax.experimental import pallas as pl
from jax.experimental.pallas import tpu as pltpu


# ------------------------------- small helpers ------------------------------ #

def _round_up(n, m):
    return ((n + m - 1) // m) * m


def _largest_divisor_leq(n, cap):
    cap = max(1, min(n, cap))
    for d in range(cap, 0, -1):
        if n % d == 0:
            return d
    return 1


def _vmem_limit(needed_bytes):
    # Explicit scoped-VMEM budget: 2x headroom, floor at the 32 MiB default,
    # capped at 64 MiB so the same tiling compiles on v7x.
    return int(min(max(2 * needed_bytes, 32 * 1024 * 1024), 64 * 1024 * 1024))


def _pad_last(a, new):
    if a.shape[-1] == new:
        return a
    pad = [(0, 0)] * a.ndim
    pad[-1] = (0, new - a.shape[-1])
    return jnp.pad(a, pad)


def _pad_axis(a, axis, new):
    if a.shape[axis] == new:
        return a
    pad = [(0, 0)] * a.ndim
    pad[axis] = (0, new - a.shape[axis])
    return jnp.pad(a, pad)


def _pad_gate_blocks(w, H, Hp):
    """Pad a gate-blocked tensor (4H, ...) -> (4Hp, ...) per-gate with zeros."""
    if H == Hp:
        return w
    w4 = w.reshape((4, H) + w.shape[1:])
    pad = [(0, 0)] * w4.ndim
    pad[1] = (0, Hp - H)
    w4 = jnp.pad(w4, pad)
    return w4.reshape((4 * Hp,) + w.shape[1:])


# ----------------------------- Pallas kernels ------------------------------ #

def matmul_bias_kernel(x_ref, w_ref, b_ref, o_ref):
    """o = x @ w + b   (one M-block per grid step; fp32 accumulation)."""
    o_ref[...] = (
        jnp.dot(x_ref[...], w_ref[...], preferred_element_type=jnp.float32)
        + b_ref[...]
    ).astype(o_ref.dtype)


def _lstm_steps(gproj_ref, whh, h_scr, c_scr, y_ref):
    """Run the recurrence over this time block, updating h/c scratch in place.

    gproj_ref : (tT, bB, 4Hp)  precomputed x@W_ih + bias (fp32)
    whh       : (Hp, 4Hp)      hoisted W_hh (compute dtype)
    h_scr/c_scr: (bB, Hp)      fp32 VMEM scratch, persists across grid steps
    y_ref     : (tT, bB, Hp)   per-timestep hidden output, or None (last layer)
    """
    Hp = whh.shape[0]
    tT = gproj_ref.shape[0]

    def step(t, carry):
        gates = gproj_ref[t] + jnp.dot(
            h_scr[...].astype(whh.dtype), whh, preferred_element_type=jnp.float32
        )                                                    # (bB, 4Hp), fp32
        # PyTorch gate order: i, f, g, o — each slice is 128-lane aligned.
        i = jax.nn.sigmoid(gates[:, 0 * Hp:1 * Hp])
        f = jax.nn.sigmoid(gates[:, 1 * Hp:2 * Hp])
        g = jnp.tanh(gates[:, 2 * Hp:3 * Hp])
        o = jax.nn.sigmoid(gates[:, 3 * Hp:4 * Hp])

        c_new = f * c_scr[...] + i * g
        h_new = o * jnp.tanh(c_new)

        c_scr[...] = c_new
        h_scr[...] = h_new
        if y_ref is not None:
            y_ref[t] = h_new.astype(y_ref.dtype)
        return carry

    lax.fori_loop(0, tT, step, 0, unroll=(tT <= 8))


def lstm_recurrent_kernel(gproj_ref, whh_ref, y_ref, h_scr, c_scr):
    """Middle-layer LSTM recurrence; emits the full hidden sequence."""
    @pl.when(pl.program_id(1) == 0)
    def _():
        h_scr[...] = jnp.zeros_like(h_scr)
        c_scr[...] = jnp.zeros_like(c_scr)

    whh = whh_ref[...]          # hoisted loop-invariant load
    _lstm_steps(gproj_ref, whh, h_scr, c_scr, y_ref)


def lstm_last_layer_kernel(gproj_ref, whh_ref, fcw_ref, fcb_ref, out_ref,
                           h_scr, c_scr):
    """Last LSTM layer with the final Linear fused at the last timestep."""
    @pl.when(pl.program_id(1) == 0)
    def _():
        h_scr[...] = jnp.zeros_like(h_scr)
        c_scr[...] = jnp.zeros_like(c_scr)

    whh = whh_ref[...]
    _lstm_steps(gproj_ref, whh, h_scr, c_scr, None)

    @pl.when(pl.program_id(1) == pl.num_programs(1) - 1)
    def _():
        fcw = fcw_ref[...]
        out_ref[...] = (
            jnp.dot(h_scr[...].astype(fcw.dtype), fcw,
                    preferred_element_type=jnp.float32)
            + fcb_ref[...]
        ).astype(out_ref.dtype)


# ------------------------------ pallas wrappers ----------------------------- #

def input_projection(x2d, w, b, *, block_m):
    """(M, K) @ (K, N) + b -> (M, N) fp32, tiled over M with pipelined DMA."""
    M, K = x2d.shape
    N = w.shape[1]
    needed = (2 * block_m * K * x2d.dtype.itemsize
              + 2 * block_m * N * 4
              + 2 * (K * N * w.dtype.itemsize + N * 4))
    return pl.pallas_call(
        matmul_bias_kernel,
        out_shape=jax.ShapeDtypeStruct((M, N), jnp.float32),
        grid=(M // block_m,),
        in_specs=[
            pl.BlockSpec((block_m, K), lambda i: (i, 0)),
            pl.BlockSpec((K, N), lambda i: (0, 0)),
            pl.BlockSpec((1, N), lambda i: (0, 0)),
        ],
        out_specs=pl.BlockSpec((block_m, N), lambda i: (i, 0)),
        compiler_params=pltpu.CompilerParams(
            dimension_semantics=("parallel",),
            vmem_limit_bytes=_vmem_limit(needed),
        ),
    )(x2d, w, b)


def lstm_layer_seq(gproj, whh_t, *, block_t, block_b, out_dtype):
    """Recurrence for a non-final layer: returns the full (T, Bp, Hp) output."""
    T, Bp, G = gproj.shape
    Hp = whh_t.shape[0]
    needed = (2 * block_t * block_b * G * 4
              + 2 * block_t * block_b * Hp * jnp.dtype(out_dtype).itemsize
              + 2 * Hp * G * whh_t.dtype.itemsize
              + 2 * block_b * Hp * 4)
    return pl.pallas_call(
        lstm_recurrent_kernel,
        out_shape=jax.ShapeDtypeStruct((T, Bp, Hp), out_dtype),
        grid=(Bp // block_b, T // block_t),
        in_specs=[
            pl.BlockSpec((block_t, block_b, G), lambda ib, it: (it, ib, 0)),
            pl.BlockSpec((Hp, G), lambda ib, it: (0, 0)),
        ],
        out_specs=pl.BlockSpec((block_t, block_b, Hp), lambda ib, it: (it, ib, 0)),
        scratch_shapes=[
            pltpu.VMEM((block_b, Hp), jnp.float32),   # h
            pltpu.VMEM((block_b, Hp), jnp.float32),   # c
        ],
        compiler_params=pltpu.CompilerParams(
            dimension_semantics=("parallel", "arbitrary"),
            vmem_limit_bytes=_vmem_limit(needed),
        ),
    )(gproj, whh_t)


def lstm_last_layer(gproj, whh_t, fcw_t, fcb, *, block_t, block_b):
    """Recurrence for the final layer with the FC fused; returns (Bp, Op)."""
    T, Bp, G = gproj.shape
    Hp = whh_t.shape[0]
    Op = fcw_t.shape[1]
    needed = (2 * block_t * block_b * G * 4
              + 2 * Hp * G * whh_t.dtype.itemsize
              + 2 * Hp * Op * fcw_t.dtype.itemsize
              + 2 * Op * 4
              + 2 * block_b * Op * 4
              + 2 * block_b * Hp * 4)
    return pl.pallas_call(
        lstm_last_layer_kernel,
        out_shape=jax.ShapeDtypeStruct((Bp, Op), jnp.float32),
        grid=(Bp // block_b, T // block_t),
        in_specs=[
            pl.BlockSpec((block_t, block_b, G), lambda ib, it: (it, ib, 0)),
            pl.BlockSpec((Hp, G), lambda ib, it: (0, 0)),
            pl.BlockSpec((Hp, Op), lambda ib, it: (0, 0)),
            pl.BlockSpec((1, Op), lambda ib, it: (0, 0)),
        ],
        out_specs=pl.BlockSpec((block_b, Op), lambda ib, it: (ib, 0)),
        scratch_shapes=[
            pltpu.VMEM((block_b, Hp), jnp.float32),   # h
            pltpu.VMEM((block_b, Hp), jnp.float32),   # c
        ],
        compiler_params=pltpu.CompilerParams(
            dimension_semantics=("parallel", "arbitrary"),
            vmem_limit_bytes=_vmem_limit(needed),
        ),
    )(gproj, whh_t, fcw_t, fcb)


# ------------------------------ host wrapper -------------------------------- #

def _prep_layer(lp, Hp, compute_dtype, is_first):
    """Pad PyTorch-layout LSTM weights to (Hp-lane-aligned) transposed form."""
    H = lp["w_hh"].shape[1]
    w_ih = lp["w_ih"]                         # (4H, Din)
    w_hh = lp["w_hh"]                         # (4H, H)
    if not is_first:                          # layer input is padded prev-y (Hp)
        w_ih = _pad_last(w_ih, Hp)
    w_ih = _pad_gate_blocks(w_ih, H, Hp)      # (4Hp, Din or Hp)
    w_hh = _pad_gate_blocks(_pad_last(w_hh, Hp), H, Hp)   # (4Hp, Hp)
    b = _pad_gate_blocks(lp["b_ih"] + lp["b_hh"], H, Hp)  # (4Hp,)
    return (jnp.transpose(w_ih).astype(compute_dtype),    # (Din|Hp, 4Hp)
            jnp.transpose(w_hh).astype(compute_dtype),    # (Hp, 4Hp)
            b.reshape(1, 4 * Hp).astype(jnp.float32))


@functools.partial(jax.jit, static_argnames=("compute_dtype",))
def lstm_model_forward(x, params, *, compute_dtype=jnp.float32):
    """x: (B, T, input_dim) batch-first, like the PyTorch module."""
    B, T, _ = x.shape
    H = params["lstm"][0]["w_hh"].shape[1]
    O = params["fc_w"].shape[0]
    Hp = _round_up(H, 128)          # lane-dense hidden
    Bp = _round_up(B, 8)            # sublane-dense batch
    Op = _round_up(O, 128)          # lane-dense FC output

    # time-major, batch-padded input
    seq = _pad_axis(jnp.transpose(x, (1, 0, 2)), 1, Bp).astype(compute_dtype)

    # tiling choices
    block_t = _largest_divisor_leq(T, 32)
    block_b = Bp // 2 if (Bp >= 16 and (Bp // 2) % 16 == 0) else Bp
    proj_block_m = Bp * _largest_divisor_leq(T, max(1, 512 // Bp))

    layers = [_prep_layer(lp, Hp, compute_dtype, i == 0)
              for i, lp in enumerate(params["lstm"])]
    num_layers = len(layers)

    # non-final layers: hoisted input projection + recurrence emitting full y
    for li in range(num_layers - 1):
        wih_t, whh_t, b2 = layers[li]
        gproj = input_projection(seq.reshape(T * Bp, -1), wih_t, b2,
                                 block_m=proj_block_m)
        gproj = gproj.reshape(T, Bp, 4 * Hp)
        seq = lstm_layer_seq(gproj, whh_t, block_t=block_t, block_b=block_b,
                             out_dtype=compute_dtype)

    # final layer: recurrence + fused Linear on the last timestep
    wih_t, whh_t, b2 = layers[-1]
    gproj = input_projection(seq.reshape(T * Bp, -1), wih_t, b2,
                             block_m=proj_block_m)
    gproj = gproj.reshape(T, Bp, 4 * Hp)

    fc_w_p = jnp.zeros((Op, Hp), params["fc_w"].dtype).at[:O, :H].set(params["fc_w"])
    fc_b_p = jnp.zeros((Op,), params["fc_b"].dtype).at[:O].set(params["fc_b"])
    fcw_t = jnp.transpose(fc_w_p).astype(compute_dtype)   # (Hp, Op)
    fcb2 = fc_b_p.reshape(1, Op).astype(jnp.float32)

    out_p = lstm_last_layer(gproj, whh_t, fcw_t, fcb2,
                            block_t=block_t, block_b=block_b)   # (Bp, Op)
    return out_p[:B, :O]


# --------------------------- parameter construction ------------------------- #

def init_params(key, input_dim, hidden_dim, num_layers, output_dim):
    k = 1.0 / jnp.sqrt(jnp.float32(hidden_dim))
    layers = []
    for layer in range(num_layers):
        din = input_dim if layer == 0 else hidden_dim
        key, k1, k2, k3, k4 = jax.random.split(key, 5)
        layers.append({
            "w_ih": jax.random.uniform(k1, (4 * hidden_dim, din), jnp.float32, -k, k),
            "w_hh": jax.random.uniform(k2, (4 * hidden_dim, hidden_dim), jnp.float32, -k, k),
            "b_ih": jax.random.uniform(k3, (4 * hidden_dim,), jnp.float32, -k, k),
            "b_hh": jax.random.uniform(k4, (4 * hidden_dim,), jnp.float32, -k, k),
        })
    key, k5, k6 = jax.random.split(key, 3)
    fc_w = jax.random.uniform(k5, (output_dim, hidden_dim), jnp.float32, -k, k)
    fc_b = jax.random.uniform(k6, (output_dim,), jnp.float32, -k, k)
    return {"lstm": layers, "fc_w": fc_w, "fc_b": fc_b}


# ----------------------------- pure-JAX reference --------------------------- #

def reference_forward(x, params):
    B, T, _ = x.shape
    h_seq = x
    for lp in params["lstm"]:
        H = lp["w_hh"].shape[1]
        h = jnp.zeros((B, H), jnp.float32)
        c = jnp.zeros((B, H), jnp.float32)
        outs = []
        for t in range(T):
            gates = (h_seq[:, t, :] @ lp["w_ih"].T + h @ lp["w_hh"].T
                     + lp["b_ih"] + lp["b_hh"])
            i = jax.nn.sigmoid(gates[:, 0 * H:1 * H])
            f = jax.nn.sigmoid(gates[:, 1 * H:2 * H])
            g = jnp.tanh(gates[:, 2 * H:3 * H])
            o = jax.nn.sigmoid(gates[:, 3 * H:4 * H])
            c = f * c + i * g
            h = o * jnp.tanh(c)
            outs.append(h)
        h_seq = jnp.stack(outs, axis=1)
    return h_seq[:, -1, :] @ params["fc_w"].T + params["fc_b"]


# ---------------------------------- main ------------------------------------ #

if __name__ == "__main__":
    B, T = 2, 8
    input_dim, hidden_dim, num_layers, output_dim = 4, 32, 2, 1

    key = jax.random.PRNGKey(0)
    key, kx, kp = jax.random.split(key, 3)
    x = jax.random.normal(kx, (B, T, input_dim), jnp.float32)
    params = init_params(kp, input_dim, hidden_dim, num_layers, output_dim)

    ref = reference_forward(x, params)

    # fp32 path: exactness check against the pure-JAX reference
    out = jax.block_until_ready(lstm_model_forward(x, params, compute_dtype=jnp.float32))
    assert out.shape == (B, output_dim), out.shape
    assert jnp.allclose(out, ref, atol=1e-4, rtol=1e-4), (out, ref)

    # bf16-matmul path (v6e/v7x fast path): loose sanity check
    out_bf16 = jax.block_until_ready(lstm_model_forward(x, params, compute_dtype=jnp.bfloat16))
    assert out_bf16.shape == (B, output_dim), out_bf16.shape
    assert jnp.allclose(out_bf16, ref, atol=1e-1, rtol=1e-1), (out_bf16, ref)

    print("KERNEL_OK")
</pallas_src>

<mosaic_0001>
module attributes {stable_mosaic.version = 11 : i64} {
  func.func @lstm_recurrent_kernel(%arg0: i32, %arg1: i32, %arg2: memref<8x8x512xf32, #tpu.memory_space<vmem>>, %arg3: memref<128x512xf32, #tpu.memory_space<vmem>>, %arg4: memref<8x8x128xf32, #tpu.memory_space<vmem>>, %arg5: memref<8x128xf32, #tpu.memory_space<vmem>>, %arg6: memref<8x128xf32, #tpu.memory_space<vmem>>) attributes {dimension_semantics = [#tpu.dimension_semantics<parallel>, #tpu.dimension_semantics<arbitrary>], iteration_bounds = array<i64: 1, 1>, scalar_prefetch = 0 : i64, scratch_operands = 2 : i64, tpu.core_type = #tpu.core_type<tc>, window_params = [{transform_indices = @transform_0, window_bounds = array<i64: 8, 8, 512>}, {pipeline_mode = #tpu.pipeline_mode<synchronous>, transform_indices = @transform_1, window_bounds = array<i64: 128, 512>}, {transform_indices = @transform_2, window_bounds = array<i64: 8, 8, 128>}]} {
    %c0_i32 = arith.constant 0 : i32
    %0 = arith.cmpi eq, %arg1, %c0_i32 : i32
    %1 = arith.extui %0 : i1 to i32
    %c0_i32_0 = arith.constant 0 : i32
    %2 = arith.cmpi ne, %1, %c0_i32_0 : i32
    scf.if %2 {
      %cst_130 = arith.constant 0.000000e+00 : f32
      %308 = vector.broadcast %cst_130 : f32 to vector<8x128xf32>
      %c0_131 = arith.constant 0 : index
      %c0_132 = arith.constant 0 : index
      %309 = vector.load %arg5[%c0_131, %c0_132] : memref<8x128xf32, #tpu.memory_space<vmem>>, vector<8x128xf32>
      tpu.vector_store %arg5[%c0_131, %c0_132], %308 {strides = array<i32>} : memref<8x128xf32, #tpu.memory_space<vmem>>, vector<8x128xf32>,
      %cst_133 = arith.constant 0.000000e+00 : f32
      %310 = vector.broadcast %cst_133 : f32 to vector<8x128xf32>
      %c0_134 = arith.constant 0 : index
      %c0_135 = arith.constant 0 : index
      %311 = vector.load %arg6[%c0_134, %c0_135] : memref<8x128xf32, #tpu.memory_space<vmem>>, vector<8x128xf32>
      tpu.vector_store %arg6[%c0_134, %c0_135], %310 {strides = array<i32>} : memref<8x128xf32, #tpu.memory_space<vmem>>, vector<8x128xf32>,
    } else {
    }
    %c0 = arith.constant 0 : index
    %c0_1 = arith.constant 0 : index
    %3 = vector.load %arg3[%c0, %c0_1] : memref<128x512xf32, #tpu.memory_space<vmem>>, vector<128x512xf32>
    %c0_i32_2 = arith.constant 0 : i32
    %4 = arith.index_cast %c0_i32_2 : i32 to index
    %c0_3 = arith.constant 0 : index
    %c0_4 = arith.constant 0 : index
    %5 = vector.load %arg2[%4, %c0_3, %c0_4] : memref<8x8x512xf32, #tpu.memory_space<vmem>>, vector<1x8x512xf32>
    %6 = vector.shape_cast %5 : vector<1x8x512xf32> to vector<8x512xf32>
    %c0_5 = arith.constant 0 : index
    %c0_6 = arith.constant 0 : index
    %7 = vector.load %arg5[%c0_5, %c0_6] : memref<8x128xf32, #tpu.memory_space<vmem>>, vector<8x128xf32>
    %cst = arith.constant dense<0.000000e+00> : vector<8x512xf32>
    %8 = tpu.matmul %7, %3, %cst {dimension_numbers = #tpu.dot_dimension_numbers<[1], [0], [0], [1], [0, 0, 1, 1], [], []>} : vector<8x128xf32>, vector<128x512xf32>, vector<8x512xf32> -> vector<8x512xf32>
    %9 = arith.addf %6, %8 : vector<8x512xf32>
    %10 = vector.extract_strided_slice %9 {offsets = [0, 0], sizes = [8, 128], strides = [1, 1]} : vector<8x512xf32> to vector<8x128xf32>
    %11 = arith.negf %10 : vector<8x128xf32>
    %12 = math.exp %11 : vector<8x128xf32>
    %cst_7 = arith.constant 1.000000e+00 : f32
    %13 = vector.broadcast %cst_7 : f32 to vector<8x128xf32>
    %14 = arith.addf %13, %12 : vector<8x128xf32>
    %15 = arith.divf %13, %14 : vector<8x128xf32>
    %16 = vector.extract_strided_slice %9 {offsets = [0, 128], sizes = [8, 128], strides = [1, 1]} : vector<8x512xf32> to vector<8x128xf32>
    %17 = arith.negf %16 : vector<8x128xf32>
    %18 = math.exp %17 : vector<8x128xf32>
    %cst_8 = arith.constant 1.000000e+00 : f32
    %19 = vector.broadcast %cst_8 : f32 to vector<8x128xf32>
    %20 = arith.addf %19, %18 : vector<8x128xf32>
    %21 = arith.divf %19, %20 : vector<8x128xf32>
    %22 = vector.extract_strided_slice %9 {offsets = [0, 256], sizes = [8, 128], strides = [1, 1]} : vector<8x512xf32> to vector<8x128xf32>
    %23 = math.tanh %22 : vector<8x128xf32>
    %24 = vector.extract_strided_slice %9 {offsets = [0, 384], sizes = [8, 128], strides = [1, 1]} : vector<8x512xf32> to vector<8x128xf32>
    %25 = arith.negf %24 : vector<8x128xf32>
    %26 = math.exp %25 : vector<8x128xf32>
    %cst_9 = arith.constant 1.000000e+00 : f32
    %27 = vector.broadcast %cst_9 : f32 to vector<8x128xf32>
    %28 = arith.addf %27, %26 : vector<8x128xf32>
    %29 = arith.divf %27, %28 : vector<8x128xf32>
    %c0_10 = arith.constant 0 : index
    %c0_11 = arith.constant 0 : index
    %30 = vector.load %arg6[%c0_10, %c0_11] : memref<8x128xf32, #tpu.memory_space<vmem>>, vector<8x128xf32>
    %31 = arith.mulf %21, %30 : vector<8x128xf32>
    %32 = arith.mulf %15, %23 : vector<8x128xf32>
    %33 = arith.addf %31, %32 : vector<8x128xf32>
    %34 = math.tanh %33 : vector<8x128xf32>
    %35 = arith.mulf %29, %34 : vector<8x128xf32>
    %c0_12 = arith.constant 0 : index
    %c0_13 = arith.constant 0 : index
    %36 = vector.load %arg6[%c0_12, %c0_13] : memref<8x128xf32, #tpu.memory_space<vmem>>, vector<8x128xf32>
    tpu.vector_store %arg6[%c0_12, %c0_13], %33 {strides = array<i32>} : memref<8x128xf32, #tpu.memory_space<vmem>>, vector<8x128xf32>,
    %c0_14 = arith.constant 0 : index
    %c0_15 = arith.constant 0 : index
    %37 = vector.load %arg5[%c0_14, %c0_15] : memref<8x128xf32, #tpu.memory_space<vmem>>, vector<8x128xf32>
    tpu.vector_store %arg5[%c0_14, %c0_15], %35 {strides = array<i32>} : memref<8x128xf32, #tpu.memory_space<vmem>>, vector<8x128xf32>,
    %38 = arith.index_cast %c0_i32_2 : i32 to index
    %c0_16 = arith.constant 0 : index
    %c0_17 = arith.constant 0 : index
    %39 = vector.load %arg4[%38, %c0_16, %c0_17] : memref<8x8x128xf32, #tpu.memory_space<vmem>>, vector<1x8x128xf32>
    %40 = vector.shape_cast %39 : vector<1x8x128xf32> to vector<8x128xf32>
    %41 = vector.shape_cast %35 : vector<8x128xf32> to vector<1x8x128xf32>
    tpu.vector_store %arg4[%38, %c0_16, %c0_17], %41 {strides = array<i32>} : memref<8x8x128xf32, #tpu.memory_space<vmem>>, vector<1x8x128xf32>,
    %c1_i32 = arith.constant 1 : i32
    %42 = arith.index_cast %c1_i32 : i32 to index
    %c0_18 = arith.constant 0 : index
    %c0_19 = arith.constant 0 : index
    %43 = vector.load %arg2[%42, %c0_18, %c0_19] : memref<8x8x512xf32, #tpu.memory_space<vmem>>, vector<1x8x512xf32>
    %44 = vector.shape_cast %43 : vector<1x8x512xf32> to vector<8x512xf32>
    %c0_20 = arith.constant 0 : index
    %c0_21 = arith.constant 0 : index
    %45 = vector.load %arg5[%c0_20, %c0_21] : memref<8x128xf32, #tpu.memory_space<vmem>>, vector<8x128xf32>
    %cst_22 = arith.constant dense<0.000000e+00> : vector<8x512xf32>
    %46 = tpu.matmul %45, %3, %cst_22 {dimension_numbers = #tpu.dot_dimension_numbers<[1], [0], [0], [1], [0, 0, 1, 1], [], []>} : vector<8x128xf32>, vector<128x512xf32>, vector<8x512xf32> -> vector<8x512xf32>
    %47 = arith.addf %44, %46 : vector<8x512xf32>
    %48 = vector.extract_strided_slice %47 {offsets = [0, 0], sizes = [8, 128], strides = [1, 1]} : vector<8x512xf32> to vector<8x128xf32>
    %49 = arith.negf %48 : vector<8x128xf32>
    %50 = math.exp %49 : vector<8x128xf32>
    %cst_23 = arith.constant 1.000000e+00 : f32
    %51 = vector.broadcast %cst_23 : f32 to vector<8x128xf32>
    %52 = arith.addf %51, %50 : vector<8x128xf32>
    %53 = arith.divf %51, %52 : vector<8x128xf32>
    %54 = vector.extract_strided_slice %47 {offsets = [0, 128], sizes = [8, 128], strides = [1, 1]} : vector<8x512xf32> to vector<8x128xf32>
    %55 = arith.negf %54 : vector<8x128xf32>
    %56 = math.exp %55 : vector<8x128xf32>
    %cst_24 = arith.constant 1.000000e+00 : f32
    %57 = vector.broadcast %cst_24 : f32 to vector<8x128xf32>
    %58 = arith.addf %57, %56 : vector<8x128xf32>
    %59 = arith.divf %57, %58 : vector<8x128xf32>
    %60 = vector.extract_strided_slice %47 {offsets = [0, 256], sizes = [8, 128], strides = [1, 1]} : vector<8x512xf32> to vector<8x128xf32>
    %61 = math.tanh %60 : vector<8x128xf32>
    %62 = vector.extract_strided_slice %47 {offsets = [0, 384], sizes = [8, 128], strides = [1, 1]} : vector<8x512xf32> to vector<8x128xf32>
    %63 = arith.negf %62 : vector<8x128xf32>
    %64 = math.exp %63 : vector<8x128xf32>
    %cst_25 = arith.constant 1.000000e+00 : f32
    %65 = vector.broadcast %cst_25 : f32 to vector<8x128xf32>
    %66 = arith.addf %65, %64 : vector<8x128xf32>
    %67 = arith.divf %65, %66 : vector<8x128xf32>
    %c0_26 = arith.constant 0 : index
    %c0_27 = arith.constant 0 : index
    %68 = vector.load %arg6[%c0_26, %c0_27] : memref<8x128xf32, #tpu.memory_space<vmem>>, vector<8x128xf32>
    %69 = arith.mulf %59, %68 : vector<8x128xf32>
    %70 = arith.mulf %53, %61 : vector<8x128xf32>
    %71 = arith.addf %69, %70 : vector<8x128xf32>
    %72 = math.tanh %71 : vector<8x128xf32>
    %73 = arith.mulf %67, %72 : vector<8x128xf32>
    %c0_28 = arith.constant 0 : index
    %c0_29 = arith.constant 0 : index
    %74 = vector.load %arg6[%c0_28, %c0_29] : memref<8x128xf32, #tpu.memory_space<vmem>>, vector<8x128xf32>
    tpu.vector_store %arg6[%c0_28, %c0_29], %71 {strides = array<i32>} : memref<8x128xf32, #tpu.memory_space<vmem>>, vector<8x128xf32>,
    %c0_30 = arith.constant 0 : index
    %c0_31 = arith.constant 0 : index
    %75 = vector.load %arg5[%c0_30, %c0_31] : memref<8x128xf32, #tpu.memory_space<vmem>>, vector<8x128xf32>
    tpu.vector_store %arg5[%c0_30, %c0_31], %73 {strides = array<i32>} : memref<8x128xf32, #tpu.memory_space<vmem>>, vector<8x128xf32>,
    %76 = arith.index_cast %c1_i32 : i32 to index
    %c0_32 = arith.constant 0 : index
    %c0_33 = arith.constant 0 : index
    %77 = vector.load %arg4[%76, %c0_32, %c0_33] : memref<8x8x128xf32, #tpu.memory_space<vmem>>, vector<1x8x128xf32>
    %78 = vector.shape_cast %77 : vector<1x8x128xf32> to vector<8x128xf32>
    %79 = vector.shape_cast %73 : vector<8x128xf32> to vector<1x8x128xf32>
    tpu.vector_store %arg4[%76, %c0_32, %c0_33], %79 {strides = array<i32>} : memref<8x8x128xf32, #tpu.memory_space<vmem>>, vector<1x8x128xf32>,
    %c2_i32 = arith.constant 2 : i32
    %80 = arith.index_cast %c2_i32 : i32 to index
    %c0_34 = arith.constant 0 : index
    %c0_35 = arith.constant 0 : index
    %81 = vector.load %arg2[%80, %c0_34, %c0_35] : memref<8x8x512xf32, #tpu.memory_space<vmem>>, vector<1x8x512xf32>
    %82 = vector.shape_cast %81 : vector<1x8x512xf32> to vector<8x512xf32>
    %c0_36 = arith.constant 0 : index
    %c0_37 = arith.constant 0 : index
    %83 = vector.load %arg5[%c0_36, %c0_37] : memref<8x128xf32, #tpu.memory_space<vmem>>, vector<8x128xf32>
    %cst_38 = arith.constant dense<0.000000e+00> : vector<8x512xf32>
    %84 = tpu.matmul %83, %3, %cst_38 {dimension_numbers = #tpu.dot_dimension_numbers<[1], [0], [0], [1], [0, 0, 1, 1], [], []>} : vector<8x128xf32>, vector<128x512xf32>, vector<8x512xf32> -> vector<8x512xf32>
    %85 = arith.addf %82, %84 : vector<8x512xf32>
    %86 = vector.extract_strided_slice %85 {offsets = [0, 0], sizes = [8, 128], strides = [1, 1]} : vector<8x512xf32> to vector<8x128xf32>
    %87 = arith.negf %86 : vector<8x128xf32>
    %88 = math.exp %87 : vector<8x128xf32>
    %cst_39 = arith.constant 1.000000e+00 : f32
    %89 = vector.broadcast %cst_39 : f32 to vector<8x128xf32>
    %90 = arith.addf %89, %88 : vector<8x128xf32>
    %91 = arith.divf %89, %90 : vector<8x128xf32>
    %92 = vector.extract_strided_slice %85 {offsets = [0, 128], sizes = [8, 128], strides = [1, 1]} : vector<8x512xf32> to vector<8x128xf32>
    %93 = arith.negf %92 : vector<8x128xf32>
    %94 = math.exp %93 : vector<8x128xf32>
    %cst_40 = arith.constant 1.000000e+00 : f32
    %95 = vector.broadcast %cst_40 : f32 to vector<8x128xf32>
    %96 = arith.addf %95, %94 : vector<8x128xf32>
    %97 = arith.divf %95, %96 : vector<8x128xf32>
    %98 = vector.extract_strided_slice %85 {offsets = [0, 256], sizes = [8, 128], strides = [1, 1]} : vector<8x512xf32> to vector<8x128xf32>
    %99 = math.tanh %98 : vector<8x128xf32>
    %100 = vector.extract_strided_slice %85 {offsets = [0, 384], sizes = [8, 128], strides = [1, 1]} : vector<8x512xf32> to vector<8x128xf32>
    %101 = arith.negf %100 : vector<8x128xf32>
    %102 = math.exp %101 : vector<8x128xf32>
    %cst_41 = arith.constant 1.000000e+00 : f32
    %103 = vector.broadcast %cst_41 : f32 to vector<8x128xf32>
    %104 = arith.addf %103, %102 : vector<8x128xf32>
    %105 = arith.divf %103, %104 : vector<8x128xf32>
    %c0_42 = arith.constant 0 : index
    %c0_43 = arith.constant 0 : index
    %106 = vector.load %arg6[%c0_42, %c0_43] : memref<8x128xf32, #tpu.memory_space<vmem>>, vector<8x128xf32>
    %107 = arith.mulf %97, %106 : vector<8x128xf32>
    %108 = arith.mulf %91, %99 : vector<8x128xf32>
    %109 = arith.addf %107, %108 : vector<8x128xf32>
    %110 = math.tanh %109 : vector<8x128xf32>
    %111 = arith.mulf %105, %110 : vector<8x128xf32>
    %c0_44 = arith.constant 0 : index
    %c0_45 = arith.constant 0 : index
    %112 = vector.load %arg6[%c0_44, %c0_45] : memref<8x128xf32, #tpu.memory_space<vmem>>, vector<8x128xf32>
    tpu.vector_store %arg6[%c0_44, %c0_45], %109 {strides = array<i32>} : memref<8x128xf32, #tpu.memory_space<vmem>>, vector<8x128xf32>,
    %c0_46 = arith.constant 0 : index
    %c0_47 = arith.constant 0 : index
    %113 = vector.load %arg5[%c0_46, %c0_47] : memref<8x128xf32, #tpu.memory_space<vmem>>, vector<8x128xf32>
    tpu.vector_store %arg5[%c0_46, %c0_47], %111 {strides = array<i32>} : memref<8x128xf32, #tpu.memory_space<vmem>>, vector<8x128xf32>,
    %114 = arith.index_cast %c2_i32 : i32 to index
    %c0_48 = arith.constant 0 : index
    %c0_49 = arith.constant 0 : index
    %115 = vector.load %arg4[%114, %c0_48, %c0_49] : memref<8x8x128xf32, #tpu.memory_space<vmem>>, vector<1x8x128xf32>
    %116 = vector.shape_cast %115 : vector<1x8x128xf32> to vector<8x128xf32>
    %117 = vector.shape_cast %111 : vector<8x128xf32> to vector<1x8x128xf32>
    tpu.vector_store %arg4[%114, %c0_48, %c0_49], %117 {strides = array<i32>} : memref<8x8x128xf32, #tpu.memory_space<vmem>>, vector<1x8x128xf32>,
    %c3_i32 = arith.constant 3 : i32
    %118 = arith.index_cast %c3_i32 : i32 to index
    %c0_50 = arith.constant 0 : index
    %c0_51 = arith.constant 0 : index
    %119 = vector.load %arg2[%118, %c0_50, %c0_51] : memref<8x8x512xf32, #tpu.memory_space<vmem>>, vector<1x8x512xf32>
    %120 = vector.shape_cast %119 : vector<1x8x512xf32> to vector<8x512xf32>
    %c0_52 = arith.constant 0 : index
    %c0_53 = arith.constant 0 : index
    %121 = vector.load %arg5[%c0_52, %c0_53] : memref<8x128xf32, #tpu.memory_space<vmem>>, vector<8x128xf32>
    %cst_54 = arith.constant dense<0.000000e+00> : vector<8x512xf32>
    %122 = tpu.matmul %121, %3, %cst_54 {dimension_numbers = #tpu.dot_dimension_numbers<[1], [0], [0], [1], [0, 0, 1, 1], [], []>} : vector<8x128xf32>, vector<128x512xf32>, vector<8x512xf32> -> vector<8x512xf32>
    %123 = arith.addf %120, %122 : vector<8x512xf32>
    %124 = vector.extract_strided_slice %123 {offsets = [0, 0], sizes = [8, 128], strides = [1, 1]} : vector<8x512xf32> to vector<8x128xf32>
    %125 = arith.negf %124 : vector<8x128xf32>
    %126 = math.exp %125 : vector<8x128xf32>
    %cst_55 = arith.constant 1.000000e+00 : f32
    %127 = vector.broadcast %cst_55 : f32 to vector<8x128xf32>
    %128 = arith.addf %127, %126 : vector<8x128xf32>
    %129 = arith.divf %127, %128 : vector<8x128xf32>
    %130 = vector.extract_strided_slice %123 {offsets = [0, 128], sizes = [8, 128], strides = [1, 1]} : vector<8x512xf32> to vector<8x128xf32>
    %131 = arith.negf %130 : vector<8x128xf32>
    %132 = math.exp %131 : vector<8x128xf32>
    %cst_56 = arith.constant 1.000000e+00 : f32
    %133 = vector.broadcast %cst_56 : f32 to vector<8x128xf32>
    %134 = arith.addf %133, %132 : vector<8x128xf32>
    %135 = arith.divf %133, %134 : vector<8x128xf32>
    %136 = vector.extract_strided_slice %123 {offsets = [0, 256], sizes = [8, 128], strides = [1, 1]} : vector<8x512xf32> to vector<8x128xf32>
    %137 = math.tanh %136 : vector<8x128xf32>
    %138 = vector.extract_strided_slice %123 {offsets = [0, 384], sizes = [8, 128], strides = [1, 1]} : vector<8x512xf32> to vector<8x128xf32>
    %139 = arith.negf %138 : vector<8x128xf32>
    %140 = math.exp %139 : vector<8x128xf32>
    %cst_57 = arith.constant 1.000000e+00 : f32
    %141 = vector.broadcast %cst_57 : f32 to vector<8x128xf32>
    %142 = arith.addf %141, %140 : vector<8x128xf32>
    %143 = arith.divf %141, %142 : vector<8x128xf32>
    %c0_58 = arith.constant 0 : index
    %c0_59 = arith.constant 0 : index
    %144 = vector.load %arg6[%c0_58, %c0_59] : memref<8x128xf32, #tpu.memory_space<vmem>>, vector<8x128xf32>
    %145 = arith.mulf %135, %144 : vector<8x128xf32>
    %146 = arith.mulf %129, %137 : vector<8x128xf32>
    %147 = arith.addf %145, %146 : vector<8x128xf32>
    %148 = math.tanh %147 : vector<8x128xf32>
    %149 = arith.mulf %143, %148 : vector<8x128xf32>
    %c0_60 = arith.constant 0 : index
    %c0_61 = arith.constant 0 : index
    %150 = vector.load %arg6[%c0_60, %c0_61] : memref<8x128xf32, #tpu.memory_space<vmem>>, vector<8x128xf32>
    tpu.vector_store %arg6[%c0_60, %c0_61], %147 {strides = array<i32>} : memref<8x128xf32, #tpu.memory_space<vmem>>, vector<8x128xf32>,
    %c0_62 = arith.constant 0 : index
    %c0_63 = arith.constant 0 : index
    %151 = vector.load %arg5[%c0_62, %c0_63] : memref<8x128xf32, #tpu.memory_space<vmem>>, vector<8x128xf32>
    tpu.vector_store %arg5[%c0_62, %c0_63], %149 {strides = array<i32>} : memref<8x128xf32, #tpu.memory_space<vmem>>, vector<8x128xf32>,
    %152 = arith.index_cast %c3_i32 : i32 to index
    %c0_64 = arith.constant 0 : index
    %c0_65 = arith.constant 0 : index
    %153 = vector.load %arg4[%152, %c0_64, %c0_65] : memref<8x8x128xf32, #tpu.memory_space<vmem>>, vector<1x8x128xf32>
    %154 = vector.shape_cast %153 : vector<1x8x128xf32> to vector<8x128xf32>
    %155 = vector.shape_cast %149 : vector<8x128xf32> to vector<1x8x128xf32>
    tpu.vector_store %arg4[%152, %c0_64, %c0_65], %155 {strides = array<i32>} : memref<8x8x128xf32, #tpu.memory_space<vmem>>, vector<1x8x128xf32>,
    %c4_i32 = arith.constant 4 : i32
    %156 = arith.index_cast %c4_i32 : i32 to index
    %c0_66 = arith.constant 0 : index
    %c0_67 = arith.constant 0 : index
    %157 = vector.load %arg2[%156, %c0_66, %c0_67] : memref<8x8x512xf32, #tpu.memory_space<vmem>>, vector<1x8x512xf32>
    %158 = vector.shape_cast %157 : vector<1x8x512xf32> to vector<8x512xf32>
    %c0_68 = arith.constant 0 : index
    %c0_69 = arith.constant 0 : index
    %159 = vector.load %arg5[%c0_68, %c0_69] : memref<8x128xf32, #tpu.memory_space<vmem>>, vector<8x128xf32>
    %cst_70 = arith.constant dense<0.000000e+00> : vector<8x512xf32>
    %160 = tpu.matmul %159, %3, %cst_70 {dimension_numbers = #tpu.dot_dimension_numbers<[1], [0], [0], [1], [0, 0, 1, 1], [], []>} : vector<8x128xf32>, vector<128x512xf32>, vector<8x512xf32> -> vector<8x512xf32>
    %161 = arith.addf %158, %160 : vector<8x512xf32>
    %162 = vector.extract_strided_slice %161 {offsets = [0, 0], sizes = [8, 128], strides = [1, 1]} : vector<8x512xf32> to vector<8x128xf32>
    %163 = arith.negf %162 : vector<8x128xf32>
    %164 = math.exp %163 : vector<8x128xf32>
    %cst_71 = arith.constant 1.000000e+00 : f32
    %165 = vector.broadcast %cst_71 : f32 to vector<8x128xf32>
    %166 = arith.addf %165, %164 : vector<8x128xf32>
    %167 = arith.divf %165, %166 : vector<8x128xf32>
    %168 = vector.extract_strided_slice %161 {offsets = [0, 128], sizes = [8, 128], strides = [1, 1]} : vector<8x512xf32> to vector<8x128xf32>
    %169 = arith.negf %168 : vector<8x128xf32>
    %170 = math.exp %169 : vector<8x128xf32>
    %cst_72 = arith.constant 1.000000e+00 : f32
    %171 = vector.broadcast %cst_72 : f32 to vector<8x128xf32>
    %172 = arith.addf %171, %170 : vector<8x128xf32>
    %173 = arith.divf %171, %172 : vector<8x128xf32>
    %174 = vector.extract_strided_slice %161 {offsets = [0, 256], sizes = [8, 128], strides = [1, 1]} : vector<8x512xf32> to vector<8x128xf32>
    %175 = math.tanh %174 : vector<8x128xf32>
    %176 = vector.extract_strided_slice %161 {offsets = [0, 384], sizes = [8, 128], strides = [1, 1]} : vector<8x512xf32> to vector<8x128xf32>
    %177 = arith.negf %176 : vector<8x128xf32>
    %178 = math.exp %177 : vector<8x128xf32>
    %cst_73 = arith.constant 1.000000e+00 : f32
    %179 = vector.broadcast %cst_73 : f32 to vector<8x128xf32>
    %180 = arith.addf %179, %178 : vector<8x128xf32>
    %181 = arith.divf %179, %180 : vector<8x128xf32>
    %c0_74 = arith.constant 0 : index
    %c0_75 = arith.constant 0 : index
    %182 = vector.load %arg6[%c0_74, %c0_75] : memref<8x128xf32, #tpu.memory_space<vmem>>, vector<8x128xf32>
    %183 = arith.mulf %173, %182 : vector<8x128xf32>
    %184 = arith.mulf %167, %175 : vector<8x128xf32>
    %185 = arith.addf %183, %184 : vector<8x128xf32>
    %186 = math.tanh %185 : vector<8x128xf32>
    %187 = arith.mulf %181, %186 : vector<8x128xf32>
    %c0_76 = arith.constant 0 : index
    %c0_77 = arith.constant 0 : index
    %188 = vector.load %arg6[%c0_76, %c0_77] : memref<8x128xf32, #tpu.memory_space<vmem>>, vector<8x128xf32>
    tpu.vector_store %arg6[%c0_76, %c0_77], %185 {strides = array<i32>} : memref<8x128xf32, #tpu.memory_space<vmem>>, vector<8x128xf32>,
    %c0_78 = arith.constant 0 : index
    %c0_79 = arith.constant 0 : index
    %189 = vector.load %arg5[%c0_78, %c0_79] : memref<8x128xf32, #tpu.memory_space<vmem>>, vector<8x128xf32>
    tpu.vector_store %arg5[%c0_78, %c0_79], %187 {strides = array<i32>} : memref<8x128xf32, #tpu.memory_space<vmem>>, vector<8x128xf32>,
    %190 = arith.index_cast %c4_i32 : i32 to index
    %c0_80 = arith.constant 0 : index
    %c0_81 = arith.constant 0 : index
    %191 = vector.load %arg4[%190, %c0_80, %c0_81] : memref<8x8x128xf32, #tpu.memory_space<vmem>>, vector<1x8x128xf32>
    %192 = vector.shape_cast %191 : vector<1x8x128xf32> to vector<8x128xf32>
    %193 = vector.shape_cast %187 : vector<8x128xf32> to vector<1x8x128xf32>
    tpu.vector_store %arg4[%190, %c0_80, %c0_81], %193 {strides = array<i32>} : memref<8x8x128xf32, #tpu.memory_space<vmem>>, vector<1x8x128xf32>,
    %c5_i32 = arith.constant 5 : i32
    %194 = arith.index_cast %c5_i32 : i32 to index
    %c0_82 = arith.constant 0 : index
    %c0_83 = arith.constant 0 : index
    %195 = vector.load %arg2[%194, %c0_82, %c0_83] : memref<8x8x512xf32, #tpu.memory_space<vmem>>, vector<1x8x512xf32>
    %196 = vector.shape_cast %195 : vector<1x8x512xf32> to vector<8x512xf32>
    %c0_84 = arith.constant 0 : index
    %c0_85 = arith.constant 0 : index
    %197 = vector.load %arg5[%c0_84, %c0_85] : memref<8x128xf32, #tpu.memory_space<vmem>>, vector<8x128xf32>
    %cst_86 = arith.constant dense<0.000000e+00> : vector<8x512xf32>
    %198 = tpu.matmul %197, %3, %cst_86 {dimension_numbers = #tpu.dot_dimension_numbers<[1], [0], [0], [1], [0, 0, 1, 1], [], []>} : vector<8x128xf32>, vector<128x512xf32>, vector<8x512xf32> -> vector<8x512xf32>
    %199 = arith.addf %196, %198 : vector<8x512xf32>
    %200 = vector.extract_strided_slice %199 {offsets = [0, 0], sizes = [8, 128], strides = [1, 1]} : vector<8x512xf32> to vector<8x128xf32>
    %201 = arith.negf %200 : vector<8x128xf32>
    %202 = math.exp %201 : vector<8x128xf32>
    %cst_87 = arith.constant 1.000000e+00 : f32
    %203 = vector.broadcast %cst_87 : f32 to vector<8x128xf32>
    %204 = arith.addf %203, %202 : vector<8x128xf32>
    %205 = arith.divf %203, %204 : vector<8x128xf32>
    %206 = vector.extract_strided_slice %199 {offsets = [0, 128], sizes = [8, 128], strides = [1, 1]} : vector<8x512xf32> to vector<8x128xf32>
    %207 = arith.negf %206 : vector<8x128xf32>
    %208 = math.exp %207 : vector<8x128xf32>
    %cst_88 = arith.constant 1.000000e+00 : f32
    %209 = vector.broadcast %cst_88 : f32 to vector<8x128xf32>
    %210 = arith.addf %209, %208 : vector<8x128xf32>
    %211 = arith.divf %209, %210 : vector<8x128xf32>
    %212 = vector.extract_strided_slice %199 {offsets = [0, 256], sizes = [8, 128], strides = [1, 1]} : vector<8x512xf32> to vector<8x128xf32>
    %213 = math.tanh %212 : vector<8x128xf32>
    %214 = vector.extract_strided_slice %199 {offsets = [0, 384], sizes = [8, 128], strides = [1, 1]} : vector<8x512xf32> to vector<8x128xf32>
    %215 = arith.negf %214 : vector<8x128xf32>
    %216 = math.exp %215 : vector<8x128xf32>
    %cst_89 = arith.constant 1.000000e+00 : f32
    %217 = vector.broadcast %cst_89 : f32 to vector<8x128xf32>
    %218 = arith.addf %217, %216 : vector<8x128xf32>
    %219 = arith.divf %217, %218 : vector<8x128xf32>
    %c0_90 = arith.constant 0 : index
    %c0_91 = arith.constant 0 : index
    %220 = vector.load %arg6[%c0_90, %c0_91] : memref<8x128xf32, #tpu.memory_space<vmem>>, vector<8x128xf32>
    %221 = arith.mulf %211, %220 : vector<8x128xf32>
    %222 = arith.mulf %205, %213 : vector<8x128xf32>
    %223 = arith.addf %221, %222 : vector<8x128xf32>
    %224 = math.tanh %223 : vector<8x128xf32>
    %225 = arith.mulf %219, %224 : vector<8x128xf32>
    %c0_92 = arith.constant 0 : index
    %c0_93 = arith.constant 0 : index
    %226 = vector.load %arg6[%c0_92, %c0_93] : memref<8x128xf32, #tpu.memory_space<vmem>>, vector<8x128xf32>
    tpu.vector_store %arg6[%c0_92, %c0_93], %223 {strides = array<i32>} : memref<8x128xf32, #tpu.memory_space<vmem>>, vector<8x128xf32>,
    %c0_94 = arith.constant 0 : index
    %c0_95 = arith.constant 0 : index
    %227 = vector.load %arg5[%c0_94, %c0_95] : memref<8x128xf32, #tpu.memory_space<vmem>>, vector<8x128xf32>
    tpu.vector_store %arg5[%c0_94, %c0_95], %225 {strides = array<i32>} : memref<8x128xf32, #tpu.memory_space<vmem>>, vector<8x128xf32>,
    %228 = arith.index_cast %c5_i32 : i32 to index
    %c0_96 = arith.constant 0 : index
    %c0_97 = arith.constant 0 : index
    %229 = vector.load %arg4[%228, %c0_96, %c0_97] : memref<8x8x128xf32, #tpu.memory_space<vmem>>, vector<1x8x128xf32>
    %230 = vector.shape_cast %229 : vector<1x8x128xf32> to vector<8x128xf32>
    %231 = vector.shape_cast %225 : vector<8x128xf32> to vector<1x8x128xf32>
    tpu.vector_store %arg4[%228, %c0_96, %c0_97], %231 {strides = array<i32>} : memref<8x8x128xf32, #tpu.memory_space<vmem>>, vector<1x8x128xf32>,
    %c6_i32 = arith.constant 6 : i32
    %232 = arith.index_cast %c6_i32 : i32 to index
    %c0_98 = arith.constant 0 : index
    %c0_99 = arith.constant 0 : index
    %233 = vector.load %arg2[%232, %c0_98, %c0_99] : memref<8x8x512xf32, #tpu.memory_space<vmem>>, vector<1x8x512xf32>
    %234 = vector.shape_cast %233 : vector<1x8x512xf32> to vector<8x512xf32>
    %c0_100 = arith.constant 0 : index
    %c0_101 = arith.constant 0 : index
    %235 = vector.load %arg5[%c0_100, %c0_101] : memref<8x128xf32, #tpu.memory_space<vmem>>, vector<8x128xf32>
    %cst_102 = arith.constant dense<0.000000e+00> : vector<8x512xf32>
    %236 = tpu.matmul %235, %3, %cst_102 {dimension_numbers = #tpu.dot_dimension_numbers<[1], [0], [0], [1], [0, 0, 1, 1], [], []>} : vector<8x128xf32>, vector<128x512xf32>, vector<8x512xf32> -> vector<8x512xf32>
    %237 = arith.addf %234, %236 : vector<8x512xf32>
    %238 = vector.extract_strided_slice %237 {offsets = [0, 0], sizes = [8, 128], strides = [1, 1]} : vector<8x512xf32> to vector<8x128xf32>
    %239 = arith.negf %238 : vector<8x128xf32>
    %240 = math.exp %239 : vector<8x128xf32>
    %cst_103 = arith.constant 1.000000e+00 : f32
    %241 = vector.broadcast %cst_103 : f32 to vector<8x128xf32>
    %242 = arith.addf %241, %240 : vector<8x128xf32>
    %243 = arith.divf %241, %242 : vector<8x128xf32>
    %244 = vector.extract_strided_slice %237 {offsets = [0, 128], sizes = [8, 128], strides = [1, 1]} : vector<8x512xf32> to vector<8x128xf32>
    %245 = arith.negf %244 : vector<8x128xf32>
    %246 = math.exp %245 : vector<8x128xf32>
    %cst_104 = arith.constant 1.000000e+00 : f32
    %247 = vector.broadcast %cst_104 : f32 to vector<8x128xf32>
    %248 = arith.addf %247, %246 : vector<8x128xf32>
    %249 = arith.divf %247, %248 : vector<8x128xf32>
    %250 = vector.extract_strided_slice %237 {offsets = [0, 256], sizes = [8, 128], strides = [1, 1]} : vector<8x512xf32> to vector<8x128xf32>
    %251 = math.tanh %250 : vector<8x128xf32>
    %252 = vector.extract_strided_slice %237 {offsets = [0, 384], sizes = [8, 128], strides = [1, 1]} : vector<8x512xf32> to vector<8x128xf32>
    %253 = arith.negf %252 : vector<8x128xf32>
    %254 = math.exp %253 : vector<8x128xf32>
    %cst_105 = arith.constant 1.000000e+00 : f32
    %255 = vector.broadcast %cst_105 : f32 to vector<8x128xf32>
    %256 = arith.addf %255, %254 : vector<8x128xf32>
    %257 = arith.divf %255, %256 : vector<8x128xf32>
    %c0_106 = arith.constant 0 : index
    %c0_107 = arith.constant 0 : index
    %258 = vector.load %arg6[%c0_106, %c0_107] : memref<8x128xf32, #tpu.memory_space<vmem>>, vector<8x128xf32>
    %259 = arith.mulf %249, %258 : vector<8x128xf32>
    %260 = arith.mulf %243, %251 : vector<8x128xf32>
    %261 = arith.addf %259, %260 : vector<8x128xf32>
    %262 = math.tanh %261 : vector<8x128xf32>
    %263 = arith.mulf %257, %262 : vector<8x128xf32>
    %c0_108 = arith.constant 0 : index
    %c0_109 = arith.constant 0 : index
    %264 = vector.load %arg6[%c0_108, %c0_109] : memref<8x128xf32, #tpu.memory_space<vmem>>, vector<8x128xf32>
    tpu.vector_store %arg6[%c0_108, %c0_109], %261 {strides = array<i32>} : memref<8x128xf32, #tpu.memory_space<vmem>>, vector<8x128xf32>,
    %c0_110 = arith.constant 0 : index
    %c0_111 = arith.constant 0 : index
    %265 = vector.load %arg5[%c0_110, %c0_111] : memref<8x128xf32, #tpu.memory_space<vmem>>, vector<8x128xf32>
    tpu.vector_store %arg5[%c0_110, %c0_111], %263 {strides = array<i32>} : memref<8x128xf32, #tpu.memory_space<vmem>>, vector<8x128xf32>,
    %266 = arith.index_cast %c6_i32 : i32 to index
    %c0_112 = arith.constant 0 : index
    %c0_113 = arith.constant 0 : index
    %267 = vector.load %arg4[%266, %c0_112, %c0_113] : memref<8x8x128xf32, #tpu.memory_space<vmem>>, vector<1x8x128xf32>
    %268 = vector.shape_cast %267 : vector<1x8x128xf32> to vector<8x128xf32>
    %269 = vector.shape_cast %263 : vector<8x128xf32> to vector<1x8x128xf32>
    tpu.vector_store %arg4[%266, %c0_112, %c0_113], %269 {strides = array<i32>} : memref<8x8x128xf32, #tpu.memory_space<vmem>>, vector<1x8x128xf32>,
    %c7_i32 = arith.constant 7 : i32
    %270 = arith.index_cast %c7_i32 : i32 to index
    %c0_114 = arith.constant 0 : index
    %c0_115 = arith.constant 0 : index
    %271 = vector.load %arg2[%270, %c0_114, %c0_115] : memref<8x8x512xf32, #tpu.memory_space<vmem>>, vector<1x8x512xf32>
    %272 = vector.shape_cast %271 : vector<1x8x512xf32> to vector<8x512xf32>
    %c0_116 = arith.constant 0 : index
    %c0_117 = arith.constant 0 : index
    %273 = vector.load %arg5[%c0_116, %c0_117] : memref<8x128xf32, #tpu.memory_space<vmem>>, vector<8x128xf32>
    %cst_118 = arith.constant dense<0.000000e+00> : vector<8x512xf32>
    %274 = tpu.matmul %273, %3, %cst_118 {dimension_numbers = #tpu.dot_dimension_numbers<[1], [0], [0], [1], [0, 0, 1, 1], [], []>} : vector<8x128xf32>, vector<128x512xf32>, vector<8x512xf32> -> vector<8x512xf32>
    %275 = arith.addf %272, %274 : vector<8x512xf32>
    %276 = vector.extract_strided_slice %275 {offsets = [0, 0], sizes = [8, 128], strides = [1, 1]} : vector<8x512xf32> to vector<8x128xf32>
    %277 = arith.negf %276 : vector<8x128xf32>
    %278 = math.exp %277 : vector<8x128xf32>
    %cst_119 = arith.constant 1.000000e+00 : f32
    %279 = vector.broadcast %cst_119 : f32 to vector<8x128xf32>
    %280 = arith.addf %279, %278 : vector<8x128xf32>
    %281 = arith.divf %279, %280 : vector<8x128xf32>
    %282 = vector.extract_strided_slice %275 {offsets = [0, 128], sizes = [8, 128], strides = [1, 1]} : vector<8x512xf32> to vector<8x128xf32>
    %283 = arith.negf %282 : vector<8x128xf32>
    %284 = math.exp %283 : vector<8x128xf32>
    %cst_120 = arith.constant 1.000000e+00 : f32
    %285 = vector.broadcast %cst_120 : f32 to vector<8x128xf32>
    %286 = arith.addf %285, %284 : vector<8x128xf32>
    %287 = arith.divf %285, %286 : vector<8x128xf32>
    %288 = vector.extract_strided_slice %275 {offsets = [0, 256], sizes = [8, 128], strides = [1, 1]} : vector<8x512xf32> to vector<8x128xf32>
    %289 = math.tanh %288 : vector<8x128xf32>
    %290 = vector.extract_strided_slice %275 {offsets = [0, 384], sizes = [8, 128], strides = [1, 1]} : vector<8x512xf32> to vector<8x128xf32>
    %291 = arith.negf %290 : vector<8x128xf32>
    %292 = math.exp %291 : vector<8x128xf32>
    %cst_121 = arith.constant 1.000000e+00 : f32
    %293 = vector.broadcast %cst_121 : f32 to vector<8x128xf32>
    %294 = arith.addf %293, %292 : vector<8x128xf32>
    %295 = arith.divf %293, %294 : vector<8x128xf32>
    %c0_122 = arith.constant 0 : index
    %c0_123 = arith.constant 0 : index
    %296 = vector.load %arg6[%c0_122, %c0_123] : memref<8x128xf32, #tpu.memory_space<vmem>>, vector<8x128xf32>
    %297 = arith.mulf %287, %296 : vector<8x128xf32>
    %298 = arith.mulf %281, %289 : vector<8x128xf32>
    %299 = arith.addf %297, %298 : vector<8x128xf32>
    %300 = math.tanh %299 : vector<8x128xf32>
    %301 = arith.mulf %295, %300 : vector<8x128xf32>
    %c0_124 = arith.constant 0 : index
    %c0_125 = arith.constant 0 : index
    %302 = vector.load %arg6[%c0_124, %c0_125] : memref<8x128xf32, #tpu.memory_space<vmem>>, vector<8x128xf32>
    tpu.vector_store %arg6[%c0_124, %c0_125], %299 {strides = array<i32>} : memref<8x128xf32, #tpu.memory_space<vmem>>, vector<8x128xf32>,
    %c0_126 = arith.constant 0 : index
    %c0_127 = arith.constant 0 : index
    %303 = vector.load %arg5[%c0_126, %c0_127] : memref<8x128xf32, #tpu.memory_space<vmem>>, vector<8x128xf32>
    tpu.vector_store %arg5[%c0_126, %c0_127], %301 {strides = array<i32>} : memref<8x128xf32, #tpu.memory_space<vmem>>, vector<8x128xf32>,
    %304 = arith.index_cast %c7_i32 : i32 to index
    %c0_128 = arith.constant 0 : index
    %c0_129 = arith.constant 0 : index
    %305 = vector.load %arg4[%304, %c0_128, %c0_129] : memref<8x8x128xf32, #tpu.memory_space<vmem>>, vector<1x8x128xf32>
    %306 = vector.shape_cast %305 : vector<1x8x128xf32> to vector<8x128xf32>
    %307 = vector.shape_cast %301 : vector<8x128xf32> to vector<1x8x128xf32>
    tpu.vector_store %arg4[%304, %c0_128, %c0_129], %307 {strides = array<i32>} : memref<8x8x128xf32, #tpu.memory_space<vmem>>, vector<1x8x128xf32>,
    %c8_i32 = arith.constant 8 : i32
    return
  }
  func.func @transform_0(%arg0: i32, %arg1: i32) -> (i32, i32, i32) {
    %c0_i32 = arith.constant 0 : i32
    %c0_i32_0 = arith.constant 0 : i32
    return %arg1, %arg0, %c0_i32 : i32, i32, i32
  }
  func.func @transform_1(%arg0: i32, %arg1: i32) -> (i32, i32) {
    %c0_i32 = arith.constant 0 : i32
    %c0_i32_0 = arith.constant 0 : i32
    %c0_i32_1 = arith.constant 0 : i32
    return %c0_i32, %c0_i32_0 : i32, i32
  }
  func.func @transform_2(%arg0: i32, %arg1: i32) -> (i32, i32, i32) {
    %c0_i32 = arith.constant 0 : i32
    %c0_i32_0 = arith.constant 0 : i32
    return %arg1, %arg0, %c0_i32 : i32, i32, i32
  }
}

module attributes {stable_mosaic.version = 11 : i64} {
  func.func @matmul_bias_kernel(%arg0: i32, %arg1: memref<64x4xf32, #tpu.memory_space<vmem>>, %arg2: memref<4x512xf32, #tpu.memory_space<vmem>>, %arg3: memref<1x512xf32, #tpu.memory_space<vmem>>, %arg4: memref<64x512xf32, #tpu.memory_space<vmem>>) attributes {dimension_semantics = [#tpu.dimension_semantics<parallel>], iteration_bounds = array<i64: 1>, scalar_prefetch = 0 : i64, scratch_operands = 0 : i64, tpu.core_type = #tpu.core_type<tc>, window_params = [{transform_indices = @transform_0, window_bounds = array<i64: 64, 4>}, {pipeline_mode = #tpu.pipeline_mode<synchronous>, transform_indices = @transform_1, window_bounds = array<i64: 4, 512>}, {pipeline_mode = #tpu.pipeline_mode<synchronous>, transform_indices = @transform_2, window_bounds = array<i64: 1, 512>}, {transform_indices = @transform_3, window_bounds = array<i64: 64, 512>}]} {
    %c0 = arith.constant 0 : index
    %c0_0 = arith.constant 0 : index
    %0 = vector.load %arg1[%c0, %c0_0] : memref<64x4xf32, #tpu.memory_space<vmem>>, vector<64x4xf32>
    %c0_1 = arith.constant 0 : index
    %c0_2 = arith.constant 0 : index
    %1 = vector.load %arg2[%c0_1, %c0_2] : memref<4x512xf32, #tpu.memory_space<vmem>>, vector<4x512xf32>
    %cst = arith.constant dense<0.000000e+00> : vector<64x512xf32>
    %2 = tpu.matmul %0, %1, %cst {dimension_numbers = #tpu.dot_dimension_numbers<[1], [0], [0], [1], [0, 0, 1, 1], [], []>} : vector<64x4xf32>, vector<4x512xf32>, vector<64x512xf32> -> vector<64x512xf32>
    %c0_3 = arith.constant 0 : index
    %c0_4 = arith.constant 0 : index
    %3 = vector.load %arg3[%c0_3, %c0_4] : memref<1x512xf32, #tpu.memory_space<vmem>>, vector<1x512xf32>
    %4 = vector.broadcast %3 : vector<1x512xf32> to vector<64x512xf32>
    %5 = arith.addf %2, %4 : vector<64x512xf32>
    %c0_5 = arith.constant 0 : index
    %c0_6 = arith.constant 0 : index
    %6 = vector.load %arg4[%c0_5, %c0_6] : memref<64x512xf32, #tpu.memory_space<vmem>>, vector<64x512xf32>
    tpu.vector_store %arg4[%c0_5, %c0_6], %5 {strides = array<i32>} : memref<64x512xf32, #tpu.memory_space<vmem>>, vector<64x512xf32>,
    return
  }
  func.func @transform_0(%arg0: i32) -> (i32, i32) {
    %c0_i32 = arith.constant 0 : i32
    %c0_i32_0 = arith.constant 0 : i32
    return %arg0, %c0_i32 : i32, i32
  }
  func.func @transform_1(%arg0: i32) -> (i32, i32) {
    %c0_i32 = arith.constant 0 : i32
    %c0_i32_0 = arith.constant 0 : i32
    %c0_i32_1 = arith.constant 0 : i32
    return %c0_i32, %c0_i32_0 : i32, i32
  }
  func.func @transform_2(%arg0: i32) -> (i32, i32) {
    %c0_i32 = arith.constant 0 : i32
    %c0_i32_0 = arith.constant 0 : i32
    %c0_i32_1 = arith.constant 0 : i32
    return %c0_i32, %c0_i32_0 : i32, i32
  }
  func.func @transform_3(%arg0: i32) -> (i32, i32) {
    %c0_i32 = arith.constant 0 : i32
    %c0_i32_0 = arith.constant 0 : i32
    return %arg0, %c0_i32 : i32, i32
  }
}

module attributes {stable_mosaic.version = 11 : i64} {
  func.func @matmul_bias_kernel(%arg0: i32, %arg1: memref<64x128xf32, #tpu.memory_space<vmem>>, %arg2: memref<128x512xf32, #tpu.memory_space<vmem>>, %arg3: memref<1x512xf32, #tpu.memory_space<vmem>>, %arg4: memref<64x512xf32, #tpu.memory_space<vmem>>) attributes {dimension_semantics = [#tpu.dimension_semantics<parallel>], iteration_bounds = array<i64: 1>, scalar_prefetch = 0 : i64, scratch_operands = 0 : i64, tpu.core_type = #tpu.core_type<tc>, window_params = [{transform_indices = @transform_0, window_bounds = array<i64: 64, 128>}, {pipeline_mode = #tpu.pipeline_mode<synchronous>, transform_indices = @transform_1, window_bounds = array<i64: 128, 512>}, {pipeline_mode = #tpu.pipeline_mode<synchronous>, transform_indices = @transform_2, window_bounds = array<i64: 1, 512>}, {transform_indices = @transform_3, window_bounds = array<i64: 64, 512>}]} {
    %c0 = arith.constant 0 : index
    %c0_0 = arith.constant 0 : index
    %0 = vector.load %arg1[%c0, %c0_0] : memref<64x128xf32, #tpu.memory_space<vmem>>, vector<64x128xf32>
    %c0_1 = arith.constant 0 : index
    %c0_2 = arith.constant 0 : index
    %1 = vector.load %arg2[%c0_1, %c0_2] : memref<128x512xf32, #tpu.memory_space<vmem>>, vector<128x512xf32>
    %cst = arith.constant dense<0.000000e+00> : vector<64x512xf32>
    %2 = tpu.matmul %0, %1, %cst {dimension_numbers = #tpu.dot_dimension_numbers<[1], [0], [0], [1], [0, 0, 1, 1], [], []>} : vector<64x128xf32>, vector<128x512xf32>, vector<64x512xf32> -> vector<64x512xf32>
    %c0_3 = arith.constant 0 : index
    %c0_4 = arith.constant 0 : index
    %3 = vector.load %arg3[%c0_3, %c0_4] : memref<1x512xf32, #tpu.memory_space<vmem>>, vector<1x512xf32>
    %4 = vector.broadcast %3 : vector<1x512xf32> to vector<64x512xf32>
    %5 = arith.addf %2, %4 : vector<64x512xf32>
    %c0_5 = arith.constant 0 : index
    %c0_6 = arith.constant 0 : index
    %6 = vector.load %arg4[%c0_5, %c0_6] : memref<64x512xf32, #tpu.memory_space<vmem>>, vector<64x512xf32>
    tpu.vector_store %arg4[%c0_5, %c0_6], %5 {strides = array<i32>} : memref<64x512xf32, #tpu.memory_space<vmem>>, vector<64x512xf32>,
    return
  }
  func.func @transform_0(%arg0: i32) -> (i32, i32) {
    %c0_i32 = arith.constant 0 : i32
    %c0_i32_0 = arith.constant 0 : i32
    return %arg0, %c0_i32 : i32, i32
  }
  func.func @transform_1(%arg0: i32) -> (i32, i32) {
    %c0_i32 = arith.constant 0 : i32
    %c0_i32_0 = arith.constant 0 : i32
    %c0_i32_1 = arith.constant 0 : i32
    return %c0_i32, %c0_i32_0 : i32, i32
  }
  func.func @transform_2(%arg0: i32) -> (i32, i32) {
    %c0_i32 = arith.constant 0 : i32
    %c0_i32_0 = arith.constant 0 : i32
    %c0_i32_1 = arith.constant 0 : i32
    return %c0_i32, %c0_i32_0 : i32, i32
  }
  func.func @transform_3(%arg0: i32) -> (i32, i32) {
    %c0_i32 = arith.constant 0 : i32
    %c0_i32_0 = arith.constant 0 : i32
    return %arg0, %c0_i32 : i32, i32
  }
}

module attributes {stable_mosaic.version = 11 : i64} {
  func.func @lstm_last_layer_kernel(%arg0: i32, %arg1: i32, %arg2: memref<8x8x512xf32, #tpu.memory_space<vmem>>, %arg3: memref<128x512xf32, #tpu.memory_space<vmem>>, %arg4: memref<128x128xf32, #tpu.memory_space<vmem>>, %arg5: memref<1x128xf32, #tpu.memory_space<vmem>>, %arg6: memref<8x128xf32, #tpu.memory_space<vmem>>, %arg7: memref<8x128xf32, #tpu.memory_space<vmem>>, %arg8: memref<8x128xf32, #tpu.memory_space<vmem>>) attributes {dimension_semantics = [#tpu.dimension_semantics<parallel>, #tpu.dimension_semantics<arbitrary>], iteration_bounds = array<i64: 1, 1>, scalar_prefetch = 0 : i64, scratch_operands = 2 : i64, tpu.core_type = #tpu.core_type<tc>, window_params = [{transform_indices = @transform_0, window_bounds = array<i64: 8, 8, 512>}, {pipeline_mode = #tpu.pipeline_mode<synchronous>, transform_indices = @transform_1, window_bounds = array<i64: 128, 512>}, {pipeline_mode = #tpu.pipeline_mode<synchronous>, transform_indices = @transform_2, window_bounds = array<i64: 128, 128>}, {pipeline_mode = #tpu.pipeline_mode<synchronous>, transform_indices = @transform_3, window_bounds = array<i64: 1, 128>}, {transform_indices = @transform_4, window_bounds = array<i64: 8, 128>}]} {
    %c0_i32 = arith.constant 0 : i32
    %0 = arith.cmpi eq, %arg1, %c0_i32 : i32
    %1 = arith.extui %0 : i1 to i32
    %c0_i32_0 = arith.constant 0 : i32
    %2 = arith.cmpi ne, %1, %c0_i32_0 : i32
    scf.if %2 {
      %cst_116 = arith.constant 0.000000e+00 : f32
      %279 = vector.broadcast %cst_116 : f32 to vector<8x128xf32>
      %c0_117 = arith.constant 0 : index
      %c0_118 = arith.constant 0 : index
      %280 = vector.load %arg7[%c0_117, %c0_118] : memref<8x128xf32, #tpu.memory_space<vmem>>, vector<8x128xf32>
      tpu.vector_store %arg7[%c0_117, %c0_118], %279 {strides = array<i32>} : memref<8x128xf32, #tpu.memory_space<vmem>>, vector<8x128xf32>,
      %cst_119 = arith.constant 0.000000e+00 : f32
      %281 = vector.broadcast %cst_119 : f32 to vector<8x128xf32>
      %c0_120 = arith.constant 0 : index
      %c0_121 = arith.constant 0 : index
      %282 = vector.load %arg8[%c0_120, %c0_121] : memref<8x128xf32, #tpu.memory_space<vmem>>, vector<8x128xf32>
      tpu.vector_store %arg8[%c0_120, %c0_121], %281 {strides = array<i32>} : memref<8x128xf32, #tpu.memory_space<vmem>>, vector<8x128xf32>,
    } else {
    }
    %c0 = arith.constant 0 : index
    %c0_1 = arith.constant 0 : index
    %3 = vector.load %arg3[%c0, %c0_1] : memref<128x512xf32, #tpu.memory_space<vmem>>, vector<128x512xf32>
    %c0_i32_2 = arith.constant 0 : i32
    %4 = arith.index_cast %c0_i32_2 : i32 to index
    %c0_3 = arith.constant 0 : index
    %c0_4 = arith.constant 0 : index
    %5 = vector.load %arg2[%4, %c0_3, %c0_4] : memref<8x8x512xf32, #tpu.memory_space<vmem>>, vector<1x8x512xf32>
    %6 = vector.shape_cast %5 : vector<1x8x512xf32> to vector<8x512xf32>
    %c0_5 = arith.constant 0 : index
    %c0_6 = arith.constant 0 : index
    %7 = vector.load %arg7[%c0_5, %c0_6] : memref<8x128xf32, #tpu.memory_space<vmem>>, vector<8x128xf32>
    %cst = arith.constant dense<0.000000e+00> : vector<8x512xf32>
    %8 = tpu.matmul %7, %3, %cst {dimension_numbers = #tpu.dot_dimension_numbers<[1], [0], [0], [1], [0, 0, 1, 1], [], []>} : vector<8x128xf32>, vector<128x512xf32>, vector<8x512xf32> -> vector<8x512xf32>
    %9 = arith.addf %6, %8 : vector<8x512xf32>
    %10 = vector.extract_strided_slice %9 {offsets = [0, 0], sizes = [8, 128], strides = [1, 1]} : vector<8x512xf32> to vector<8x128xf32>
    %11 = arith.negf %10 : vector<8x128xf32>
    %12 = math.exp %11 : vector<8x128xf32>
    %cst_7 = arith.constant 1.000000e+00 : f32
    %13 = vector.broadcast %cst_7 : f32 to vector<8x128xf32>
    %14 = arith.addf %13, %12 : vector<8x128xf32>
    %15 = arith.divf %13, %14 : vector<8x128xf32>
    %16 = vector.extract_strided_slice %9 {offsets = [0, 128], sizes = [8, 128], strides = [1, 1]} : vector<8x512xf32> to vector<8x128xf32>
    %17 = arith.negf %16 : vector<8x128xf32>
    %18 = math.exp %17 : vector<8x128xf32>
    %cst_8 = arith.constant 1.000000e+00 : f32
    %19 = vector.broadcast %cst_8 : f32 to vector<8x128xf32>
    %20 = arith.addf %19, %18 : vector<8x128xf32>
    %21 = arith.divf %19, %20 : vector<8x128xf32>
    %22 = vector.extract_strided_slice %9 {offsets = [0, 256], sizes = [8, 128], strides = [1, 1]} : vector<8x512xf32> to vector<8x128xf32>
    %23 = math.tanh %22 : vector<8x128xf32>
    %24 = vector.extract_strided_slice %9 {offsets = [0, 384], sizes = [8, 128], strides = [1, 1]} : vector<8x512xf32> to vector<8x128xf32>
    %25 = arith.negf %24 : vector<8x128xf32>
    %26 = math.exp %25 : vector<8x128xf32>
    %cst_9 = arith.constant 1.000000e+00 : f32
    %27 = vector.broadcast %cst_9 : f32 to vector<8x128xf32>
    %28 = arith.addf %27, %26 : vector<8x128xf32>
    %29 = arith.divf %27, %28 : vector<8x128xf32>
    %c0_10 = arith.constant 0 : index
    %c0_11 = arith.constant 0 : index
    %30 = vector.load %arg8[%c0_10, %c0_11] : memref<8x128xf32, #tpu.memory_space<vmem>>, vector<8x128xf32>
    %31 = arith.mulf %21, %30 : vector<8x128xf32>
    %32 = arith.mulf %15, %23 : vector<8x128xf32>
    %33 = arith.addf %31, %32 : vector<8x128xf32>
    %34 = math.tanh %33 : vector<8x128xf32>
    %35 = arith.mulf %29, %34 : vector<8x128xf32>
    %c0_12 = arith.constant 0 : index
    %c0_13 = arith.constant 0 : index
    %36 = vector.load %arg8[%c0_12, %c0_13] : memref<8x128xf32, #tpu.memory_space<vmem>>, vector<8x128xf32>
    tpu.vector_store %arg8[%c0_12, %c0_13], %33 {strides = array<i32>} : memref<8x128xf32, #tpu.memory_space<vmem>>, vector<8x128xf32>,
    %c0_14 = arith.constant 0 : index
    %c0_15 = arith.constant 0 : index
    %37 = vector.load %arg7[%c0_14, %c0_15] : memref<8x128xf32, #tpu.memory_space<vmem>>, vector<8x128xf32>
    tpu.vector_store %arg7[%c0_14, %c0_15], %35 {strides = array<i32>} : memref<8x128xf32, #tpu.memory_space<vmem>>, vector<8x128xf32>,
    %c1_i32 = arith.constant 1 : i32
    %38 = arith.index_cast %c1_i32 : i32 to index
    %c0_16 = arith.constant 0 : index
    %c0_17 = arith.constant 0 : index
    %39 = vector.load %arg2[%38, %c0_16, %c0_17] : memref<8x8x512xf32, #tpu.memory_space<vmem>>, vector<1x8x512xf32>
    %40 = vector.shape_cast %39 : vector<1x8x512xf32> to vector<8x512xf32>
    %c0_18 = arith.constant 0 : index
    %c0_19 = arith.constant 0 : index
    %41 = vector.load %arg7[%c0_18, %c0_19] : memref<8x128xf32, #tpu.memory_space<vmem>>, vector<8x128xf32>
    %cst_20 = arith.constant dense<0.000000e+00> : vector<8x512xf32>
    %42 = tpu.matmul %41, %3, %cst_20 {dimension_numbers = #tpu.dot_dimension_numbers<[1], [0], [0], [1], [0, 0, 1, 1], [], []>} : vector<8x128xf32>, vector<128x512xf32>, vector<8x512xf32> -> vector<8x512xf32>
    %43 = arith.addf %40, %42 : vector<8x512xf32>
    %44 = vector.extract_strided_slice %43 {offsets = [0, 0], sizes = [8, 128], strides = [1, 1]} : vector<8x512xf32> to vector<8x128xf32>
    %45 = arith.negf %44 : vector<8x128xf32>
    %46 = math.exp %45 : vector<8x128xf32>
    %cst_21 = arith.constant 1.000000e+00 : f32
    %47 = vector.broadcast %cst_21 : f32 to vector<8x128xf32>
    %48 = arith.addf %47, %46 : vector<8x128xf32>
    %49 = arith.divf %47, %48 : vector<8x128xf32>
    %50 = vector.extract_strided_slice %43 {offsets = [0, 128], sizes = [8, 128], strides = [1, 1]} : vector<8x512xf32> to vector<8x128xf32>
    %51 = arith.negf %50 : vector<8x128xf32>
    %52 = math.exp %51 : vector<8x128xf32>
    %cst_22 = arith.constant 1.000000e+00 : f32
    %53 = vector.broadcast %cst_22 : f32 to vector<8x128xf32>
    %54 = arith.addf %53, %52 : vector<8x128xf32>
    %55 = arith.divf %53, %54 : vector<8x128xf32>
    %56 = vector.extract_strided_slice %43 {offsets = [0, 256], sizes = [8, 128], strides = [1, 1]} : vector<8x512xf32> to vector<8x128xf32>
    %57 = math.tanh %56 : vector<8x128xf32>
    %58 = vector.extract_strided_slice %43 {offsets = [0, 384], sizes = [8, 128], strides = [1, 1]} : vector<8x512xf32> to vector<8x128xf32>
    %59 = arith.negf %58 : vector<8x128xf32>
    %60 = math.exp %59 : vector<8x128xf32>
    %cst_23 = arith.constant 1.000000e+00 : f32
    %61 = vector.broadcast %cst_23 : f32 to vector<8x128xf32>
    %62 = arith.addf %61, %60 : vector<8x128xf32>
    %63 = arith.divf %61, %62 : vector<8x128xf32>
    %c0_24 = arith.constant 0 : index
    %c0_25 = arith.constant 0 : index
    %64 = vector.load %arg8[%c0_24, %c0_25] : memref<8x128xf32, #tpu.memory_space<vmem>>, vector<8x128xf32>
    %65 = arith.mulf %55, %64 : vector<8x128xf32>
    %66 = arith.mulf %49, %57 : vector<8x128xf32>
    %67 = arith.addf %65, %66 : vector<8x128xf32>
    %68 = math.tanh %67 : vector<8x128xf32>
    %69 = arith.mulf %63, %68 : vector<8x128xf32>
    %c0_26 = arith.constant 0 : index
    %c0_27 = arith.constant 0 : index
    %70 = vector.load %arg8[%c0_26, %c0_27] : memref<8x128xf32, #tpu.memory_space<vmem>>, vector<8x128xf32>
    tpu.vector_store %arg8[%c0_26, %c0_27], %67 {strides = array<i32>} : memref<8x128xf32, #tpu.memory_space<vmem>>, vector<8x128xf32>,
    %c0_28 = arith.constant 0 : index
    %c0_29 = arith.constant 0 : index
    %71 = vector.load %arg7[%c0_28, %c0_29] : memref<8x128xf32, #tpu.memory_space<vmem>>, vector<8x128xf32>
    tpu.vector_store %arg7[%c0_28, %c0_29], %69 {strides = array<i32>} : memref<8x128xf32, #tpu.memory_space<vmem>>, vector<8x128xf32>,
    %c2_i32 = arith.constant 2 : i32
    %72 = arith.index_cast %c2_i32 : i32 to index
    %c0_30 = arith.constant 0 : index
    %c0_31 = arith.constant 0 : index
    %73 = vector.load %arg2[%72, %c0_30, %c0_31] : memref<8x8x512xf32, #tpu.memory_space<vmem>>, vector<1x8x512xf32>
    %74 = vector.shape_cast %73 : vector<1x8x512xf32> to vector<8x512xf32>
    %c0_32 = arith.constant 0 : index
    %c0_33 = arith.constant 0 : index
    %75 = vector.load %arg7[%c0_32, %c0_33] : memref<8x128xf32, #tpu.memory_space<vmem>>, vector<8x128xf32>
    %cst_34 = arith.constant dense<0.000000e+00> : vector<8x512xf32>
    %76 = tpu.matmul %75, %3, %cst_34 {dimension_numbers = #tpu.dot_dimension_numbers<[1], [0], [0], [1], [0, 0, 1, 1], [], []>} : vector<8x128xf32>, vector<128x512xf32>, vector<8x512xf32> -> vector<8x512xf32>
    %77 = arith.addf %74, %76 : vector<8x512xf32>
    %78 = vector.extract_strided_slice %77 {offsets = [0, 0], sizes = [8, 128], strides = [1, 1]} : vector<8x512xf32> to vector<8x128xf32>
    %79 = arith.negf %78 : vector<8x128xf32>
    %80 = math.exp %79 : vector<8x128xf32>
    %cst_35 = arith.constant 1.000000e+00 : f32
    %81 = vector.broadcast %cst_35 : f32 to vector<8x128xf32>
    %82 = arith.addf %81, %80 : vector<8x128xf32>
    %83 = arith.divf %81, %82 : vector<8x128xf32>
    %84 = vector.extract_strided_slice %77 {offsets = [0, 128], sizes = [8, 128], strides = [1, 1]} : vector<8x512xf32> to vector<8x128xf32>
    %85 = arith.negf %84 : vector<8x128xf32>
    %86 = math.exp %85 : vector<8x128xf32>
    %cst_36 = arith.constant 1.000000e+00 : f32
    %87 = vector.broadcast %cst_36 : f32 to vector<8x128xf32>
    %88 = arith.addf %87, %86 : vector<8x128xf32>
    %89 = arith.divf %87, %88 : vector<8x128xf32>
    %90 = vector.extract_strided_slice %77 {offsets = [0, 256], sizes = [8, 128], strides = [1, 1]} : vector<8x512xf32> to vector<8x128xf32>
    %91 = math.tanh %90 : vector<8x128xf32>
    %92 = vector.extract_strided_slice %77 {offsets = [0, 384], sizes = [8, 128], strides = [1, 1]} : vector<8x512xf32> to vector<8x128xf32>
    %93 = arith.negf %92 : vector<8x128xf32>
    %94 = math.exp %93 : vector<8x128xf32>
    %cst_37 = arith.constant 1.000000e+00 : f32
    %95 = vector.broadcast %cst_37 : f32 to vector<8x128xf32>
    %96 = arith.addf %95, %94 : vector<8x128xf32>
    %97 = arith.divf %95, %96 : vector<8x128xf32>
    %c0_38 = arith.constant 0 : index
    %c0_39 = arith.constant 0 : index
    %98 = vector.load %arg8[%c0_38, %c0_39] : memref<8x128xf32, #tpu.memory_space<vmem>>, vector<8x128xf32>
    %99 = arith.mulf %89, %98 : vector<8x128xf32>
    %100 = arith.mulf %83, %91 : vector<8x128xf32>
    %101 = arith.addf %99, %100 : vector<8x128xf32>
    %102 = math.tanh %101 : vector<8x128xf32>
    %103 = arith.mulf %97, %102 : vector<8x128xf32>
    %c0_40 = arith.constant 0 : index
    %c0_41 = arith.constant 0 : index
    %104 = vector.load %arg8[%c0_40, %c0_41] : memref<8x128xf32, #tpu.memory_space<vmem>>, vector<8x128xf32>
    tpu.vector_store %arg8[%c0_40, %c0_41], %101 {strides = array<i32>} : memref<8x128xf32, #tpu.memory_space<vmem>>, vector<8x128xf32>,
    %c0_42 = arith.constant 0 : index
    %c0_43 = arith.constant 0 : index
    %105 = vector.load %arg7[%c0_42, %c0_43] : memref<8x128xf32, #tpu.memory_space<vmem>>, vector<8x128xf32>
    tpu.vector_store %arg7[%c0_42, %c0_43], %103 {strides = array<i32>} : memref<8x128xf32, #tpu.memory_space<vmem>>, vector<8x128xf32>,
    %c3_i32 = arith.constant 3 : i32
    %106 = arith.index_cast %c3_i32 : i32 to index
    %c0_44 = arith.constant 0 : index
    %c0_45 = arith.constant 0 : index
    %107 = vector.load %arg2[%106, %c0_44, %c0_45] : memref<8x8x512xf32, #tpu.memory_space<vmem>>, vector<1x8x512xf32>
    %108 = vector.shape_cast %107 : vector<1x8x512xf32> to vector<8x512xf32>
    %c0_46 = arith.constant 0 : index
    %c0_47 = arith.constant 0 : index
    %109 = vector.load %arg7[%c0_46, %c0_47] : memref<8x128xf32, #tpu.memory_space<vmem>>, vector<8x128xf32>
    %cst_48 = arith.constant dense<0.000000e+00> : vector<8x512xf32>
    %110 = tpu.matmul %109, %3, %cst_48 {dimension_numbers = #tpu.dot_dimension_numbers<[1], [0], [0], [1], [0, 0, 1, 1], [], []>} : vector<8x128xf32>, vector<128x512xf32>, vector<8x512xf32> -> vector<8x512xf32>
    %111 = arith.addf %108, %110 : vector<8x512xf32>
    %112 = vector.extract_strided_slice %111 {offsets = [0, 0], sizes = [8, 128], strides = [1, 1]} : vector<8x512xf32> to vector<8x128xf32>
    %113 = arith.negf %112 : vector<8x128xf32>
    %114 = math.exp %113 : vector<8x128xf32>
    %cst_49 = arith.constant 1.000000e+00 : f32
    %115 = vector.broadcast %cst_49 : f32 to vector<8x128xf32>
    %116 = arith.addf %115, %114 : vector<8x128xf32>
    %117 = arith.divf %115, %116 : vector<8x128xf32>
    %118 = vector.extract_strided_slice %111 {offsets = [0, 128], sizes = [8, 128], strides = [1, 1]} : vector<8x512xf32> to vector<8x128xf32>
    %119 = arith.negf %118 : vector<8x128xf32>
    %120 = math.exp %119 : vector<8x128xf32>
    %cst_50 = arith.constant 1.000000e+00 : f32
    %121 = vector.broadcast %cst_50 : f32 to vector<8x128xf32>
    %122 = arith.addf %121, %120 : vector<8x128xf32>
    %123 = arith.divf %121, %122 : vector<8x128xf32>
    %124 = vector.extract_strided_slice %111 {offsets = [0, 256], sizes = [8, 128], strides = [1, 1]} : vector<8x512xf32> to vector<8x128xf32>
    %125 = math.tanh %124 : vector<8x128xf32>
    %126 = vector.extract_strided_slice %111 {offsets = [0, 384], sizes = [8, 128], strides = [1, 1]} : vector<8x512xf32> to vector<8x128xf32>
    %127 = arith.negf %126 : vector<8x128xf32>
    %128 = math.exp %127 : vector<8x128xf32>
    %cst_51 = arith.constant 1.000000e+00 : f32
    %129 = vector.broadcast %cst_51 : f32 to vector<8x128xf32>
    %130 = arith.addf %129, %128 : vector<8x128xf32>
    %131 = arith.divf %129, %130 : vector<8x128xf32>
    %c0_52 = arith.constant 0 : index
    %c0_53 = arith.constant 0 : index
    %132 = vector.load %arg8[%c0_52, %c0_53] : memref<8x128xf32, #tpu.memory_space<vmem>>, vector<8x128xf32>
    %133 = arith.mulf %123, %132 : vector<8x128xf32>
    %134 = arith.mulf %117, %125 : vector<8x128xf32>
    %135 = arith.addf %133, %134 : vector<8x128xf32>
    %136 = math.tanh %135 : vector<8x128xf32>
    %137 = arith.mulf %131, %136 : vector<8x128xf32>
    %c0_54 = arith.constant 0 : index
    %c0_55 = arith.constant 0 : index
    %138 = vector.load %arg8[%c0_54, %c0_55] : memref<8x128xf32, #tpu.memory_space<vmem>>, vector<8x128xf32>
    tpu.vector_store %arg8[%c0_54, %c0_55], %135 {strides = array<i32>} : memref<8x128xf32, #tpu.memory_space<vmem>>, vector<8x128xf32>,
    %c0_56 = arith.constant 0 : index
    %c0_57 = arith.constant 0 : index
    %139 = vector.load %arg7[%c0_56, %c0_57] : memref<8x128xf32, #tpu.memory_space<vmem>>, vector<8x128xf32>
    tpu.vector_store %arg7[%c0_56, %c0_57], %137 {strides = array<i32>} : memref<8x128xf32, #tpu.memory_space<vmem>>, vector<8x128xf32>,
    %c4_i32 = arith.constant 4 : i32
    %140 = arith.index_cast %c4_i32 : i32 to index
    %c0_58 = arith.constant 0 : index
    %c0_59 = arith.constant 0 : index
    %141 = vector.load %arg2[%140, %c0_58, %c0_59] : memref<8x8x512xf32, #tpu.memory_space<vmem>>, vector<1x8x512xf32>
    %142 = vector.shape_cast %141 : vector<1x8x512xf32> to vector<8x512xf32>
    %c0_60 = arith.constant 0 : index
    %c0_61 = arith.constant 0 : index
    %143 = vector.load %arg7[%c0_60, %c0_61] : memref<8x128xf32, #tpu.memory_space<vmem>>, vector<8x128xf32>
    %cst_62 = arith.constant dense<0.000000e+00> : vector<8x512xf32>
    %144 = tpu.matmul %143, %3, %cst_62 {dimension_numbers = #tpu.dot_dimension_numbers<[1], [0], [0], [1], [0, 0, 1, 1], [], []>} : vector<8x128xf32>, vector<128x512xf32>, vector<8x512xf32> -> vector<8x512xf32>
    %145 = arith.addf %142, %144 : vector<8x512xf32>
    %146 = vector.extract_strided_slice %145 {offsets = [0, 0], sizes = [8, 128], strides = [1, 1]} : vector<8x512xf32> to vector<8x128xf32>
    %147 = arith.negf %146 : vector<8x128xf32>
    %148 = math.exp %147 : vector<8x128xf32>
    %cst_63 = arith.constant 1.000000e+00 : f32
    %149 = vector.broadcast %cst_63 : f32 to vector<8x128xf32>
    %150 = arith.addf %149, %148 : vector<8x128xf32>
    %151 = arith.divf %149, %150 : vector<8x128xf32>
    %152 = vector.extract_strided_slice %145 {offsets = [0, 128], sizes = [8, 128], strides = [1, 1]} : vector<8x512xf32> to vector<8x128xf32>
    %153 = arith.negf %152 : vector<8x128xf32>
    %154 = math.exp %153 : vector<8x128xf32>
    %cst_64 = arith.constant 1.000000e+00 : f32
    %155 = vector.broadcast %cst_64 : f32 to vector<8x128xf32>
    %156 = arith.addf %155, %154 : vector<8x128xf32>
    %157 = arith.divf %155, %156 : vector<8x128xf32>
    %158 = vector.extract_strided_slice %145 {offsets = [0, 256], sizes = [8, 128], strides = [1, 1]} : vector<8x512xf32> to vector<8x128xf32>
    %159 = math.tanh %158 : vector<8x128xf32>
    %160 = vector.extract_strided_slice %145 {offsets = [0, 384], sizes = [8, 128], strides = [1, 1]} : vector<8x512xf32> to vector<8x128xf32>
    %161 = arith.negf %160 : vector<8x128xf32>
    %162 = math.exp %161 : vector<8x128xf32>
    %cst_65 = arith.constant 1.000000e+00 : f32
    %163 = vector.broadcast %cst_65 : f32 to vector<8x128xf32>
    %164 = arith.addf %163, %162 : vector<8x128xf32>
    %165 = arith.divf %163, %164 : vector<8x128xf32>
    %c0_66 = arith.constant 0 : index
    %c0_67 = arith.constant 0 : index
    %166 = vector.load %arg8[%c0_66, %c0_67] : memref<8x128xf32, #tpu.memory_space<vmem>>, vector<8x128xf32>
    %167 = arith.mulf %157, %166 : vector<8x128xf32>
    %168 = arith.mulf %151, %159 : vector<8x128xf32>
    %169 = arith.addf %167, %168 : vector<8x128xf32>
    %170 = math.tanh %169 : vector<8x128xf32>
    %171 = arith.mulf %165, %170 : vector<8x128xf32>
    %c0_68 = arith.constant 0 : index
    %c0_69 = arith.constant 0 : index
    %172 = vector.load %arg8[%c0_68, %c0_69] : memref<8x128xf32, #tpu.memory_space<vmem>>, vector<8x128xf32>
    tpu.vector_store %arg8[%c0_68, %c0_69], %169 {strides = array<i32>} : memref<8x128xf32, #tpu.memory_space<vmem>>, vector<8x128xf32>,
    %c0_70 = arith.constant 0 : index
    %c0_71 = arith.constant 0 : index
    %173 = vector.load %arg7[%c0_70, %c0_71] : memref<8x128xf32, #tpu.memory_space<vmem>>, vector<8x128xf32>
    tpu.vector_store %arg7[%c0_70, %c0_71], %171 {strides = array<i32>} : memref<8x128xf32, #tpu.memory_space<vmem>>, vector<8x128xf32>,
    %c5_i32 = arith.constant 5 : i32
    %174 = arith.index_cast %c5_i32 : i32 to index
    %c0_72 = arith.constant 0 : index
    %c0_73 = arith.constant 0 : index
    %175 = vector.load %arg2[%174, %c0_72, %c0_73] : memref<8x8x512xf32, #tpu.memory_space<vmem>>, vector<1x8x512xf32>
    %176 = vector.shape_cast %175 : vector<1x8x512xf32> to vector<8x512xf32>
    %c0_74 = arith.constant 0 : index
    %c0_75 = arith.constant 0 : index
    %177 = vector.load %arg7[%c0_74, %c0_75] : memref<8x128xf32, #tpu.memory_space<vmem>>, vector<8x128xf32>
    %cst_76 = arith.constant dense<0.000000e+00> : vector<8x512xf32>
    %178 = tpu.matmul %177, %3, %cst_76 {dimension_numbers = #tpu.dot_dimension_numbers<[1], [0], [0], [1], [0, 0, 1, 1], [], []>} : vector<8x128xf32>, vector<128x512xf32>, vector<8x512xf32> -> vector<8x512xf32>
    %179 = arith.addf %176, %178 : vector<8x512xf32>
    %180 = vector.extract_strided_slice %179 {offsets = [0, 0], sizes = [8, 128], strides = [1, 1]} : vector<8x512xf32> to vector<8x128xf32>
    %181 = arith.negf %180 : vector<8x128xf32>
    %182 = math.exp %181 : vector<8x128xf32>
    %cst_77 = arith.constant 1.000000e+00 : f32
    %183 = vector.broadcast %cst_77 : f32 to vector<8x128xf32>
    %184 = arith.addf %183, %182 : vector<8x128xf32>
    %185 = arith.divf %183, %184 : vector<8x128xf32>
    %186 = vector.extract_strided_slice %179 {offsets = [0, 128], sizes = [8, 128], strides = [1, 1]} : vector<8x512xf32> to vector<8x128xf32>
    %187 = arith.negf %186 : vector<8x128xf32>
    %188 = math.exp %187 : vector<8x128xf32>
    %cst_78 = arith.constant 1.000000e+00 : f32
    %189 = vector.broadcast %cst_78 : f32 to vector<8x128xf32>
    %190 = arith.addf %189, %188 : vector<8x128xf32>
    %191 = arith.divf %189, %190 : vector<8x128xf32>
    %192 = vector.extract_strided_slice %179 {offsets = [0, 256], sizes = [8, 128], strides = [1, 1]} : vector<8x512xf32> to vector<8x128xf32>
    %193 = math.tanh %192 : vector<8x128xf32>
    %194 = vector.extract_strided_slice %179 {offsets = [0, 384], sizes = [8, 128], strides = [1, 1]} : vector<8x512xf32> to vector<8x128xf32>
    %195 = arith.negf %194 : vector<8x128xf32>
    %196 = math.exp %195 : vector<8x128xf32>
    %cst_79 = arith.constant 1.000000e+00 : f32
    %197 = vector.broadcast %cst_79 : f32 to vector<8x128xf32>
    %198 = arith.addf %197, %196 : vector<8x128xf32>
    %199 = arith.divf %197, %198 : vector<8x128xf32>
    %c0_80 = arith.constant 0 : index
    %c0_81 = arith.constant 0 : index
    %200 = vector.load %arg8[%c0_80, %c0_81] : memref<8x128xf32, #tpu.memory_space<vmem>>, vector<8x128xf32>
    %201 = arith.mulf %191, %200 : vector<8x128xf32>
    %202 = arith.mulf %185, %193 : vector<8x128xf32>
    %203 = arith.addf %201, %202 : vector<8x128xf32>
    %204 = math.tanh %203 : vector<8x128xf32>
    %205 = arith.mulf %199, %204 : vector<8x128xf32>
    %c0_82 = arith.constant 0 : index
    %c0_83 = arith.constant 0 : index
    %206 = vector.load %arg8[%c0_82, %c0_83] : memref<8x128xf32, #tpu.memory_space<vmem>>, vector<8x128xf32>
    tpu.vector_store %arg8[%c0_82, %c0_83], %203 {strides = array<i32>} : memref<8x128xf32, #tpu.memory_space<vmem>>, vector<8x128xf32>,
    %c0_84 = arith.constant 0 : index
    %c0_85 = arith.constant 0 : index
    %207 = vector.load %arg7[%c0_84, %c0_85] : memref<8x128xf32, #tpu.memory_space<vmem>>, vector<8x128xf32>
    tpu.vector_store %arg7[%c0_84, %c0_85], %205 {strides = array<i32>} : memref<8x128xf32, #tpu.memory_space<vmem>>, vector<8x128xf32>,
    %c6_i32 = arith.constant 6 : i32
    %208 = arith.index_cast %c6_i32 : i32 to index
    %c0_86 = arith.constant 0 : index
    %c0_87 = arith.constant 0 : index
    %209 = vector.load %arg2[%208, %c0_86, %c0_87] : memref<8x8x512xf32, #tpu.memory_space<vmem>>, vector<1x8x512xf32>
    %210 = vector.shape_cast %209 : vector<1x8x512xf32> to vector<8x512xf32>
    %c0_88 = arith.constant 0 : index
    %c0_89 = arith.constant 0 : index
    %211 = vector.load %arg7[%c0_88, %c0_89] : memref<8x128xf32, #tpu.memory_space<vmem>>, vector<8x128xf32>
    %cst_90 = arith.constant dense<0.000000e+00> : vector<8x512xf32>
    %212 = tpu.matmul %211, %3, %cst_90 {dimension_numbers = #tpu.dot_dimension_numbers<[1], [0], [0], [1], [0, 0, 1, 1], [], []>} : vector<8x128xf32>, vector<128x512xf32>, vector<8x512xf32> -> vector<8x512xf32>
    %213 = arith.addf %210, %212 : vector<8x512xf32>
    %214 = vector.extract_strided_slice %213 {offsets = [0, 0], sizes = [8, 128], strides = [1, 1]} : vector<8x512xf32> to vector<8x128xf32>
    %215 = arith.negf %214 : vector<8x128xf32>
    %216 = math.exp %215 : vector<8x128xf32>
    %cst_91 = arith.constant 1.000000e+00 : f32
    %217 = vector.broadcast %cst_91 : f32 to vector<8x128xf32>
    %218 = arith.addf %217, %216 : vector<8x128xf32>
    %219 = arith.divf %217, %218 : vector<8x128xf32>
    %220 = vector.extract_strided_slice %213 {offsets = [0, 128], sizes = [8, 128], strides = [1, 1]} : vector<8x512xf32> to vector<8x128xf32>
    %221 = arith.negf %220 : vector<8x128xf32>
    %222 = math.exp %221 : vector<8x128xf32>
    %cst_92 = arith.constant 1.000000e+00 : f32
    %223 = vector.broadcast %cst_92 : f32 to vector<8x128xf32>
    %224 = arith.addf %223, %222 : vector<8x128xf32>
    %225 = arith.divf %223, %224 : vector<8x128xf32>
    %226 = vector.extract_strided_slice %213 {offsets = [0, 256], sizes = [8, 128], strides = [1, 1]} : vector<8x512xf32> to vector<8x128xf32>
    %227 = math.tanh %226 : vector<8x128xf32>
    %228 = vector.extract_strided_slice %213 {offsets = [0, 384], sizes = [8, 128], strides = [1, 1]} : vector<8x512xf32> to vector<8x128xf32>
    %229 = arith.negf %228 : vector<8x128xf32>
    %230 = math.exp %229 : vector<8x128xf32>
    %cst_93 = arith.constant 1.000000e+00 : f32
    %231 = vector.broadcast %cst_93 : f32 to vector<8x128xf32>
    %232 = arith.addf %231, %230 : vector<8x128xf32>
    %233 = arith.divf %231, %232 : vector<8x128xf32>
    %c0_94 = arith.constant 0 : index
    %c0_95 = arith.constant 0 : index
    %234 = vector.load %arg8[%c0_94, %c0_95] : memref<8x128xf32, #tpu.memory_space<vmem>>, vector<8x128xf32>
    %235 = arith.mulf %225, %234 : vector<8x128xf32>
    %236 = arith.mulf %219, %227 : vector<8x128xf32>
    %237 = arith.addf %235, %236 : vector<8x128xf32>
    %238 = math.tanh %237 : vector<8x128xf32>
    %239 = arith.mulf %233, %238 : vector<8x128xf32>
    %c0_96 = arith.constant 0 : index
    %c0_97 = arith.constant 0 : index
    %240 = vector.load %arg8[%c0_96, %c0_97] : memref<8x128xf32, #tpu.memory_space<vmem>>, vector<8x128xf32>
    tpu.vector_store %arg8[%c0_96, %c0_97], %237 {strides = array<i32>} : memref<8x128xf32, #tpu.memory_space<vmem>>, vector<8x128xf32>,
    %c0_98 = arith.constant 0 : index
    %c0_99 = arith.constant 0 : index
    %241 = vector.load %arg7[%c0_98, %c0_99] : memref<8x128xf32, #tpu.memory_space<vmem>>, vector<8x128xf32>
    tpu.vector_store %arg7[%c0_98, %c0_99], %239 {strides = array<i32>} : memref<8x128xf32, #tpu.memory_space<vmem>>, vector<8x128xf32>,
    %c7_i32 = arith.constant 7 : i32
    %242 = arith.index_cast %c7_i32 : i32 to index
    %c0_100 = arith.constant 0 : index
    %c0_101 = arith.constant 0 : index
    %243 = vector.load %arg2[%242, %c0_100, %c0_101] : memref<8x8x512xf32, #tpu.memory_space<vmem>>, vector<1x8x512xf32>
    %244 = vector.shape_cast %243 : vector<1x8x512xf32> to vector<8x512xf32>
    %c0_102 = arith.constant 0 : index
    %c0_103 = arith.constant 0 : index
    %245 = vector.load %arg7[%c0_102, %c0_103] : memref<8x128xf32, #tpu.memory_space<vmem>>, vector<8x128xf32>
    %cst_104 = arith.constant dense<0.000000e+00> : vector<8x512xf32>
    %246 = tpu.matmul %245, %3, %cst_104 {dimension_numbers = #tpu.dot_dimension_numbers<[1], [0], [0], [1], [0, 0, 1, 1], [], []>} : vector<8x128xf32>, vector<128x512xf32>, vector<8x512xf32> -> vector<8x512xf32>
    %247 = arith.addf %244, %246 : vector<8x512xf32>
    %248 = vector.extract_strided_slice %247 {offsets = [0, 0], sizes = [8, 128], strides = [1, 1]} : vector<8x512xf32> to vector<8x128xf32>
    %249 = arith.negf %248 : vector<8x128xf32>
    %250 = math.exp %249 : vector<8x128xf32>
    %cst_105 = arith.constant 1.000000e+00 : f32
    %251 = vector.broadcast %cst_105 : f32 to vector<8x128xf32>
    %252 = arith.addf %251, %250 : vector<8x128xf32>
    %253 = arith.divf %251, %252 : vector<8x128xf32>
    %254 = vector.extract_strided_slice %247 {offsets = [0, 128], sizes = [8, 128], strides = [1, 1]} : vector<8x512xf32> to vector<8x128xf32>
    %255 = arith.negf %254 : vector<8x128xf32>
    %256 = math.exp %255 : vector<8x128xf32>
    %cst_106 = arith.constant 1.000000e+00 : f32
    %257 = vector.broadcast %cst_106 : f32 to vector<8x128xf32>
    %258 = arith.addf %257, %256 : vector<8x128xf32>
    %259 = arith.divf %257, %258 : vector<8x128xf32>
    %260 = vector.extract_strided_slice %247 {offsets = [0, 256], sizes = [8, 128], strides = [1, 1]} : vector<8x512xf32> to vector<8x128xf32>
    %261 = math.tanh %260 : vector<8x128xf32>
    %262 = vector.extract_strided_slice %247 {offsets = [0, 384], sizes = [8, 128], strides = [1, 1]} : vector<8x512xf32> to vector<8x128xf32>
    %263 = arith.negf %262 : vector<8x128xf32>
    %264 = math.exp %263 : vector<8x128xf32>
    %cst_107 = arith.constant 1.000000e+00 : f32
    %265 = vector.broadcast %cst_107 : f32 to vector<8x128xf32>
    %266 = arith.addf %265, %264 : vector<8x128xf32>
    %267 = arith.divf %265, %266 : vector<8x128xf32>
    %c0_108 = arith.constant 0 : index
    %c0_109 = arith.constant 0 : index
    %268 = vector.load %arg8[%c0_108, %c0_109] : memref<8x128xf32, #tpu.memory_space<vmem>>, vector<8x128xf32>
    %269 = arith.mulf %259, %268 : vector<8x128xf32>
    %270 = arith.mulf %253, %261 : vector<8x128xf32>
    %271 = arith.addf %269, %270 : vector<8x128xf32>
    %272 = math.tanh %271 : vector<8x128xf32>
    %273 = arith.mulf %267, %272 : vector<8x128xf32>
    %c0_110 = arith.constant 0 : index
    %c0_111 = arith.constant 0 : index
    %274 = vector.load %arg8[%c0_110, %c0_111] : memref<8x128xf32, #tpu.memory_space<vmem>>, vector<8x128xf32>
    tpu.vector_store %arg8[%c0_110, %c0_111], %271 {strides = array<i32>} : memref<8x128xf32, #tpu.memory_space<vmem>>, vector<8x128xf32>,
    %c0_112 = arith.constant 0 : index
    %c0_113 = arith.constant 0 : index
    %275 = vector.load %arg7[%c0_112, %c0_113] : memref<8x128xf32, #tpu.memory_space<vmem>>, vector<8x128xf32>
    tpu.vector_store %arg7[%c0_112, %c0_113], %273 {strides = array<i32>} : memref<8x128xf32, #tpu.memory_space<vmem>>, vector<8x128xf32>,
    %c8_i32 = arith.constant 8 : i32
    %c0_i32_114 = arith.constant 0 : i32
    %276 = arith.cmpi eq, %arg1, %c0_i32_114 : i32
    %277 = arith.extui %276 : i1 to i32
    %c0_i32_115 = arith.constant 0 : i32
    %278 = arith.cmpi ne, %277, %c0_i32_115 : i32
    scf.if %278 {
      %c0_116 = arith.constant 0 : index
      %c0_117 = arith.constant 0 : index
      %279 = vector.load %arg4[%c0_116, %c0_117] : memref<128x128xf32, #tpu.memory_space<vmem>>, vector<128x128xf32>
      %c0_118 = arith.constant 0 : index
      %c0_119 = arith.constant 0 : index
      %280 = vector.load %arg7[%c0_118, %c0_119] : memref<8x128xf32, #tpu.memory_space<vmem>>, vector<8x128xf32>
      %cst_120 = arith.constant dense<0.000000e+00> : vector<8x128xf32>
      %281 = tpu.matmul %280, %279, %cst_120 {dimension_numbers = #tpu.dot_dimension_numbers<[1], [0], [0], [1], [0, 0, 1, 1], [], []>} : vector<8x128xf32>, vector<128x128xf32>, vector<8x128xf32> -> vector<8x128xf32>
      %c0_121 = arith.constant 0 : index
      %c0_122 = arith.constant 0 : index
      %282 = vector.load %arg5[%c0_121, %c0_122] : memref<1x128xf32, #tpu.memory_space<vmem>>, vector<1x128xf32>
      %283 = vector.broadcast %282 : vector<1x128xf32> to vector<8x128xf32>
      %284 = arith.addf %281, %283 : vector<8x128xf32>
      %c0_123 = arith.constant 0 : index
      %c0_124 = arith.constant 0 : index
      %285 = vector.load %arg6[%c0_123, %c0_124] : memref<8x128xf32, #tpu.memory_space<vmem>>, vector<8x128xf32>
      tpu.vector_store %arg6[%c0_123, %c0_124], %284 {strides = array<i32>} : memref<8x128xf32, #tpu.memory_space<vmem>>, vector<8x128xf32>,
    } else {
    }
    return
  }
  func.func @transform_0(%arg0: i32, %arg1: i32) -> (i32, i32, i32) {
    %c0_i32 = arith.constant 0 : i32
    %c0_i32_0 = arith.constant 0 : i32
    return %arg1, %arg0, %c0_i32 : i32, i32, i32
  }
  func.func @transform_1(%arg0: i32, %arg1: i32) -> (i32, i32) {
    %c0_i32 = arith.constant 0 : i32
    %c0_i32_0 = arith.constant 0 : i32
    %c0_i32_1 = arith.constant 0 : i32
    return %c0_i32, %c0_i32_0 : i32, i32
  }
  func.func @transform_2(%arg0: i32, %arg1: i32) -> (i32, i32) {
    %c0_i32 = arith.constant 0 : i32
    %c0_i32_0 = arith.constant 0 : i32
    %c0_i32_1 = arith.constant 0 : i32
    return %c0_i32, %c0_i32_0 : i32, i32
  }
  func.func @transform_3(%arg0: i32, %arg1: i32) -> (i32, i32) {
    %c0_i32 = arith.constant 0 : i32
    %c0_i32_0 = arith.constant 0 : i32
    %c0_i32_1 = arith.constant 0 : i32
    return %c0_i32, %c0_i32_0 : i32, i32
  }
  func.func @transform_4(%arg0: i32, %arg1: i32) -> (i32, i32) {
    %c0_i32 = arith.constant 0 : i32
    %c0_i32_0 = arith.constant 0 : i32
    return %arg0, %c0_i32 : i32, i32
  }
}

</mosaic_0001>

<llo_original>
// kernel: lstm_model_forward.4
$region0: #{lstm_model_forward.4}
  #allocation0 [shape = 'u32[]', space=smem, size = 0x4, offset = 0x4, fixed_abs, tag = 'smem constant byte address 0x4 - core index']
  #allocation1 [shape = 'u32[144,128]{1,0:T(1,128)}', space=vmem, size = 0x12000, scoped, tag = 'internal scratch']
  %s0 = inlined_call_operand.vmem [shape: f32[64,4], index: 0, kind: input, shape index: {}]
  %s1 = inlined_call_operand.vmem [shape: f32[4,512], index: 1, kind: input, shape index: {}]
  %s2 = inlined_call_operand.vmem [shape: f32[1,512], index: 2, kind: input, shape index: {}]
  %s3 = inlined_call_operand.vmem [shape: f32[64,512], index: 3, kind: output, shape index: {}]
  %s4 = sld [smem:[#allocation0]]
  $region22: #{lstm_model_forward.4} parent=0
    _
  %s6 = ssub.s32 1, %s4
  %s7 = scalar_select 0, %s6, %s4
  // Predicated region
  $region2: #{lstm_model_forward.4} parent=0 // pred_check
    _
  $region3: #{lstm_model_forward.4} parent=0 // pred_check_branch
    %9 = sbr.rel (0) target = $region5
  $region4: #{lstm_model_forward.4} parent=0 // pred_region
    _
  $region5: #{lstm_model_forward.4} parent=0 // pred_fallthru
    _
  // Predicated region
  $region6: #{lstm_model_forward.4} parent=0 // pred_check
    _
  $region7: #{lstm_model_forward.4} parent=0 // pred_check_branch
    %11 = sbr.rel (0) target = $region9
  $region8: #{lstm_model_forward.4} parent=0 // pred_region
    _
  $region9: #{lstm_model_forward.4} parent=0 // pred_fallthru
    _
  // Predicated region
  $region10: #{lstm_model_forward.4} parent=0 // pred_check
    _
  $region11: #{lstm_model_forward.4} parent=0 // pred_check_branch
    %13 = sbr.rel (0) target = $region13
  $region12: #{lstm_model_forward.4} parent=0 // pred_region
    _
  $region13: #{lstm_model_forward.4} parent=0 // pred_fallthru
    _
  %v14 = vld [vmem:[%s0] sm:$0xff]
  %v15 = vld [vmem:[%s0 + $0x8] sm:$0xff]
  %v16 = vld [vmem:[%s0 + $0x10] sm:$0xff]
  %v17 = vld [vmem:[%s0 + $0x18] sm:$0xff]
  %v18 = vld [vmem:[%s0 + $0x20] sm:$0xff]
  %v19 = vld [vmem:[%s0 + $0x28] sm:$0xff]
  %v20 = vld [vmem:[%s0 + $0x30] sm:$0xff]
  %v21 = vld [vmem:[%s0 + $0x38] sm:$0xff]
  %v22 = vld [vmem:[%s1] sm:$0xff]
  %v23 = vld [vmem:[%s1 + $0x8] sm:$0xff]
  %v24 = vld [vmem:[%s2] sm:$0xf]
  %v26 = vlaneseq
  %v27 = vshrl.u32 %v26, 7
  %v28 = vsub.s32 0, %v27
  %v29 = vrot.slane %v24, %v28
  %v30 = vlaneseq
  %v31 = vshrl.u32 %v30, 7
  %v32 = vsub.s32 1, %v31
  %v33 = vrot.slane %v24, %v32
  %v34 = vlaneseq
  %v35 = vshrl.u32 %v34, 7
  %v36 = vsub.s32 2, %v35
  %v37 = vrot.slane %v24, %v36
  %v38 = vlaneseq
  %v39 = vshrl.u32 %v38, 7
  %v40 = vsub.s32 3, %v39
  %v41 = vrot.slane %v24, %v40
  %v48 = vcombine.high %v22, %v22
  %v49 = vcombine.high %v23, %v23
  %vm50 = vcmask 31744
  %v52 = vsel %vm50, %v14, 0
  %v55 = vsel %vm50, %v15, 0
  %v58 = vsel %vm50, %v16, 0
  %v61 = vsel %vm50, %v17, 0
  %v64 = vsel %vm50, %v18, 0
  %v67 = vsel %vm50, %v19, 0
  %v70 = vsel %vm50, %v20, 0
  %v73 = vsel %vm50, %v21, 0
  %vm75 = vcmask 1043456
  %v76 = vsel %vm75, %v22, 0
  %v78 = vsel %vm75, %v48, 0
  %v80 = vsel %vm75, %v23, 0
  %v82 = vsel %vm75, %v49, 0
  %84 = vmatprep.subr.mxu0 %v78
  %85 = vmatpush1.msra.mxu0 %v76
  %86 = vmatprep.subr.mxu0 0.0
  %87 = vmatpush1.msra.mxu0 0.0
  %88 = vmatprep.subr.mxu0 0.0
  %89 = vmatpush1.msra.mxu0 0.0
  %90 = vmatprep.subr.mxu0 0.0
  %91 = vmatpush1.msra.mxu0 0.0
  %92 = vmatprep.subr.mxu0 0.0
  %93 = vmatpush1.msra.mxu0 0.0
  %94 = vmatprep.subr.mxu0 0.0
  %95 = vmatpush1.msra.mxu0 0.0
  %96 = vmatprep.subr.mxu0 0.0
  %97 = vmatpush1.msra.mxu0 0.0
  %98 = vmatprep.subr.mxu0 0.0
  %99 = vmatpush1.msra.mxu0 0.0
  %100 = vmatprep.subr.mxu0 0.0
  %101 = vmatpush1.msra.mxu0 0.0
  %102 = vmatprep.subr.mxu0 0.0
  %103 = vmatpush1.msra.mxu0 0.0
  %104 = vmatprep.subr.mxu0 0.0
  %105 = vmatpush1.msra.mxu0 0.0
  %106 = vmatprep.subr.mxu0 0.0
  %107 = vmatpush1.msra.mxu0 0.0
  %108 = vmatprep.subr.mxu0 0.0
  %109 = vmatpush1.msra.mxu0 0.0
  %110 = vmatprep.subr.mxu0 0.0
  %111 = vmatpush1.msra.mxu0 0.0
  %112 = vmatprep.subr.mxu0 0.0
  %113 = vmatpush1.msra.mxu0 0.0
  %114 = vmatprep.subr.mxu0 0.0
  %115 = vmatpush1.msra.mxu0 0.0
  %116 = vmatprep.subr.mxu0 0.0
  %117 = vmatpush1.msra.mxu0 0.0
  %118 = vmatprep.subr.mxu0 0.0
  %119 = vmatpush1.msra.mxu0 0.0
  %120 = vmatprep.subr.mxu0 0.0
  %121 = vmatpush1.msra.mxu0 0.0
  %122 = vmatprep.subr.mxu0 0.0
  %123 = vmatpush1.msra.mxu0 0.0
  %124 = vmatprep.subr.mxu0 0.0
  %125 = vmatpush1.msra.mxu0 0.0
  %126 = vmatprep.subr.mxu0 0.0
  %127 = vmatpush1.msra.mxu0 0.0
  %128 = vmatprep.subr.mxu0 0.0
  %129 = vmatpush1.msra.mxu0 0.0
  %130 = vmatprep.subr.mxu0 0.0
  %131 = vmatpush1.msra.mxu0 0.0
  %132 = vmatprep.subr.mxu0 0.0
  %133 = vmatpush1.msra.mxu0 0.0
  %134 = vmatprep.subr.mxu0 0.0
  %135 = vmatpush1.msra.mxu0 0.0
  %136 = vmatprep.subr.mxu0 0.0
  %137 = vmatpush1.msra.mxu0 0.0
  %138 = vmatprep.subr.mxu0 0.0
  %139 = vmatpush1.msra.mxu0 0.0
  %140 = vmatprep.subr.mxu0 0.0
  %141 = vmatpush1.msra.mxu0 0.0
  %142 = vmatprep.subr.mxu0 0.0
  %143 = vmatpush1.msra.mxu0 0.0
  %144 = vmatprep.subr.mxu0 0.0
  %145 = vmatpush1.msra.mxu0 0.0
  %146 = vmatprep.subr.mxu0 0.0
  %147 = vmatpush1.msra.mxu0 0.0
  %148 = vmatprep.mubr.f32.mxu0 0.0
  %149 = vmatmul.mubr.f32.gmra.mrb[0].mxu0 %v52
  %v150 = vpop.f32.mrb[0].mxu0
  %v151 = vadd.f32 %v29, %v150
  %v152 = vpop.f32.mrb[0].mxu0
  %v153 = vadd.f32 %v33, %v152
  %154 = vmatprep.mubr.f32.mxu0 0.0
  %155 = vmatmul.mubr.f32.gmra.mrb[0].mxu0 %v55
  %v156 = vpop.f32.mrb[0].mxu0
  %v157 = vadd.f32 %v29, %v156
  %v158 = vpop.f32.mrb[0].mxu0
  %v159 = vadd.f32 %v33, %v158
  %160 = vmatprep.mubr.f32.mxu0 0.0
  %161 = vmatmul.mubr.f32.gmra.mrb[0].mxu0 %v58
  %v162 = vpop.f32.mrb[0].mxu0
  %v163 = vadd.f32 %v29, %v162
  %v164 = vpop.f32.mrb[0].mxu0
  %v165 = vadd.f32 %v33, %v164
  %166 = vmatprep.mubr.f32.mxu0 0.0
  %167 = vmatmul.mubr.f32.gmra.mrb[0].mxu0 %v61
  %v168 = vpop.f32.mrb[0].mxu0
  %v169 = vadd.f32 %v29, %v168
  %v170 = vpop.f32.mrb[0].mxu0
  %v171 = vadd.f32 %v33, %v170
  %172 = vmatprep.mubr.f32.mxu0 0.0
  %173 = vmatmul.mubr.f32.gmra.mrb[0].mxu0 %v64
  %v174 = vpop.f32.mrb[0].mxu0
  %v175 = vadd.f32 %v29, %v174
  %v176 = vpop.f32.mrb[0].mxu0
  %v177 = vadd.f32 %v33, %v176
  %178 = vmatprep.mubr.f32.mxu0 0.0
  %179 = vmatmul.mubr.f32.gmra.mrb[0].mxu0 %v67
  %v180 = vpop.f32.mrb[0].mxu0
  %v181 = vadd.f32 %v29, %v180
  %v182 = vpop.f32.mrb[0].mxu0
  %v183 = vadd.f32 %v33, %v182
  %184 = vmatprep.mubr.f32.mxu0 0.0
  %185 = vmatmul.mubr.f32.gmra.mrb[0].mxu0 %v70
  %v186 = vpop.f32.mrb[0].mxu0
  %v187 = vadd.f32 %v29, %v186
  %v188 = vpop.f32.mrb[0].mxu0
  %v189 = vadd.f32 %v33, %v188
  %190 = vmatprep.mubr.f32.mxu0 0.0
  %191 = vmatmul.mubr.f32.gmra.mrb[0].mxu0 %v73
  %v192 = vpop.f32.mrb[0].mxu0
  %v193 = vadd.f32 %v29, %v192
  %v194 = vpop.f32.mrb[0].mxu0
  %v195 = vadd.f32 %v33, %v194
  %196 = vdwg.mxu0
  %197 = vmatprep.subr.mxu0 %v82
  %198 = vmatpush1.msra.mxu0 %v80
  %199 = vmatprep.subr.mxu0 0.0
  %200 = vmatpush1.msra.mxu0 0.0
  %201 = vmatprep.subr.mxu0 0.0
  %202 = vmatpush1.msra.mxu0 0.0
  %203 = vmatprep.subr.mxu0 0.0
  %204 = vmatpush1.msra.mxu0 0.0
  %205 = vmatprep.subr.mxu0 0.0
  %206 = vmatpush1.msra.mxu0 0.0
  %207 = vmatprep.subr.mxu0 0.0
  %208 = vmatpush1.msra.mxu0 0.0
  %209 = vmatprep.subr.mxu0 0.0
  %210 = vmatpush1.msra.mxu0 0.0
  %211 = vmatprep.subr.mxu0 0.0
  %212 = vmatpush1.msra.mxu0 0.0
  %213 = vmatprep.subr.mxu0 0.0
  %214 = vmatpush1.msra.mxu0 0.0
  %215 = vmatprep.subr.mxu0 0.0
  %216 = vmatpush1.msra.mxu0 0.0
  %217 = vmatprep.subr.mxu0 0.0
  %218 = vmatpush1.msra.mxu0 0.0
  %219 = vmatprep.subr.mxu0 0.0
  %220 = vmatpush1.msra.mxu0 0.0
  %221 = vmatprep.subr.mxu0 0.0
  %222 = vmatpush1.msra.mxu0 0.0
  %223 = vmatprep.subr.mxu0 0.0
  %224 = vmatpush1.msra.mxu0 0.0
  %225 = vmatprep.subr.mxu0 0.0
  %226 = vmatpush1.msra.mxu0 0.0
  %227 = vmatprep.subr.mxu0 0.0
  %228 = vmatpush1.msra.mxu0 0.0
  %229 = vmatprep.subr.mxu0 0.0
  %230 = vmatpush1.msra.mxu0 0.0
  %231 = vmatprep.subr.mxu0 0.0
  %232 = vmatpush1.msra.mxu0 0.0
  %233 = vmatprep.subr.mxu0 0.0
  %234 = vmatpush1.msra.mxu0 0.0
  %235 = vmatprep.subr.mxu0 0.0
  %236 = vmatpush1.msra.mxu0 0.0
  %237 = vmatprep.subr.mxu0 0.0
  %238 = vmatpush1.msra.mxu0 0.0
  %239 = vmatprep.subr.mxu0 0.0
  %240 = vmatpush1.msra.mxu0 0.0
  %241 = vmatprep.subr.mxu0 0.0
  %242 = vmatpush1.msra.mxu0 0.0
  %243 = vmatprep.subr.mxu0 0.0
  %244 = vmatpush1.msra.mxu0 0.0
  %245 = vmatprep.subr.mxu0 0.0
  %246 = vmatpush1.msra.mxu0 0.0
  %247 = vmatprep.subr.mxu0 0.0
  %248 = vmatpush1.msra.mxu0 0.0
  %249 = vmatprep.subr.mxu0 0.0
  %250 = vmatpush1.msra.mxu0 0.0
  %251 = vmatprep.subr.mxu0 0.0
  %252 = vmatpush1.msra.mxu0 0.0
  %253 = vmatprep.subr.mxu0 0.0
  %254 = vmatpush1.msra.mxu0 0.0
  %255 = vmatprep.subr.mxu0 0.0
  %256 = vmatpush1.msra.mxu0 0.0
  %257 = vmatprep.subr.mxu0 0.0
  %258 = vmatpush1.msra.mxu0 0.0
  %259 = vmatprep.subr.mxu0 0.0
  %260 = vmatpush1.msra.mxu0 0.0
  %261 = vmatprep.mubr.f32.mxu0 0.0
  %262 = vmatmul.mubr.f32.gmra.mrb[0].mxu0 %v52
  %v263 = vpop.f32.mrb[0].mxu0
  %v264 = vadd.f32 %v37, %v263
  %v265 = vpop.f32.mrb[0].mxu0
  %v266 = vadd.f32 %v41, %v265
  %267 = vmatprep.mubr.f32.mxu0 0.0
  %268 = vmatmul.mubr.f32.gmra.mrb[0].mxu0 %v55
  %v269 = vpop.f32.mrb[0].mxu0
  %v270 = vadd.f32 %v37, %v269
  %v271 = vpop.f32.mrb[0].mxu0
  %v272 = vadd.f32 %v41, %v271
  %273 = vmatprep.mubr.f32.mxu0 0.0
  %274 = vmatmul.mubr.f32.gmra.mrb[0].mxu0 %v58
  %v275 = vpop.f32.mrb[0].mxu0
  %v276 = vadd.f32 %v37, %v275
  %v277 = vpop.f32.mrb[0].mxu0
  %v278 = vadd.f32 %v41, %v277
  %279 = vmatprep.mubr.f32.mxu0 0.0
  %280 = vmatmul.mubr.f32.gmra.mrb[0].mxu0 %v61
  %v281 = vpop.f32.mrb[0].mxu0
  %v282 = vadd.f32 %v37, %v281
  %v283 = vpop.f32.mrb[0].mxu0
  %v284 = vadd.f32 %v41, %v283
  %285 = vmatprep.mubr.f32.mxu0 0.0
  %286 = vmatmul.mubr.f32.gmra.mrb[0].mxu0 %v64
  %v287 = vpop.f32.mrb[0].mxu0
  %v288 = vadd.f32 %v37, %v287
  %v289 = vpop.f32.mrb[0].mxu0
  %v290 = vadd.f32 %v41, %v289
  %291 = vmatprep.mubr.f32.mxu0 0.0
  %292 = vmatmul.mubr.f32.gmra.mrb[0].mxu0 %v67
  %v293 = vpop.f32.mrb[0].mxu0
  %v294 = vadd.f32 %v37, %v293
  %v295 = vpop.f32.mrb[0].mxu0
  %v296 = vadd.f32 %v41, %v295
  %297 = vmatprep.mubr.f32.mxu0 0.0
  %298 = vmatmul.mubr.f32.gmra.mrb[0].mxu0 %v70
  %v299 = vpop.f32.mrb[0].mxu0
  %v300 = vadd.f32 %v37, %v299
  %v301 = vpop.f32.mrb[0].mxu0
  %v302 = vadd.f32 %v41, %v301
  %303 = vmatprep.mubr.f32.mxu0 0.0
  %304 = vmatmul.mubr.f32.gmra.mrb[0].mxu0 %v73
  %v305 = vpop.f32.mrb[0].mxu0
  %v306 = vadd.f32 %v37, %v305
  %v307 = vpop.f32.mrb[0].mxu0
  %v308 = vadd.f32 %v41, %v307
  %309 = vdwg.mxu0
  %310 = vst [vmem:[%s3] sm:$0xff] %v151
  %311 = vst [vmem:[%s3 + $0x8] sm:$0xff] %v153
  %312 = vst [vmem:[%s3 + $0x10] sm:$0xff] %v264
  %313 = vst [vmem:[%s3 + $0x18] sm:$0xff] %v266
  %314 = vst [vmem:[%s3 + $0x20] sm:$0xff] %v157
  %315 = vst [vmem:[%s3 + $0x28] sm:$0xff] %v159
  %316 = vst [vmem:[%s3 + $0x30] sm:$0xff] %v270
  %317 = vst [vmem:[%s3 + $0x38] sm:$0xff] %v272
  %318 = vst [vmem:[%s3 + $0x40] sm:$0xff] %v163
  %319 = vst [vmem:[%s3 + $0x48] sm:$0xff] %v165
  %320 = vst [vmem:[%s3 + $0x50] sm:$0xff] %v276
  %321 = vst [vmem:[%s3 + $0x58] sm:$0xff] %v278
  %322 = vst [vmem:[%s3 + $0x60] sm:$0xff] %v169
  %323 = vst [vmem:[%s3 + $0x68] sm:$0xff] %v171
  %324 = vst [vmem:[%s3 + $0x70] sm:$0xff] %v282
  %325 = vst [vmem:[%s3 + $0x78] sm:$0xff] %v284
  %326 = vst [vmem:[%s3 + $0x80] sm:$0xff] %v175
  %327 = vst [vmem:[%s3 + $0x88] sm:$0xff] %v177
  %328 = vst [vmem:[%s3 + $0x90] sm:$0xff] %v288
  %329 = vst [vmem:[%s3 + $0x98] sm:$0xff] %v290
  %330 = vst [vmem:[%s3 + $0xa0] sm:$0xff] %v181
  %331 = vst [vmem:[%s3 + $0xa8] sm:$0xff] %v183
  %332 = vst [vmem:[%s3 + $0xb0] sm:$0xff] %v294
  %333 = vst [vmem:[%s3 + $0xb8] sm:$0xff] %v296
  %334 = vst [vmem:[%s3 + $0xc0] sm:$0xff] %v187
  %335 = vst [vmem:[%s3 + $0xc8] sm:$0xff] %v189
  %336 = vst [vmem:[%s3 + $0xd0] sm:$0xff] %v300
  %337 = vst [vmem:[%s3 + $0xd8] sm:$0xff] %v302
  %338 = vst [vmem:[%s3 + $0xe0] sm:$0xff] %v193
  %339 = vst [vmem:[%s3 + $0xe8] sm:$0xff] %v195
  %340 = vst [vmem:[%s3 + $0xf0] sm:$0xff] %v306
  %341 = vst [vmem:[%s3 + $0xf8] sm:$0xff] %v308
  // Predicated region
  $region14: #{lstm_model_forward.4} parent=0 // pred_check
    _
  $region15: #{lstm_model_forward.4} parent=0 // pred_check_branch
    %343 = sbr.rel (0) target = $region17
  $region16: #{lstm_model_forward.4} parent=0 // pred_region
    _
  $region17: #{lstm_model_forward.4} parent=0 // pred_fallthru
    _
  // Predicated region
  $region18: #{lstm_model_forward.4} parent=0 // pred_check
    _
  $region19: #{lstm_model_forward.4} parent=0 // pred_check_branch
    %345 = sbr.rel (0) target = $region21
  $region20: #{lstm_model_forward.4} parent=0 // pred_region
    _
  $region21: #{lstm_model_forward.4} parent=0 // pred_fallthru
    _

// kernel: lstm_model_forward.6
$region0: #{lstm_model_forward.6}
  #allocation0 [shape = 'u32[]', space=smem, size = 0x4, offset = 0x4, fixed_abs, tag = 'smem constant byte address 0x4 - core index']
  #allocation1 [shape = 'u32[144,128]{1,0:T(1,128)}', space=vmem, size = 0x12000, scoped, tag = 'internal scratch']
  %s0 = inlined_call_operand.vmem [shape: f32[64,128], index: 0, kind: input, shape index: {}]
  %s1 = inlined_call_operand.vmem [shape: f32[128,512], index: 1, kind: input, shape index: {}]
  %s2 = inlined_call_operand.vmem [shape: f32[1,512], index: 2, kind: input, shape index: {}]
  %s3 = inlined_call_operand.vmem [shape: f32[64,512], index: 3, kind: output, shape index: {}]
  %s4 = sld [smem:[#allocation0]]
  $region22: #{lstm_model_forward.6} parent=0
    _
  %s6 = ssub.s32 1, %s4
  %s7 = scalar_select 0, %s6, %s4
  // Predicated region
  $region2: #{lstm_model_forward.6} parent=0 // pred_check
    _
  $region3: #{lstm_model_forward.6} parent=0 // pred_check_branch
    %9 = sbr.rel (0) target = $region5
  $region4: #{lstm_model_forward.6} parent=0 // pred_region
    _
  $region5: #{lstm_model_forward.6} parent=0 // pred_fallthru
    _
  // Predicated region
  $region6: #{lstm_model_forward.6} parent=0 // pred_check
    _
  $region7: #{lstm_model_forward.6} parent=0 // pred_check_branch
    %11 = sbr.rel (0) target = $region9
  $region8: #{lstm_model_forward.6} parent=0 // pred_region
    _
  $region9: #{lstm_model_forward.6} parent=0 // pred_fallthru
    _
  // Predicated region
  $region10: #{lstm_model_forward.6} parent=0 // pred_check
    _
  $region11: #{lstm_model_forward.6} parent=0 // pred_check_branch
    %13 = sbr.rel (0) target = $region13
  $region12: #{lstm_model_forward.6} parent=0 // pred_region
    _
  $region13: #{lstm_model_forward.6} parent=0 // pred_fallthru
    _
  %v14 = vld [vmem:[%s0] sm:$0xff]
  %v15 = vld [vmem:[%s0 + $0x8] sm:$0xff]
  %v16 = vld [vmem:[%s0 + $0x10] sm:$0xff]
  %v17 = vld [vmem:[%s0 + $0x18] sm:$0xff]
  %v18 = vld [vmem:[%s0 + $0x20] sm:$0xff]
  %v19 = vld [vmem:[%s0 + $0x28] sm:$0xff]
  %v20 = vld [vmem:[%s0 + $0x30] sm:$0xff]
  %v21 = vld [vmem:[%s0 + $0x38] sm:$0xff]
  %v22 = vld [vmem:[%s1] sm:$0xff]
  %v23 = vld [vmem:[%s1 + $0x8] sm:$0xff]
  %v24 = vld [vmem:[%s1 + $0x10] sm:$0xff]
  %v25 = vld [vmem:[%s1 + $0x18] sm:$0xff]
  %v26 = vld [vmem:[%s1 + $0x20] sm:$0xff]
  %v27 = vld [vmem:[%s1 + $0x28] sm:$0xff]
  %v28 = vld [vmem:[%s1 + $0x30] sm:$0xff]
  %v29 = vld [vmem:[%s1 + $0x38] sm:$0xff]
  %v30 = vld [vmem:[%s1 + $0x40] sm:$0xff]
  %v31 = vld [vmem:[%s1 + $0x48] sm:$0xff]
  %v32 = vld [vmem:[%s1 + $0x50] sm:$0xff]
  %v33 = vld [vmem:[%s1 + $0x58] sm:$0xff]
  %v34 = vld [vmem:[%s1 + $0x60] sm:$0xff]
  %v35 = vld [vmem:[%s1 + $0x68] sm:$0xff]
  %v36 = vld [vmem:[%s1 + $0x70] sm:$0xff]
  %v37 = vld [vmem:[%s1 + $0x78] sm:$0xff]
  %v38 = vld [vmem:[%s1 + $0x80] sm:$0xff]
  %v39 = vld [vmem:[%s1 + $0x88] sm:$0xff]
  %v40 = vld [vmem:[%s1 + $0x90] sm:$0xff]
  %v41 = vld [vmem:[%s1 + $0x98] sm:$0xff]
  %v42 = vld [vmem:[%s1 + $0xa0] sm:$0xff]
  %v43 = vld [vmem:[%s1 + $0xa8] sm:$0xff]
  %v44 = vld [vmem:[%s1 + $0xb0] sm:$0xff]
  %v45 = vld [vmem:[%s1 + $0xb8] sm:$0xff]
  %v46 = vld [vmem:[%s1 + $0xc0] sm:$0xff]
  %v47 = vld [vmem:[%s1 + $0xc8] sm:$0xff]
  %v48 = vld [vmem:[%s1 + $0xd0] sm:$0xff]
  %v49 = vld [vmem:[%s1 + $0xd8] sm:$0xff]
  %v50 = vld [vmem:[%s1 + $0xe0] sm:$0xff]
  %v51 = vld [vmem:[%s1 + $0xe8] sm:$0xff]
  %v52 = vld [vmem:[%s1 + $0xf0] sm:$0xff]
  %v53 = vld [vmem:[%s1 + $0xf8] sm:$0xff]
  %v54 = vld [vmem:[%s1 + $0x100] sm:$0xff]
  %v55 = vld [vmem:[%s1 + $0x108] sm:$0xff]
  %v56 = vld [vmem:[%s1 + $0x110] sm:$0xff]
  %v57 = vld [vmem:[%s1 + $0x118] sm:$0xff]
  %v58 = vld [vmem:[%s1 + $0x120] sm:$0xff]
  %v59 = vld [vmem:[%s1 + $0x128] sm:$0xff]
  %v60 = vld [vmem:[%s1 + $0x130] sm:$0xff]
  %v61 = vld [vmem:[%s1 + $0x138] sm:$0xff]
  %v62 = vld [vmem:[%s1 + $0x140] sm:$0xff]
  %v63 = vld [vmem:[%s1 + $0x148] sm:$0xff]
  %v64 = vld [vmem:[%s1 + $0x150] sm:$0xff]
  %v65 = vld [vmem:[%s1 + $0x158] sm:$0xff]
  %v66 = vld [vmem:[%s1 + $0x160] sm:$0xff]
  %v67 = vld [vmem:[%s1 + $0x168] sm:$0xff]
  %v68 = vld [vmem:[%s1 + $0x170] sm:$0xff]
  %v69 = vld [vmem:[%s1 + $0x178] sm:$0xff]
  %v70 = vld [vmem:[%s1 + $0x180] sm:$0xff]
  %v71 = vld [vmem:[%s1 + $0x188] sm:$0xff]
  %v72 = vld [vmem:[%s1 + $0x190] sm:$0xff]
  %v73 = vld [vmem:[%s1 + $0x198] sm:$0xff]
  %v74 = vld [vmem:[%s1 + $0x1a0] sm:$0xff]
  %v75 = vld [vmem:[%s1 + $0x1a8] sm:$0xff]
  %v76 = vld [vmem:[%s1 + $0x1b0] sm:$0xff]
  %v77 = vld [vmem:[%s1 + $0x1b8] sm:$0xff]
  %v78 = vld [vmem:[%s1 + $0x1c0] sm:$0xff]
  %v79 = vld [vmem:[%s1 + $0x1c8] sm:$0xff]
  %v80 = vld [vmem:[%s1 + $0x1d0] sm:$0xff]
  %v81 = vld [vmem:[%s1 + $0x1d8] sm:$0xff]
  %v82 = vld [vmem:[%s1 + $0x1e0] sm:$0xff]
  %v83 = vld [vmem:[%s1 + $0x1e8] sm:$0xff]
  %v84 = vld [vmem:[%s1 + $0x1f0] sm:$0xff]
  %v85 = vld [vmem:[%s1 + $0x1f8] sm:$0xff]
  %v86 = vld [vmem:[%s2] sm:$0xf]
  %v88 = vlaneseq
  %v89 = vshrl.u32 %v88, 7
  %v90 = vsub.s32 0, %v89
  %v91 = vrot.slane %v86, %v90
  %v92 = vlaneseq
  %v93 = vshrl.u32 %v92, 7
  %v94 = vsub.s32 1, %v93
  %v95 = vrot.slane %v86, %v94
  %v96 = vlaneseq
  %v97 = vshrl.u32 %v96, 7
  %v98 = vsub.s32 2, %v97
  %v99 = vrot.slane %v86, %v98
  %v100 = vlaneseq
  %v101 = vshrl.u32 %v100, 7
  %v102 = vsub.s32 3, %v101
  %v103 = vrot.slane %v86, %v102
  %108 = vmatprep.subr.mxu0 %v23
  %109 = vmatpush1.msra.mxu0 %v22
  %110 = vmatprep.subr.mxu0 %v27
  %111 = vmatpush1.msra.mxu0 %v26
  %112 = vmatprep.subr.mxu0 %v31
  %113 = vmatpush1.msra.mxu0 %v30
  %114 = vmatprep.subr.mxu0 %v35
  %115 = vmatpush1.msra.mxu0 %v34
  %116 = vmatprep.subr.mxu0 %v39
  %117 = vmatpush1.msra.mxu0 %v38
  %118 = vmatprep.subr.mxu0 %v43
  %119 = vmatpush1.msra.mxu0 %v42
  %120 = vmatprep.subr.mxu0 %v47
  %121 = vmatpush1.msra.mxu0 %v46
  %122 = vmatprep.subr.mxu0 %v51
  %123 = vmatpush1.msra.mxu0 %v50
  %124 = vmatprep.subr.mxu0 %v55
  %125 = vmatpush1.msra.mxu0 %v54
  %126 = vmatprep.subr.mxu0 %v59
  %127 = vmatpush1.msra.mxu0 %v58
  %128 = vmatprep.subr.mxu0 %v63
  %129 = vmatpush1.msra.mxu0 %v62
  %130 = vmatprep.subr.mxu0 %v67
  %131 = vmatpush1.msra.mxu0 %v66
  %132 = vmatprep.subr.mxu0 %v71
  %133 = vmatpush1.msra.mxu0 %v70
  %134 = vmatprep.subr.mxu0 %v75
  %135 = vmatpush1.msra.mxu0 %v74
  %136 = vmatprep.subr.mxu0 %v79
  %137 = vmatpush1.msra.mxu0 %v78
  %138 = vmatprep.subr.mxu0 %v83
  %139 = vmatpush1.msra.mxu0 %v82
  %140 = vmatprep.subr.mxu0 0.0
  %141 = vmatpush1.msra.mxu0 0.0
  %142 = vmatprep.subr.mxu0 0.0
  %143 = vmatpush1.msra.mxu0 0.0
  %144 = vmatprep.subr.mxu0 0.0
  %145 = vmatpush1.msra.mxu0 0.0
  %146 = vmatprep.subr.mxu0 0.0
  %147 = vmatpush1.msra.mxu0 0.0
  %148 = vmatprep.subr.mxu0 0.0
  %149 = vmatpush1.msra.mxu0 0.0
  %150 = vmatprep.subr.mxu0 0.0
  %151 = vmatpush1.msra.mxu0 0.0
  %152 = vmatprep.subr.mxu0 0.0
  %153 = vmatpush1.msra.mxu0 0.0
  %154 = vmatprep.subr.mxu0 0.0
  %155 = vmatpush1.msra.mxu0 0.0
  %156 = vmatprep.subr.mxu0 0.0
  %157 = vmatpush1.msra.mxu0 0.0
  %158 = vmatprep.subr.mxu0 0.0
  %159 = vmatpush1.msra.mxu0 0.0
  %160 = vmatprep.subr.mxu0 0.0
  %161 = vmatpush1.msra.mxu0 0.0
  %162 = vmatprep.subr.mxu0 0.0
  %163 = vmatpush1.msra.mxu0 0.0
  %164 = vmatprep.subr.mxu0 0.0
  %165 = vmatpush1.msra.mxu0 0.0
  %166 = vmatprep.subr.mxu0 0.0
  %167 = vmatpush1.msra.mxu0 0.0
  %168 = vmatprep.subr.mxu0 0.0
  %169 = vmatpush1.msra.mxu0 0.0
  %170 = vmatprep.subr.mxu0 0.0
  %171 = vmatpush1.msra.mxu0 0.0
  %172 = vmatprep.mubr.f32.mxu0 0.0
  %173 = vmatmul.mubr.f32.gmra.mrb[0].mxu0 %v14
  %v174 = vpop.f32.mrb[0].mxu0
  %v175 = vadd.f32 %v91, %v174
  %v176 = vpop.f32.mrb[0].mxu0
  %v177 = vadd.f32 %v95, %v176
  %178 = vmatprep.mubr.f32.mxu0 0.0
  %179 = vmatmul.mubr.f32.gmra.mrb[0].mxu0 %v15
  %v180 = vpop.f32.mrb[0].mxu0
  %v181 = vadd.f32 %v91, %v180
  %v182 = vpop.f32.mrb[0].mxu0
  %v183 = vadd.f32 %v95, %v182
  %184 = vmatprep.mubr.f32.mxu0 0.0
  %185 = vmatmul.mubr.f32.gmra.mrb[0].mxu0 %v16
  %v186 = vpop.f32.mrb[0].mxu0
  %v187 = vadd.f32 %v91, %v186
  %v188 = vpop.f32.mrb[0].mxu0
  %v189 = vadd.f32 %v95, %v188
  %190 = vmatprep.mubr.f32.mxu0 0.0
  %191 = vmatmul.mubr.f32.gmra.mrb[0].mxu0 %v17
  %v192 = vpop.f32.mrb[0].mxu0
  %v193 = vadd.f32 %v91, %v192
  %v194 = vpop.f32.mrb[0].mxu0
  %v195 = vadd.f32 %v95, %v194
  %196 = vmatprep.mubr.f32.mxu0 0.0
  %197 = vmatmul.mubr.f32.gmra.mrb[0].mxu0 %v18
  %v198 = vpop.f32.mrb[0].mxu0
  %v199 = vadd.f32 %v91, %v198
  %v200 = vpop.f32.mrb[0].mxu0
  %v201 = vadd.f32 %v95, %v200
  %202 = vmatprep.mubr.f32.mxu0 0.0
  %203 = vmatmul.mubr.f32.gmra.mrb[0].mxu0 %v19
  %v204 = vpop.f32.mrb[0].mxu0
  %v205 = vadd.f32 %v91, %v204
  %v206 = vpop.f32.mrb[0].mxu0
  %v207 = vadd.f32 %v95, %v206
  %208 = vmatprep.mubr.f32.mxu0 0.0
  %209 = vmatmul.mubr.f32.gmra.mrb[0].mxu0 %v20
  %v210 = vpop.f32.mrb[0].mxu0
  %v211 = vadd.f32 %v91, %v210
  %v212 = vpop.f32.mrb[0].mxu0
  %v213 = vadd.f32 %v95, %v212
  %214 = vmatprep.mubr.f32.mxu0 0.0
  %215 = vmatmul.mubr.f32.gmra.mrb[0].mxu0 %v21
  %v216 = vpop.f32.mrb[0].mxu0
  %v217 = vadd.f32 %v91, %v216
  %v218 = vpop.f32.mrb[0].mxu0
  %v219 = vadd.f32 %v95, %v218
  %220 = vdwg.mxu0
  %221 = vmatprep.subr.mxu0 %v25
  %222 = vmatpush1.msra.mxu0 %v24
  %223 = vmatprep.subr.mxu0 %v29
  %224 = vmatpush1.msra.mxu0 %v28
  %225 = vmatprep.subr.mxu0 %v33
  %226 = vmatpush1.msra.mxu0 %v32
  %227 = vmatprep.subr.mxu0 %v37
  %228 = vmatpush1.msra.mxu0 %v36
  %229 = vmatprep.subr.mxu0 %v41
  %230 = vmatpush1.msra.mxu0 %v40
  %231 = vmatprep.subr.mxu0 %v45
  %232 = vmatpush1.msra.mxu0 %v44
  %233 = vmatprep.subr.mxu0 %v49
  %234 = vmatpush1.msra.mxu0 %v48
  %235 = vmatprep.subr.mxu0 %v53
  %236 = vmatpush1.msra.mxu0 %v52
  %237 = vmatprep.subr.mxu0 %v57
  %238 = vmatpush1.msra.mxu0 %v56
  %239 = vmatprep.subr.mxu0 %v61
  %240 = vmatpush1.msra.mxu0 %v60
  %241 = vmatprep.subr.mxu0 %v65
  %242 = vmatpush1.msra.mxu0 %v64
  %243 = vmatprep.subr.mxu0 %v69
  %244 = vmatpush1.msra.mxu0 %v68
  %245 = vmatprep.subr.mxu0 %v73
  %246 = vmatpush1.msra.mxu0 %v72
  %247 = vmatprep.subr.mxu0 %v77
  %248 = vmatpush1.msra.mxu0 %v76
  %249 = vmatprep.subr.mxu0 %v81
  %250 = vmatpush1.msra.mxu0 %v80
  %251 = vmatprep.subr.mxu0 %v85
  %252 = vmatpush1.msra.mxu0 %v84
  %253 = vmatprep.subr.mxu0 0.0
  %254 = vmatpush1.msra.mxu0 0.0
  %255 = vmatprep.subr.mxu0 0.0
  %256 = vmatpush1.msra.mxu0 0.0
  %257 = vmatprep.subr.mxu0 0.0
  %258 = vmatpush1.msra.mxu0 0.0
  %259 = vmatprep.subr.mxu0 0.0
  %260 = vmatpush1.msra.mxu0 0.0
  %261 = vmatprep.subr.mxu0 0.0
  %262 = vmatpush1.msra.mxu0 0.0
  %263 = vmatprep.subr.mxu0 0.0
  %264 = vmatpush1.msra.mxu0 0.0
  %265 = vmatprep.subr.mxu0 0.0
  %266 = vmatpush1.msra.mxu0 0.0
  %267 = vmatprep.subr.mxu0 0.0
  %268 = vmatpush1.msra.mxu0 0.0
  %269 = vmatprep.subr.mxu0 0.0
  %270 = vmatpush1.msra.mxu0 0.0
  %271 = vmatprep.subr.mxu0 0.0
  %272 = vmatpush1.msra.mxu0 0.0
  %273 = vmatprep.subr.mxu0 0.0
  %274 = vmatpush1.msra.mxu0 0.0
  %275 = vmatprep.subr.mxu0 0.0
  %276 = vmatpush1.msra.mxu0 0.0
  %277 = vmatprep.subr.mxu0 0.0
  %278 = vmatpush1.msra.mxu0 0.0
  %279 = vmatprep.subr.mxu0 0.0
  %280 = vmatpush1.msra.mxu0 0.0
  %281 = vmatprep.subr.mxu0 0.0
  %282 = vmatpush1.msra.mxu0 0.0
  %283 = vmatprep.subr.mxu0 0.0
  %284 = vmatpush1.msra.mxu0 0.0
  %285 = vmatprep.mubr.f32.mxu0 0.0
  %286 = vmatmul.mubr.f32.gmra.mrb[0].mxu0 %v14
  %v287 = vpop.f32.mrb[0].mxu0
  %v288 = vadd.f32 %v99, %v287
  %v289 = vpop.f32.mrb[0].mxu0
  %v290 = vadd.f32 %v103, %v289
  %291 = vmatprep.mubr.f32.mxu0 0.0
  %292 = vmatmul.mubr.f32.gmra.mrb[0].mxu0 %v15
  %v293 = vpop.f32.mrb[0].mxu0
  %v294 = vadd.f32 %v99, %v293
  %v295 = vpop.f32.mrb[0].mxu0
  %v296 = vadd.f32 %v103, %v295
  %297 = vmatprep.mubr.f32.mxu0 0.0
  %298 = vmatmul.mubr.f32.gmra.mrb[0].mxu0 %v16
  %v299 = vpop.f32.mrb[0].mxu0
  %v300 = vadd.f32 %v99, %v299
  %v301 = vpop.f32.mrb[0].mxu0
  %v302 = vadd.f32 %v103, %v301
  %303 = vmatprep.mubr.f32.mxu0 0.0
  %304 = vmatmul.mubr.f32.gmra.mrb[0].mxu0 %v17
  %v305 = vpop.f32.mrb[0].mxu0
  %v306 = vadd.f32 %v99, %v305
  %v307 = vpop.f32.mrb[0].mxu0
  %v308 = vadd.f32 %v103, %v307
  %309 = vmatprep.mubr.f32.mxu0 0.0
  %310 = vmatmul.mubr.f32.gmra.mrb[0].mxu0 %v18
  %v311 = vpop.f32.mrb[0].mxu0
  %v312 = vadd.f32 %v99, %v311
  %v313 = vpop.f32.mrb[0].mxu0
  %v314 = vadd.f32 %v103, %v313
  %315 = vmatprep.mubr.f32.mxu0 0.0
  %316 = vmatmul.mubr.f32.gmra.mrb[0].mxu0 %v19
  %v317 = vpop.f32.mrb[0].mxu0
  %v318 = vadd.f32 %v99, %v317
  %v319 = vpop.f32.mrb[0].mxu0
  %v320 = vadd.f32 %v103, %v319
  %321 = vmatprep.mubr.f32.mxu0 0.0
  %322 = vmatmul.mubr.f32.gmra.mrb[0].mxu0 %v20
  %v323 = vpop.f32.mrb[0].mxu0
  %v324 = vadd.f32 %v99, %v323
  %v325 = vpop.f32.mrb[0].mxu0
  %v326 = vadd.f32 %v103, %v325
  %327 = vmatprep.mubr.f32.mxu0 0.0
  %328 = vmatmul.mubr.f32.gmra.mrb[0].mxu0 %v21
  %v329 = vpop.f32.mrb[0].mxu0
  %v330 = vadd.f32 %v99, %v329
  %v331 = vpop.f32.mrb[0].mxu0
  %v332 = vadd.f32 %v103, %v331
  %333 = vdwg.mxu0
  %334 = vst [vmem:[%s3] sm:$0xff] %v175
  %335 = vst [vmem:[%s3 + $0x8] sm:$0xff] %v177
  %336 = vst [vmem:[%s3 + $0x10] sm:$0xff] %v288
  %337 = vst [vmem:[%s3 + $0x18] sm:$0xff] %v290
  %338 = vst [vmem:[%s3 + $0x20] sm:$0xff] %v181
  %339 = vst [vmem:[%s3 + $0x28] sm:$0xff] %v183
  %340 = vst [vmem:[%s3 + $0x30] sm:$0xff] %v294
  %341 = vst [vmem:[%s3 + $0x38] sm:$0xff] %v296
  %342 = vst [vmem:[%s3 + $0x40] sm:$0xff] %v187
  %343 = vst [vmem:[%s3 + $0x48] sm:$0xff] %v189
  %344 = vst [vmem:[%s3 + $0x50] sm:$0xff] %v300
  %345 = vst [vmem:[%s3 + $0x58] sm:$0xff] %v302
  %346 = vst [vmem:[%s3 + $0x60] sm:$0xff] %v193
  %347 = vst [vmem:[%s3 + $0x68] sm:$0xff] %v195
  %348 = vst [vmem:[%s3 + $0x70] sm:$0xff] %v306
  %349 = vst [vmem:[%s3 + $0x78] sm:$0xff] %v308
  %350 = vst [vmem:[%s3 + $0x80] sm:$0xff] %v199
  %351 = vst [vmem:[%s3 + $0x88] sm:$0xff] %v201
  %352 = vst [vmem:[%s3 + $0x90] sm:$0xff] %v312
  %353 = vst [vmem:[%s3 + $0x98] sm:$0xff] %v314
  %354 = vst [vmem:[%s3 + $0xa0] sm:$0xff] %v205
  %355 = vst [vmem:[%s3 + $0xa8] sm:$0xff] %v207
  %356 = vst [vmem:[%s3 + $0xb0] sm:$0xff] %v318
  %357 = vst [vmem:[%s3 + $0xb8] sm:$0xff] %v320
  %358 = vst [vmem:[%s3 + $0xc0] sm:$0xff] %v211
  %359 = vst [vmem:[%s3 + $0xc8] sm:$0xff] %v213
  %360 = vst [vmem:[%s3 + $0xd0] sm:$0xff] %v324
  %361 = vst [vmem:[%s3 + $0xd8] sm:$0xff] %v326
  %362 = vst [vmem:[%s3 + $0xe0] sm:$0xff] %v217
  %363 = vst [vmem:[%s3 + $0xe8] sm:$0xff] %v219
  %364 = vst [vmem:[%s3 + $0xf0] sm:$0xff] %v330
  %365 = vst [vmem:[%s3 + $0xf8] sm:$0xff] %v332
  // Predicated region
  $region14: #{lstm_model_forward.6} parent=0 // pred_check
    _
  $region15: #{lstm_model_forward.6} parent=0 // pred_check_branch
    %367 = sbr.rel (0) target = $region17
  $region16: #{lstm_model_forward.6} parent=0 // pred_region
    _
  $region17: #{lstm_model_forward.6} parent=0 // pred_fallthru
    _
  // Predicated region
  $region18: #{lstm_model_forward.6} parent=0 // pred_check
    _
  $region19: #{lstm_model_forward.6} parent=0 // pred_check_branch
    %369 = sbr.rel (0) target = $region21
  $region20: #{lstm_model_forward.6} parent=0 // pred_region
    _
  $region21: #{lstm_model_forward.6} parent=0 // pred_fallthru
    _

// kernel: lstm_model_forward.5
$region0: #{lstm_model_forward.5}
  #allocation0 [shape = 'u32[]', space=smem, size = 0x4, offset = 0x4, fixed_abs, tag = 'smem constant byte address 0x4 - core index']
  #allocation1 [shape = 'u32[144,128]{1,0:T(1,128)}', space=vmem, size = 0x12000, scoped, tag = 'internal scratch']
  #allocation2 [shape = 'f32[8,128]{1,0:T(8,128)}', space=vmem, size = 0x1000, scoped, tag = 'scratch operand']
  #allocation3 [shape = 'f32[8,128]{1,0:T(8,128)}', space=vmem, size = 0x1000, scoped, tag = 'scratch operand']
  %s0 = inlined_call_operand.vmem [shape: f32[8,8,512], index: 0, kind: input, shape index: {}]
  %s1 = inlined_call_operand.vmem [shape: f32[128,512], index: 1, kind: input, shape index: {}]
  %s2 = inlined_call_operand.vmem [shape: f32[8,8,128], index: 2, kind: output, shape index: {}]
  %s3 = sld [smem:[#allocation0]]
  $region22: #{lstm_model_forward.5} parent=0
    _
  %s5 = ssub.s32 1, %s3
  %s6 = scalar_select 0, %s5, %s3
  // Predicated region
  $region2: #{lstm_model_forward.5} parent=0 // pred_check
    _
  $region3: #{lstm_model_forward.5} parent=0 // pred_check_branch
    %8 = sbr.rel (0) target = $region5
  $region4: #{lstm_model_forward.5} parent=0 // pred_region
    _
  $region5: #{lstm_model_forward.5} parent=0 // pred_fallthru
    _
  // Predicated region
  $region6: #{lstm_model_forward.5} parent=0 // pred_check
    _
  $region7: #{lstm_model_forward.5} parent=0 // pred_check_branch
    %10 = sbr.rel (0) target = $region9
  $region8: #{lstm_model_forward.5} parent=0 // pred_region
    _
  $region9: #{lstm_model_forward.5} parent=0 // pred_fallthru
    _
  %p11 = scmp.eq.s32.totalorder 0, 0
  // Predicated region
  $region10: #{lstm_model_forward.5} parent=0 // pred_check
    %p12 = pneg %p11
  $region11: #{lstm_model_forward.5} parent=0 // pred_check_branch
    %14 = sbr.rel (%p12) target = $region13
  $region12: #{lstm_model_forward.5} parent=0 // pred_region
    %15 = vst [vmem:[#allocation2] sm:$0xff] 0.0
    %16 = vst [vmem:[#allocation3] sm:$0xff] 0.0
  $region13: #{lstm_model_forward.5} parent=0 // pred_fallthru
    _
  %v17 = vld [vmem:[%s1] sm:$0xff]
  %v18 = vld [vmem:[%s1 + $0x8] sm:$0xff]
  %v19 = vld [vmem:[%s1 + $0x10] sm:$0xff]
  %v20 = vld [vmem:[%s1 + $0x18] sm:$0xff]
  %v21 = vld [vmem:[%s1 + $0x20] sm:$0xff]
  %v22 = vld [vmem:[%s1 + $0x28] sm:$0xff]
  %v23 = vld [vmem:[%s1 + $0x30] sm:$0xff]
  %v24 = vld [vmem:[%s1 + $0x38] sm:$0xff]
  %v25 = vld [vmem:[%s1 + $0x40] sm:$0xff]
  %v26 = vld [vmem:[%s1 + $0x48] sm:$0xff]
  %v27 = vld [vmem:[%s1 + $0x50] sm:$0xff]
  %v28 = vld [vmem:[%s1 + $0x58] sm:$0xff]
  %v29 = vld [vmem:[%s1 + $0x60] sm:$0xff]
  %v30 = vld [vmem:[%s1 + $0x68] sm:$0xff]
  %v31 = vld [vmem:[%s1 + $0x70] sm:$0xff]
  %v32 = vld [vmem:[%s1 + $0x78] sm:$0xff]
  %v33 = vld [vmem:[%s1 + $0x80] sm:$0xff]
  %v34 = vld [vmem:[%s1 + $0x88] sm:$0xff]
  %v35 = vld [vmem:[%s1 + $0x90] sm:$0xff]
  %v36 = vld [vmem:[%s1 + $0x98] sm:$0xff]
  %v37 = vld [vmem:[%s1 + $0xa0] sm:$0xff]
  %v38 = vld [vmem:[%s1 + $0xa8] sm:$0xff]
  %v39 = vld [vmem:[%s1 + $0xb0] sm:$0xff]
  %v40 = vld [vmem:[%s1 + $0xb8] sm:$0xff]
  %v41 = vld [vmem:[%s1 + $0xc0] sm:$0xff]
  %v42 = vld [vmem:[%s1 + $0xc8] sm:$0xff]
  %v43 = vld [vmem:[%s1 + $0xd0] sm:$0xff]
  %v44 = vld [vmem:[%s1 + $0xd8] sm:$0xff]
  %v45 = vld [vmem:[%s1 + $0xe0] sm:$0xff]
  %v46 = vld [vmem:[%s1 + $0xe8] sm:$0xff]
  %v47 = vld [vmem:[%s1 + $0xf0] sm:$0xff]
  %v48 = vld [vmem:[%s1 + $0xf8] sm:$0xff]
  %v49 = vld [vmem:[%s1 + $0x100] sm:$0xff]
  %v50 = vld [vmem:[%s1 + $0x108] sm:$0xff]
  %v51 = vld [vmem:[%s1 + $0x110] sm:$0xff]
  %v52 = vld [vmem:[%s1 + $0x118] sm:$0xff]
  %v53 = vld [vmem:[%s1 + $0x120] sm:$0xff]
  %v54 = vld [vmem:[%s1 + $0x128] sm:$0xff]
  %v55 = vld [vmem:[%s1 + $0x130] sm:$0xff]
  %v56 = vld [vmem:[%s1 + $0x138] sm:$0xff]
  %v57 = vld [vmem:[%s1 + $0x140] sm:$0xff]
  %v58 = vld [vmem:[%s1 + $0x148] sm:$0xff]
  %v59 = vld [vmem:[%s1 + $0x150] sm:$0xff]
  %v60 = vld [vmem:[%s1 + $0x158] sm:$0xff]
  %v61 = vld [vmem:[%s1 + $0x160] sm:$0xff]
  %v62 = vld [vmem:[%s1 + $0x168] sm:$0xff]
  %v63 = vld [vmem:[%s1 + $0x170] sm:$0xff]
  %v64 = vld [vmem:[%s1 + $0x178] sm:$0xff]
  %v65 = vld [vmem:[%s1 + $0x180] sm:$0xff]
  %v66 = vld [vmem:[%s1 + $0x188] sm:$0xff]
  %v67 = vld [vmem:[%s1 + $0x190] sm:$0xff]
  %v68 = vld [vmem:[%s1 + $0x198] sm:$0xff]
  %v69 = vld [vmem:[%s1 + $0x1a0] sm:$0xff]
  %v70 = vld [vmem:[%s1 + $0x1a8] sm:$0xff]
  %v71 = vld [vmem:[%s1 + $0x1b0] sm:$0xff]
  %v72 = vld [vmem:[%s1 + $0x1b8] sm:$0xff]
  %v73 = vld [vmem:[%s1 + $0x1c0] sm:$0xff]
  %v74 = vld [vmem:[%s1 + $0x1c8] sm:$0xff]
  %v75 = vld [vmem:[%s1 + $0x1d0] sm:$0xff]
  %v76 = vld [vmem:[%s1 + $0x1d8] sm:$0xff]
  %v77 = vld [vmem:[%s1 + $0x1e0] sm:$0xff]
  %v78 = vld [vmem:[%s1 + $0x1e8] sm:$0xff]
  %v79 = vld [vmem:[%s1 + $0x1f0] sm:$0xff]
  %v80 = vld [vmem:[%s1 + $0x1f8] sm:$0xff]
  %v81 = vld [vmem:[%s0] sm:$0xff]
  %v82 = vld [vmem:[%s0 + $0x8] sm:$0xff]
  %v83 = vld [vmem:[%s0 + $0x10] sm:$0xff]
  %v84 = vld [vmem:[%s0 + $0x18] sm:$0xff]
  %v85 = vld [vmem:[#allocation2] sm:$0xff]
  %86 = vmatprep.subr.mxu0 %v18
  %87 = vmatpush1.msra.mxu0 %v17
  %88 = vmatprep.subr.mxu0 %v22
  %89 = vmatpush1.msra.mxu0 %v21
  %90 = vmatprep.subr.mxu0 %v26
  %91 = vmatpush1.msra.mxu0 %v25
  %92 = vmatprep.subr.mxu0 %v30
  %93 = vmatpush1.msra.mxu0 %v29
  %94 = vmatprep.subr.mxu0 %v34
  %95 = vmatpush1.msra.mxu0 %v33
  %96 = vmatprep.subr.mxu0 %v38
  %97 = vmatpush1.msra.mxu0 %v37
  %98 = vmatprep.subr.mxu0 %v42
  %99 = vmatpush1.msra.mxu0 %v41
  %100 = vmatprep.subr.mxu0 %v46
  %101 = vmatpush1.msra.mxu0 %v45
  %102 = vmatprep.subr.mxu0 %v50
  %103 = vmatpush1.msra.mxu0 %v49
  %104 = vmatprep.subr.mxu0 %v54
  %105 = vmatpush1.msra.mxu0 %v53
  %106 = vmatprep.subr.mxu0 %v58
  %107 = vmatpush1.msra.mxu0 %v57
  %108 = vmatprep.subr.mxu0 %v62
  %109 = vmatpush1.msra.mxu0 %v61
  %110 = vmatprep.subr.mxu0 %v66
  %111 = vmatpush1.msra.mxu0 %v65
  %112 = vmatprep.subr.mxu0 %v70
  %113 = vmatpush1.msra.mxu0 %v69
  %114 = vmatprep.subr.mxu0 %v74
  %115 = vmatpush1.msra.mxu0 %v73
  %116 = vmatprep.subr.mxu0 %v78
  %117 = vmatpush1.msra.mxu0 %v77
  %118 = vmatprep.subr.mxu0 0.0
  %119 = vmatpush1.msra.mxu0 0.0
  %120 = vmatprep.subr.mxu0 0.0
  %121 = vmatpush1.msra.mxu0 0.0
  %122 = vmatprep.subr.mxu0 0.0
  %123 = vmatpush1.msra.mxu0 0.0
  %124 = vmatprep.subr.mxu0 0.0
  %125 = vmatpush1.msra.mxu0 0.0
  %126 = vmatprep.subr.mxu0 0.0
  %127 = vmatpush1.msra.mxu0 0.0
  %128 = vmatprep.subr.mxu0 0.0
  %129 = vmatpush1.msra.mxu0 0.0
  %130 = vmatprep.subr.mxu0 0.0
  %131 = vmatpush1.msra.mxu0 0.0
  %132 = vmatprep.subr.mxu0 0.0
  %133 = vmatpush1.msra.mxu0 0.0
  %134 = vmatprep.subr.mxu0 0.0
  %135 = vmatpush1.msra.mxu0 0.0
  %136 = vmatprep.subr.mxu0 0.0
  %137 = vmatpush1.msra.mxu0 0.0
  %138 = vmatprep.subr.mxu0 0.0
  %139 = vmatpush1.msra.mxu0 0.0
  %140 = vmatprep.subr.mxu0 0.0
  %141 = vmatpush1.msra.mxu0 0.0
  %142 = vmatprep.subr.mxu0 0.0
  %143 = vmatpush1.msra.mxu0 0.0
  %144 = vmatprep.subr.mxu0 0.0
  %145 = vmatpush1.msra.mxu0 0.0
  %146 = vmatprep.subr.mxu0 0.0
  %147 = vmatpush1.msra.mxu0 0.0
  %148 = vmatprep.subr.mxu0 0.0
  %149 = vmatpush1.msra.mxu0 0.0
  %150 = vmatprep.mubr.f32.mxu0 0.0
  %151 = vmatmul.mubr.f32.gmra.mrb[0].mxu0 %v85
  %v152 = vpop.f32.mrb[0].mxu0
  %v153 = vadd.f32 0.0, %v152
  %v154 = vpop.f32.mrb[0].mxu0
  %v155 = vadd.f32 0.0, %v154
  %156 = vdwg.mxu0
  %157 = vmatprep.subr.mxu0 %v20
  %158 = vmatpush1.msra.mxu0 %v19
  %159 = vmatprep.subr.mxu0 %v24
  %160 = vmatpush1.msra.mxu0 %v23
  %161 = vmatprep.subr.mxu0 %v28
  %162 = vmatpush1.msra.mxu0 %v27
  %163 = vmatprep.subr.mxu0 %v32
  %164 = vmatpush1.msra.mxu0 %v31
  %165 = vmatprep.subr.mxu0 %v36
  %166 = vmatpush1.msra.mxu0 %v35
  %167 = vmatprep.subr.mxu0 %v40
  %168 = vmatpush1.msra.mxu0 %v39
  %169 = vmatprep.subr.mxu0 %v44
  %170 = vmatpush1.msra.mxu0 %v43
  %171 = vmatprep.subr.mxu0 %v48
  %172 = vmatpush1.msra.mxu0 %v47
  %173 = vmatprep.subr.mxu0 %v52
  %174 = vmatpush1.msra.mxu0 %v51
  %175 = vmatprep.subr.mxu0 %v56
  %176 = vmatpush1.msra.mxu0 %v55
  %177 = vmatprep.subr.mxu0 %v60
  %178 = vmatpush1.msra.mxu0 %v59
  %179 = vmatprep.subr.mxu0 %v64
  %180 = vmatpush1.msra.mxu0 %v63
  %181 = vmatprep.subr.mxu0 %v68
  %182 = vmatpush1.msra.mxu0 %v67
  %183 = vmatprep.subr.mxu0 %v72
  %184 = vmatpush1.msra.mxu0 %v71
  %185 = vmatprep.subr.mxu0 %v76
  %186 = vmatpush1.msra.mxu0 %v75
  %187 = vmatprep.subr.mxu0 %v80
  %188 = vmatpush1.msra.mxu0 %v79
  %189 = vmatprep.subr.mxu0 0.0
  %190 = vmatpush1.msra.mxu0 0.0
  %191 = vmatprep.subr.mxu0 0.0
  %192 = vmatpush1.msra.mxu0 0.0
  %193 = vmatprep.subr.mxu0 0.0
  %194 = vmatpush1.msra.mxu0 0.0
  %195 = vmatprep.subr.mxu0 0.0
  %196 = vmatpush1.msra.mxu0 0.0
  %197 = vmatprep.subr.mxu0 0.0
  %198 = vmatpush1.msra.mxu0 0.0
  %199 = vmatprep.subr.mxu0 0.0
  %200 = vmatpush1.msra.mxu0 0.0
  %201 = vmatprep.subr.mxu0 0.0
  %202 = vmatpush1.msra.mxu0 0.0
  %203 = vmatprep.subr.mxu0 0.0
  %204 = vmatpush1.msra.mxu0 0.0
  %205 = vmatprep.subr.mxu0 0.0
  %206 = vmatpush1.msra.mxu0 0.0
  %207 = vmatprep.subr.mxu0 0.0
  %208 = vmatpush1.msra.mxu0 0.0
  %209 = vmatprep.subr.mxu0 0.0
  %210 = vmatpush1.msra.mxu0 0.0
  %211 = vmatprep.subr.mxu0 0.0
  %212 = vmatpush1.msra.mxu0 0.0
  %213 = vmatprep.subr.mxu0 0.0
  %214 = vmatpush1.msra.mxu0 0.0
  %215 = vmatprep.subr.mxu0 0.0
  %216 = vmatpush1.msra.mxu0 0.0
  %217 = vmatprep.subr.mxu0 0.0
  %218 = vmatpush1.msra.mxu0 0.0
  %219 = vmatprep.subr.mxu0 0.0
  %220 = vmatpush1.msra.mxu0 0.0
  %221 = vmatprep.mubr.f32.mxu0 0.0
  %222 = vmatmul.mubr.f32.gmra.mrb[0].mxu0 %v85
  %v223 = vpop.f32.mrb[0].mxu0
  %v224 = vadd.f32 0.0, %v223
  %v225 = vpop.f32.mrb[0].mxu0
  %v226 = vadd.f32 0.0, %v225
  %227 = vdwg.mxu0
  %v228 = vadd.f32 %v81, %v153
  %v229 = vadd.f32 %v82, %v155
  %v230 = vadd.f32 %v83, %v224
  %v231 = vadd.f32 %v84, %v226
  %v232 = vxor.u32 %v228, 2147483648
  %v233 = vmul.f32 %v232, 1.442695
  %v234 = vpow.pop %v233
  %v235 = vadd.f32 %v234, 1.0
  %v236 = vrcp.pop %v235
  %v237 = vmul.f32 1.0, %v236
  %v238 = vxor.u32 %v229, 2147483648
  %v239 = vmul.f32 %v238, 1.442695
  %v240 = vpow.pop %v239
  %v241 = vadd.f32 %v240, 1.0
  %v242 = vrcp.pop %v241
  %v243 = vmul.f32 1.0, %v242
  %v244 = vtanh.pop %v230
  %v245 = vxor.u32 %v231, 2147483648
  %v246 = vmul.f32 %v245, 1.442695
  %v247 = vpow.pop %v246
  %v248 = vadd.f32 %v247, 1.0
  %v249 = vrcp.pop %v248
  %v250 = vmul.f32 1.0, %v249
  %v251 = vld [vmem:[#allocation3] sm:$0xff]
  %v252 = vmul.f32 %v243, %v251
  %v253 = vmul.f32 %v237, %v244
  %v254 = vadd.f32 %v252, %v253
  %v255 = vtanh.pop %v254
  %v256 = vmul.f32 %v250, %v255
  %257 = vst [vmem:[#allocation3] sm:$0xff] %v254
  %258 = vst [vmem:[#allocation2] sm:$0xff] %v256
  %259 = vst [vmem:[%s2] sm:$0xff] %v256
  %s260 = scalar_lea.vmem %s0, 32
  %v261 = vld [vmem:[%s260] sm:$0xff]
  %v262 = vld [vmem:[%s260 + $0x8] sm:$0xff]
  %v263 = vld [vmem:[%s260 + $0x10] sm:$0xff]
  %v264 = vld [vmem:[%s260 + $0x18] sm:$0xff]
  %v265 = vld [vmem:[#allocation2] sm:$0xff]
  %266 = vmatprep.subr.mxu0 %v18
  %267 = vmatpush1.msra.mxu0 %v17
  %268 = vmatprep.subr.mxu0 %v22
  %269 = vmatpush1.msra.mxu0 %v21
  %270 = vmatprep.subr.mxu0 %v26
  %271 = vmatpush1.msra.mxu0 %v25
  %272 = vmatprep.subr.mxu0 %v30
  %273 = vmatpush1.msra.mxu0 %v29
  %274 = vmatprep.subr.mxu0 %v34
  %275 = vmatpush1.msra.mxu0 %v33
  %276 = vmatprep.subr.mxu0 %v38
  %277 = vmatpush1.msra.mxu0 %v37
  %278 = vmatprep.subr.mxu0 %v42
  %279 = vmatpush1.msra.mxu0 %v41
  %280 = vmatprep.subr.mxu0 %v46
  %281 = vmatpush1.msra.mxu0 %v45
  %282 = vmatprep.subr.mxu0 %v50
  %283 = vmatpush1.msra.mxu0 %v49
  %284 = vmatprep.subr.mxu0 %v54
  %285 = vmatpush1.msra.mxu0 %v53
  %286 = vmatprep.subr.mxu0 %v58
  %287 = vmatpush1.msra.mxu0 %v57
  %288 = vmatprep.subr.mxu0 %v62
  %289 = vmatpush1.msra.mxu0 %v61
  %290 = vmatprep.subr.mxu0 %v66
  %291 = vmatpush1.msra.mxu0 %v65
  %292 = vmatprep.subr.mxu0 %v70
  %293 = vmatpush1.msra.mxu0 %v69
  %294 = vmatprep.subr.mxu0 %v74
  %295 = vmatpush1.msra.mxu0 %v73
  %296 = vmatprep.subr.mxu0 %v78
  %297 = vmatpush1.msra.mxu0 %v77
  %298 = vmatprep.subr.mxu0 0.0
  %299 = vmatpush1.msra.mxu0 0.0
  %300 = vmatprep.subr.mxu0 0.0
  %301 = vmatpush1.msra.mxu0 0.0
  %302 = vmatprep.subr.mxu0 0.0
  %303 = vmatpush1.msra.mxu0 0.0
  %304 = vmatprep.subr.mxu0 0.0
  %305 = vmatpush1.msra.mxu0 0.0
  %306 = vmatprep.subr.mxu0 0.0
  %307 = vmatpush1.msra.mxu0 0.0
  %308 = vmatprep.subr.mxu0 0.0
  %309 = vmatpush1.msra.mxu0 0.0
  %310 = vmatprep.subr.mxu0 0.0
  %311 = vmatpush1.msra.mxu0 0.0
  %312 = vmatprep.subr.mxu0 0.0
  %313 = vmatpush1.msra.mxu0 0.0
  %314 = vmatprep.subr.mxu0 0.0
  %315 = vmatpush1.msra.mxu0 0.0
  %316 = vmatprep.subr.mxu0 0.0
  %317 = vmatpush1.msra.mxu0 0.0
  %318 = vmatprep.subr.mxu0 0.0
  %319 = vmatpush1.msra.mxu0 0.0
  %320 = vmatprep.subr.mxu0 0.0
  %321 = vmatpush1.msra.mxu0 0.0
  %322 = vmatprep.subr.mxu0 0.0
  %323 = vmatpush1.msra.mxu0 0.0
  %324 = vmatprep.subr.mxu0 0.0
  %325 = vmatpush1.msra.mxu0 0.0
  %326 = vmatprep.subr.mxu0 0.0
  %327 = vmatpush1.msra.mxu0 0.0
  %328 = vmatprep.subr.mxu0 0.0
  %329 = vmatpush1.msra.mxu0 0.0
  %330 = vmatprep.mubr.f32.mxu0 0.0
  %331 = vmatmul.mubr.f32.gmra.mrb[0].mxu0 %v265
  %v332 = vpop.f32.mrb[0].mxu0
  %v333 = vadd.f32 0.0, %v332
  %v334 = vpop.f32.mrb[0].mxu0
  %v335 = vadd.f32 0.0, %v334
  %336 = vdwg.mxu0
  %337 = vmatprep.subr.mxu0 %v20
  %338 = vmatpush1.msra.mxu0 %v19
  %339 = vmatprep.subr.mxu0 %v24
  %340 = vmatpush1.msra.mxu0 %v23
  %341 = vmatprep.subr.mxu0 %v28
  %342 = vmatpush1.msra.mxu0 %v27
  %343 = vmatprep.subr.mxu0 %v32
  %344 = vmatpush1.msra.mxu0 %v31
  %345 = vmatprep.subr.mxu0 %v36
  %346 = vmatpush1.msra.mxu0 %v35
  %347 = vmatprep.subr.mxu0 %v40
  %348 = vmatpush1.msra.mxu0 %v39
  %349 = vmatprep.subr.mxu0 %v44
  %350 = vmatpush1.msra.mxu0 %v43
  %351 = vmatprep.subr.mxu0 %v48
  %352 = vmatpush1.msra.mxu0 %v47
  %353 = vmatprep.subr.mxu0 %v52
  %354 = vmatpush1.msra.mxu0 %v51
  %355 = vmatprep.subr.mxu0 %v56
  %356 = vmatpush1.msra.mxu0 %v55
  %357 = vmatprep.subr.mxu0 %v60
  %358 = vmatpush1.msra.mxu0 %v59
  %359 = vmatprep.subr.mxu0 %v64
  %360 = vmatpush1.msra.mxu0 %v63
  %361 = vmatprep.subr.mxu0 %v68
  %362 = vmatpush1.msra.mxu0 %v67
  %363 = vmatprep.subr.mxu0 %v72
  %364 = vmatpush1.msra.mxu0 %v71
  %365 = vmatprep.subr.mxu0 %v76
  %366 = vmatpush1.msra.mxu0 %v75
  %367 = vmatprep.subr.mxu0 %v80
  %368 = vmatpush1.msra.mxu0 %v79
  %369 = vmatprep.subr.mxu0 0.0
  %370 = vmatpush1.msra.mxu0 0.0
  %371 = vmatprep.subr.mxu0 0.0
  %372 = vmatpush1.msra.mxu0 0.0
  %373 = vmatprep.subr.mxu0 0.0
  %374 = vmatpush1.msra.mxu0 0.0
  %375 = vmatprep.subr.mxu0 0.0
  %376 = vmatpush1.msra.mxu0 0.0
  %377 = vmatprep.subr.mxu0 0.0
  %378 = vmatpush1.msra.mxu0 0.0
  %379 = vmatprep.subr.mxu0 0.0
  %380 = vmatpush1.msra.mxu0 0.0
  %381 = vmatprep.subr.mxu0 0.0
  %382 = vmatpush1.msra.mxu0 0.0
  %383 = vmatprep.subr.mxu0 0.0
  %384 = vmatpush1.msra.mxu0 0.0
  %385 = vmatprep.subr.mxu0 0.0
  %386 = vmatpush1.msra.mxu0 0.0
  %387 = vmatprep.subr.mxu0 0.0
  %388 = vmatpush1.msra.mxu0 0.0
  %389 = vmatprep.subr.mxu0 0.0
  %390 = vmatpush1.msra.mxu0 0.0
  %391 = vmatprep.subr.mxu0 0.0
  %392 = vmatpush1.msra.mxu0 0.0
  %393 = vmatprep.subr.mxu0 0.0
  %394 = vmatpush1.msra.mxu0 0.0
  %395 = vmatprep.subr.mxu0 0.0
  %396 = vmatpush1.msra.mxu0 0.0
  %397 = vmatprep.subr.mxu0 0.0
  %398 = vmatpush1.msra.mxu0 0.0
  %399 = vmatprep.subr.mxu0 0.0
  %400 = vmatpush1.msra.mxu0 0.0
  %401 = vmatprep.mubr.f32.mxu0 0.0
  %402 = vmatmul.mubr.f32.gmra.mrb[0].mxu0 %v265
  %v403 = vpop.f32.mrb[0].mxu0
  %v404 = vadd.f32 0.0, %v403
  %v405 = vpop.f32.mrb[0].mxu0
  %v406 = vadd.f32 0.0, %v405
  %407 = vdwg.mxu0
  %v408 = vadd.f32 %v261, %v333
  %v409 = vadd.f32 %v262, %v335
  %v410 = vadd.f32 %v263, %v404
  %v411 = vadd.f32 %v264, %v406
  %v412 = vxor.u32 %v408, 2147483648
  %v413 = vmul.f32 %v412, 1.442695
  %v414 = vpow.pop %v413
  %v415 = vadd.f32 %v414, 1.0
  %v416 = vrcp.pop %v415
  %v417 = vmul.f32 1.0, %v416
  %v418 = vxor.u32 %v409, 2147483648
  %v419 = vmul.f32 %v418, 1.442695
  %v420 = vpow.pop %v419
  %v421 = vadd.f32 %v420, 1.0
  %v422 = vrcp.pop %v421
  %v423 = vmul.f32 1.0, %v422
  %v424 = vtanh.pop %v410
  %v425 = vxor.u32 %v411, 2147483648
  %v426 = vmul.f32 %v425, 1.442695
  %v427 = vpow.pop %v426
  %v428 = vadd.f32 %v427, 1.0
  %v429 = vrcp.pop %v428
  %v430 = vmul.f32 1.0, %v429
  %v431 = vld [vmem:[#allocation3] sm:$0xff]
  %v432 = vmul.f32 %v423, %v431
  %v433 = vmul.f32 %v417, %v424
  %v434 = vadd.f32 %v432, %v433
  %v435 = vtanh.pop %v434
  %v436 = vmul.f32 %v430, %v435
  %437 = vst [vmem:[#allocation3] sm:$0xff] %v434
  %438 = vst [vmem:[#allocation2] sm:$0xff] %v436
  %s439 = scalar_lea.vmem %s2, 8
  %440 = vst [vmem:[%s439] sm:$0xff] %v436
  %s441 = scalar_lea.vmem %s0, 64
  %v442 = vld [vmem:[%s441] sm:$0xff]
  %v443 = vld [vmem:[%s441 + $0x8] sm:$0xff]
  %v444 = vld [vmem:[%s441 + $0x10] sm:$0xff]
  %v445 = vld [vmem:[%s441 + $0x18] sm:$0xff]
  %v446 = vld [vmem:[#allocation2] sm:$0xff]
  %447 = vmatprep.subr.mxu0 %v18
  %448 = vmatpush1.msra.mxu0 %v17
  %449 = vmatprep.subr.mxu0 %v22
  %450 = vmatpush1.msra.mxu0 %v21
  %451 = vmatprep.subr.mxu0 %v26
  %452 = vmatpush1.msra.mxu0 %v25
  %453 = vmatprep.subr.mxu0 %v30
  %454 = vmatpush1.msra.mxu0 %v29
  %455 = vmatprep.subr.mxu0 %v34
  %456 = vmatpush1.msra.mxu0 %v33
  %457 = vmatprep.subr.mxu0 %v38
  %458 = vmatpush1.msra.mxu0 %v37
  %459 = vmatprep.subr.mxu0 %v42
  %460 = vmatpush1.msra.mxu0 %v41
  %461 = vmatprep.subr.mxu0 %v46
  %462 = vmatpush1.msra.mxu0 %v45
  %463 = vmatprep.subr.mxu0 %v50
  %464 = vmatpush1.msra.mxu0 %v49
  %465 = vmatprep.subr.mxu0 %v54
  %466 = vmatpush1.msra.mxu0 %v53
  %467 = vmatprep.subr.mxu0 %v58
  %468 = vmatpush1.msra.mxu0 %v57
  %469 = vmatprep.subr.mxu0 %v62
  %470 = vmatpush1.msra.mxu0 %v61
  %471 = vmatprep.subr.mxu0 %v66
  %472 = vmatpush1.msra.mxu0 %v65
  %473 = vmatprep.subr.mxu0 %v70
  %474 = vmatpush1.msra.mxu0 %v69
  %475 = vmatprep.subr.mxu0 %v74
  %476 = vmatpush1.msra.mxu0 %v73
  %477 = vmatprep.subr.mxu0 %v78
  %478 = vmatpush1.msra.mxu0 %v77
  %479 = vmatprep.subr.mxu0 0.0
  %480 = vmatpush1.msra.mxu0 0.0
  %481 = vmatprep.subr.mxu0 0.0
  %482 = vmatpush1.msra.mxu0 0.0
  %483 = vmatprep.subr.mxu0 0.0
  %484 = vmatpush1.msra.mxu0 0.0
  %485 = vmatprep.subr.mxu0 0.0
  %486 = vmatpush1.msra.mxu0 0.0
  %487 = vmatprep.subr.mxu0 0.0
  %488 = vmatpush1.msra.mxu0 0.0
  %489 = vmatprep.subr.mxu0 0.0
  %490 = vmatpush1.msra.mxu0 0.0
  %491 = vmatprep.subr.mxu0 0.0
  %492 = vmatpush1.msra.mxu0 0.0
  %493 = vmatprep.subr.mxu0 0.0
  %494 = vmatpush1.msra.mxu0 0.0
  %495 = vmatprep.subr.mxu0 0.0
  %496 = vmatpush1.msra.mxu0 0.0
  %497 = vmatprep.subr.mxu0 0.0
  %498 = vmatpush1.msra.mxu0 0.0
  %499 = vmatprep.subr.mxu0 0.0
  %500 = vmatpush1.msra.mxu0 0.0
  %501 = vmatprep.subr.mxu0 0.0
  %502 = vmatpush1.msra.mxu0 0.0
  %503 = vmatprep.subr.mxu0 0.0
  %504 = vmatpush1.msra.mxu0 0.0
  %505 = vmatprep.subr.mxu0 0.0
  %506 = vmatpush1.msra.mxu0 0.0
  %507 = vmatprep.subr.mxu0 0.0
  %508 = vmatpush1.msra.mxu0 0.0
  %509 = vmatprep.subr.mxu0 0.0
  %510 = vmatpush1.msra.mxu0 0.0
  %511 = vmatprep.mubr.f32.mxu0 0.0
  %512 = vmatmul.mubr.f32.gmra.mrb[0].mxu0 %v446
  %v513 = vpop.f32.mrb[0].mxu0
  %v514 = vadd.f32 0.0, %v513
  %v515 = vpop.f32.mrb[0].mxu0
  %v516 = vadd.f32 0.0, %v515
  %517 = vdwg.mxu0
  %518 = vmatprep.subr.mxu0 %v20
  %519 = vmatpush1.msra.mxu0 %v19
  %520 = vmatprep.subr.mxu0 %v24
  %521 = vmatpush1.msra.mxu0 %v23
  %522 = vmatprep.subr.mxu0 %v28
  %523 = vmatpush1.msra.mxu0 %v27
  %524 = vmatprep.subr.mxu0 %v32
  %525 = vmatpush1.msra.mxu0 %v31
  %526 = vmatprep.subr.mxu0 %v36
  %527 = vmatpush1.msra.mxu0 %v35
  %528 = vmatprep.subr.mxu0 %v40
  %529 = vmatpush1.msra.mxu0 %v39
  %530 = vmatprep.subr.mxu0 %v44
  %531 = vmatpush1.msra.mxu0 %v43
  %532 = vmatprep.subr.mxu0 %v48
  %533 = vmatpush1.msra.mxu0 %v47
  %534 = vmatprep.subr.mxu0 %v52
  %535 = vmatpush1.msra.mxu0 %v51
  %536 = vmatprep.subr.mxu0 %v56
  %537 = vmatpush1.msra.mxu0 %v55
  %538 = vmatprep.subr.mxu0 %v60
  %539 = vmatpush1.msra.mxu0 %v59
  %540 = vmatprep.subr.mxu0 %v64
  %541 = vmatpush1.msra.mxu0 %v63
  %542 = vmatprep.subr.mxu0 %v68
  %543 = vmatpush1.msra.mxu0 %v67
  %544 = vmatprep.subr.mxu0 %v72
  %545 = vmatpush1.msra.mxu0 %v71
  %546 = vmatprep.subr.mxu0 %v76
  %547 = vmatpush1.msra.mxu0 %v75
  %548 = vmatprep.subr.mxu0 %v80
  %549 = vmatpush1.msra.mxu0 %v79
  %550 = vmatprep.subr.mxu0 0.0
  %551 = vmatpush1.msra.mxu0 0.0
  %552 = vmatprep.subr.mxu0 0.0
  %553 = vmatpush1.msra.mxu0 0.0
  %554 = vmatprep.subr.mxu0 0.0
  %555 = vmatpush1.msra.mxu0 0.0
  %556 = vmatprep.subr.mxu0 0.0
  %557 = vmatpush1.msra.mxu0 0.0
  %558 = vmatprep.subr.mxu0 0.0
  %559 = vmatpush1.msra.mxu0 0.0
  %560 = vmatprep.subr.mxu0 0.0
  %561 = vmatpush1.msra.mxu0 0.0
  %562 = vmatprep.subr.mxu0 0.0
  %563 = vmatpush1.msra.mxu0 0.0
  %564 = vmatprep.subr.mxu0 0.0
  %565 = vmatpush1.msra.mxu0 0.0
  %566 = vmatprep.subr.mxu0 0.0
  %567 = vmatpush1.msra.mxu0 0.0
  %568 = vmatprep.subr.mxu0 0.0
  %569 = vmatpush1.msra.mxu0 0.0
  %570 = vmatprep.subr.mxu0 0.0
  %571 = vmatpush1.msra.mxu0 0.0
  %572 = vmatprep.subr.mxu0 0.0
  %573 = vmatpush1.msra.mxu0 0.0
  %574 = vmatprep.subr.mxu0 0.0
  %575 = vmatpush1.msra.mxu0 0.0
  %576 = vmatprep.subr.mxu0 0.0
  %577 = vmatpush1.msra.mxu0 0.0
  %578 = vmatprep.subr.mxu0 0.0
  %579 = vmatpush1.msra.mxu0 0.0
  %580 = vmatprep.subr.mxu0 0.0
  %581 = vmatpush1.msra.mxu0 0.0
  %582 = vmatprep.mubr.f32.mxu0 0.0
  %583 = vmatmul.mubr.f32.gmra.mrb[0].mxu0 %v446
  %v584 = vpop.f32.mrb[0].mxu0
  %v585 = vadd.f32 0.0, %v584
  %v586 = vpop.f32.mrb[0].mxu0
  %v587 = vadd.f32 0.0, %v586
  %588 = vdwg.mxu0
  %v589 = vadd.f32 %v442, %v514
  %v590 = vadd.f32 %v443, %v516
  %v591 = vadd.f32 %v444, %v585
  %v592 = vadd.f32 %v445, %v587
  %v593 = vxor.u32 %v589, 2147483648
  %v594 = vmul.f32 %v593, 1.442695
  %v595 = vpow.pop %v594
  %v596 = vadd.f32 %v595, 1.0
  %v597 = vrcp.pop %v596
  %v598 = vmul.f32 1.0, %v597
  %v599 = vxor.u32 %v590, 2147483648
  %v600 = vmul.f32 %v599, 1.442695
  %v601 = vpow.pop %v600
  %v602 = vadd.f32 %v601, 1.0
  %v603 = vrcp.pop %v602
  %v604 = vmul.f32 1.0, %v603
  %v605 = vtanh.pop %v591
  %v606 = vxor.u32 %v592, 2147483648
  %v607 = vmul.f32 %v606, 1.442695
  %v608 = vpow.pop %v607
  %v609 = vadd.f32 %v608, 1.0
  %v610 = vrcp.pop %v609
  %v611 = vmul.f32 1.0, %v610
  %v612 = vld [vmem:[#allocation3] sm:$0xff]
  %v613 = vmul.f32 %v604, %v612
  %v614 = vmul.f32 %v598, %v605
  %v615 = vadd.f32 %v613, %v614
  %v616 = vtanh.pop %v615
  %v617 = vmul.f32 %v611, %v616
  %618 = vst [vmem:[#allocation3] sm:$0xff] %v615
  %619 = vst [vmem:[#allocation2] sm:$0xff] %v617
  %s620 = scalar_lea.vmem %s2, 16
  %621 = vst [vmem:[%s620] sm:$0xff] %v617
  %s622 = scalar_lea.vmem %s0, 96
  %v623 = vld [vmem:[%s622] sm:$0xff]
  %v624 = vld [vmem:[%s622 + $0x8] sm:$0xff]
  %v625 = vld [vmem:[%s622 + $0x10] sm:$0xff]
  %v626 = vld [vmem:[%s622 + $0x18] sm:$0xff]
  %v627 = vld [vmem:[#allocation2] sm:$0xff]
  %628 = vmatprep.subr.mxu0 %v18
  %629 = vmatpush1.msra.mxu0 %v17
  %630 = vmatprep.subr.mxu0 %v22
  %631 = vmatpush1.msra.mxu0 %v21
  %632 = vmatprep.subr.mxu0 %v26
  %633 = vmatpush1.msra.mxu0 %v25
  %634 = vmatprep.subr.mxu0 %v30
  %635 = vmatpush1.msra.mxu0 %v29
  %636 = vmatprep.subr.mxu0 %v34
  %637 = vmatpush1.msra.mxu0 %v33
  %638 = vmatprep.subr.mxu0 %v38
  %639 = vmatpush1.msra.mxu0 %v37
  %640 = vmatprep.subr.mxu0 %v42
  %641 = vmatpush1.msra.mxu0 %v41
  %642 = vmatprep.subr.mxu0 %v46
  %643 = vmatpush1.msra.mxu0 %v45
  %644 = vmatprep.subr.mxu0 %v50
  %645 = vmatpush1.msra.mxu0 %v49
  %646 = vmatprep.subr.mxu0 %v54
  %647 = vmatpush1.msra.mxu0 %v53
  %648 = vmatprep.subr.mxu0 %v58
  %649 = vmatpush1.msra.mxu0 %v57
  %650 = vmatprep.subr.mxu0 %v62
  %651 = vmatpush1.msra.mxu0 %v61
  %652 = vmatprep.subr.mxu0 %v66
  %653 = vmatpush1.msra.mxu0 %v65
  %654 = vmatprep.subr.mxu0 %v70
  %655 = vmatpush1.msra.mxu0 %v69
  %656 = vmatprep.subr.mxu0 %v74
  %657 = vmatpush1.msra.mxu0 %v73
  %658 = vmatprep.subr.mxu0 %v78
  %659 = vmatpush1.msra.mxu0 %v77
  %660 = vmatprep.subr.mxu0 0.0
  %661 = vmatpush1.msra.mxu0 0.0
  %662 = vmatprep.subr.mxu0 0.0
  %663 = vmatpush1.msra.mxu0 0.0
  %664 = vmatprep.subr.mxu0 0.0
  %665 = vmatpush1.msra.mxu0 0.0
  %666 = vmatprep.subr.mxu0 0.0
  %667 = vmatpush1.msra.mxu0 0.0
  %668 = vmatprep.subr.mxu0 0.0
  %669 = vmatpush1.msra.mxu0 0.0
  %670 = vmatprep.subr.mxu0 0.0
  %671 = vmatpush1.msra.mxu0 0.0
  %672 = vmatprep.subr.mxu0 0.0
  %673 = vmatpush1.msra.mxu0 0.0
  %674 = vmatprep.subr.mxu0 0.0
  %675 = vmatpush1.msra.mxu0 0.0
  %676 = vmatprep.subr.mxu0 0.0
  %677 = vmatpush1.msra.mxu0 0.0
  %678 = vmatprep.subr.mxu0 0.0
  %679 = vmatpush1.msra.mxu0 0.0
  %680 = vmatprep.subr.mxu0 0.0
  %681 = vmatpush1.msra.mxu0 0.0
  %682 = vmatprep.subr.mxu0 0.0
  %683 = vmatpush1.msra.mxu0 0.0
  %684 = vmatprep.subr.mxu0 0.0
  %685 = vmatpush1.msra.mxu0 0.0
  %686 = vmatprep.subr.mxu0 0.0
  %687 = vmatpush1.msra.mxu0 0.0
  %688 = vmatprep.subr.mxu0 0.0
  %689 = vmatpush1.msra.mxu0 0.0
  %690 = vmatprep.subr.mxu0 0.0
  %691 = vmatpush1.msra.mxu0 0.0
  %692 = vmatprep.mubr.f32.mxu0 0.0
  %693 = vmatmul.mubr.f32.gmra.mrb[0].mxu0 %v627
  %v694 = vpop.f32.mrb[0].mxu0
  %v695 = vadd.f32 0.0, %v694
  %v696 = vpop.f32.mrb[0].mxu0
  %v697 = vadd.f32 0.0, %v696
  %698 = vdwg.mxu0
  %699 = vmatprep.subr.mxu0 %v20
  %700 = vmatpush1.msra.mxu0 %v19
  %701 = vmatprep.subr.mxu0 %v24
  %702 = vmatpush1.msra.mxu0 %v23
  %703 = vmatprep.subr.mxu0 %v28
  %704 = vmatpush1.msra.mxu0 %v27
  %705 = vmatprep.subr.mxu0 %v32
  %706 = vmatpush1.msra.mxu0 %v31
  %707 = vmatprep.subr.mxu0 %v36
  %708 = vmatpush1.msra.mxu0 %v35
  %709 = vmatprep.subr.mxu0 %v40
  %710 = vmatpush1.msra.mxu0 %v39
  %711 = vmatprep.subr.mxu0 %v44
  %712 = vmatpush1.msra.mxu0 %v43
  %713 = vmatprep.subr.mxu0 %v48
  %714 = vmatpush1.msra.mxu0 %v47
  %715 = vmatprep.subr.mxu0 %v52
  %716 = vmatpush1.msra.mxu0 %v51
  %717 = vmatprep.subr.mxu0 %v56
  %718 = vmatpush1.msra.mxu0 %v55
  %719 = vmatprep.subr.mxu0 %v60
  %720 = vmatpush1.msra.mxu0 %v59
  %721 = vmatprep.subr.mxu0 %v64
  %722 = vmatpush1.msra.mxu0 %v63
  %723 = vmatprep.subr.mxu0 %v68
  %724 = vmatpush1.msra.mxu0 %v67
  %725 = vmatprep.subr.mxu0 %v72
  %726 = vmatpush1.msra.mxu0 %v71
  %727 = vmatprep.subr.mxu0 %v76
  %728 = vmatpush1.msra.mxu0 %v75
  %729 = vmatprep.subr.mxu0 %v80
  %730 = vmatpush1.msra.mxu0 %v79
  %731 = vmatprep.subr.mxu0 0.0
  %732 = vmatpush1.msra.mxu0 0.0
  %733 = vmatprep.subr.mxu0 0.0
  %734 = vmatpush1.msra.mxu0 0.0
  %735 = vmatprep.subr.mxu0 0.0
  %736 = vmatpush1.msra.mxu0 0.0
  %737 = vmatprep.subr.mxu0 0.0
  %738 = vmatpush1.msra.mxu0 0.0
  %739 = vmatprep.subr.mxu0 0.0
  %740 = vmatpush1.msra.mxu0 0.0
  %741 = vmatprep.subr.mxu0 0.0
  %742 = vmatpush1.msra.mxu0 0.0
  %743 = vmatprep.subr.mxu0 0.0
  %744 = vmatpush1.msra.mxu0 0.0
  %745 = vmatprep.subr.mxu0 0.0
  %746 = vmatpush1.msra.mxu0 0.0
  %747 = vmatprep.subr.mxu0 0.0
  %748 = vmatpush1.msra.mxu0 0.0
  %749 = vmatprep.subr.mxu0 0.0
  %750 = vmatpush1.msra.mxu0 0.0
  %751 = vmatprep.subr.mxu0 0.0
  %752 = vmatpush1.msra.mxu0 0.0
  %753 = vmatprep.subr.mxu0 0.0
  %754 = vmatpush1.msra.mxu0 0.0
  %755 = vmatprep.subr.mxu0 0.0
  %756 = vmatpush1.msra.mxu0 0.0
  %757 = vmatprep.subr.mxu0 0.0
  %758 = vmatpush1.msra.mxu0 0.0
  %759 = vmatprep.subr.mxu0 0.0
  %760 = vmatpush1.msra.mxu0 0.0
  %761 = vmatprep.subr.mxu0 0.0
  %762 = vmatpush1.msra.mxu0 0.0
  %763 = vmatprep.mubr.f32.mxu0 0.0
  %764 = vmatmul.mubr.f32.gmra.mrb[0].mxu0 %v627
  %v765 = vpop.f32.mrb[0].mxu0
  %v766 = vadd.f32 0.0, %v765
  %v767 = vpop.f32.mrb[0].mxu0
  %v768 = vadd.f32 0.0, %v767
  %769 = vdwg.mxu0
  %v770 = vadd.f32 %v623, %v695
  %v771 = vadd.f32 %v624, %v697
  %v772 = vadd.f32 %v625, %v766
  %v773 = vadd.f32 %v626, %v768
  %v774 = vxor.u32 %v770, 2147483648
  %v775 = vmul.f32 %v774, 1.442695
  %v776 = vpow.pop %v775
  %v777 = vadd.f32 %v776, 1.0
  %v778 = vrcp.pop %v777
  %v779 = vmul.f32 1.0, %v778
  %v780 = vxor.u32 %v771, 2147483648
  %v781 = vmul.f32 %v780, 1.442695
  %v782 = vpow.pop %v781
  %v783 = vadd.f32 %v782, 1.0
  %v784 = vrcp.pop %v783
  %v785 = vmul.f32 1.0, %v784
  %v786 = vtanh.pop %v772
  %v787 = vxor.u32 %v773, 2147483648
  %v788 = vmul.f32 %v787, 1.442695
  %v789 = vpow.pop %v788
  %v790 = vadd.f32 %v789, 1.0
  %v791 = vrcp.pop %v790
  %v792 = vmul.f32 1.0, %v791
  %v793 = vld [vmem:[#allocation3] sm:$0xff]
  %v794 = vmul.f32 %v785, %v793
  %v795 = vmul.f32 %v779, %v786
  %v796 = vadd.f32 %v794, %v795
  %v797 = vtanh.pop %v796
  %v798 = vmul.f32 %v792, %v797
  %799 = vst [vmem:[#allocation3] sm:$0xff] %v796
  %800 = vst [vmem:[#allocation2] sm:$0xff] %v798
  %s801 = scalar_lea.vmem %s2, 24
  %802 = vst [vmem:[%s801] sm:$0xff] %v798
  %s803 = scalar_lea.vmem %s0, 128
  %v804 = vld [vmem:[%s803] sm:$0xff]
  %v805 = vld [vmem:[%s803 + $0x8] sm:$0xff]
  %v806 = vld [vmem:[%s803 + $0x10] sm:$0xff]
  %v807 = vld [vmem:[%s803 + $0x18] sm:$0xff]
  %v808 = vld [vmem:[#allocation2] sm:$0xff]
  %809 = vmatprep.subr.mxu0 %v18
  %810 = vmatpush1.msra.mxu0 %v17
  %811 = vmatprep.subr.mxu0 %v22
  %812 = vmatpush1.msra.mxu0 %v21
  %813 = vmatprep.subr.mxu0 %v26
  %814 = vmatpush1.msra.mxu0 %v25
  %815 = vmatprep.subr.mxu0 %v30
  %816 = vmatpush1.msra.mxu0 %v29
  %817 = vmatprep.subr.mxu0 %v34
  %818 = vmatpush1.msra.mxu0 %v33
  %819 = vmatprep.subr.mxu0 %v38
  %820 = vmatpush1.msra.mxu0 %v37
  %821 = vmatprep.subr.mxu0 %v42
  %822 = vmatpush1.msra.mxu0 %v41
  %823 = vmatprep.subr.mxu0 %v46
  %824 = vmatpush1.msra.mxu0 %v45
  %825 = vmatprep.subr.mxu0 %v50
  %826 = vmatpush1.msra.mxu0 %v49
  %827 = vmatprep.subr.mxu0 %v54
  %828 = vmatpush1.msra.mxu0 %v53
  %829 = vmatprep.subr.mxu0 %v58
  %830 = vmatpush1.msra.mxu0 %v57
  %831 = vmatprep.subr.mxu0 %v62
  %832 = vmatpush1.msra.mxu0 %v61
  %833 = vmatprep.subr.mxu0 %v66
  %834 = vmatpush1.msra.mxu0 %v65
  %835 = vmatprep.subr.mxu0 %v70
  %836 = vmatpush1.msra.mxu0 %v69
  %837 = vmatprep.subr.mxu0 %v74
  %838 = vmatpush1.msra.mxu0 %v73
  %839 = vmatprep.subr.mxu0 %v78
  %840 = vmatpush1.msra.mxu0 %v77
  %841 = vmatprep.subr.mxu0 0.0
  %842 = vmatpush1.msra.mxu0 0.0
  %843 = vmatprep.subr.mxu0 0.0
  %844 = vmatpush1.msra.mxu0 0.0
  %845 = vmatprep.subr.mxu0 0.0
  %846 = vmatpush1.msra.mxu0 0.0
  %847 = vmatprep.subr.mxu0 0.0
  %848 = vmatpush1.msra.mxu0 0.0
  %849 = vmatprep.subr.mxu0 0.0
  %850 = vmatpush1.msra.mxu0 0.0
  %851 = vmatprep.subr.mxu0 0.0
  %852 = vmatpush1.msra.mxu0 0.0
  %853 = vmatprep.subr.mxu0 0.0
  %854 = vmatpush1.msra.mxu0 0.0
  %855 = vmatprep.subr.mxu0 0.0
  %856 = vmatpush1.msra.mxu0 0.0
  %857 = vmatprep.subr.mxu0 0.0
  %858 = vmatpush1.msra.mxu0 0.0
  %859 = vmatprep.subr.mxu0 0.0
  %860 = vmatpush1.msra.mxu0 0.0
  %861 = vmatprep.subr.mxu0 0.0
  %862 = vmatpush1.msra.mxu0 0.0
  %863 = vmatprep.subr.mxu0 0.0
  %864 = vmatpush1.msra.mxu0 0.0
  %865 = vmatprep.subr.mxu0 0.0
  %866 = vmatpush1.msra.mxu0 0.0
  %867 = vmatprep.subr.mxu0 0.0
  %868 = vmatpush1.msra.mxu0 0.0
  %869 = vmatprep.subr.mxu0 0.0
  %870 = vmatpush1.msra.mxu0 0.0
  %871 = vmatprep.subr.mxu0 0.0
  %872 = vmatpush1.msra.mxu0 0.0
  %873 = vmatprep.mubr.f32.mxu0 0.0
  %874 = vmatmul.mubr.f32.gmra.mrb[0].mxu0 %v808
  %v875 = vpop.f32.mrb[0].mxu0
  %v876 = vadd.f32 0.0, %v875
  %v877 = vpop.f32.mrb[0].mxu0
  %v878 = vadd.f32 0.0, %v877
  %879 = vdwg.mxu0
  %880 = vmatprep.subr.mxu0 %v20
  %881 = vmatpush1.msra.mxu0 %v19
  %882 = vmatprep.subr.mxu0 %v24
  %883 = vmatpush1.msra.mxu0 %v23
  %884 = vmatprep.subr.mxu0 %v28
  %885 = vmatpush1.msra.mxu0 %v27
  %886 = vmatprep.subr.mxu0 %v32
  %887 = vmatpush1.msra.mxu0 %v31
  %888 = vmatprep.subr.mxu0 %v36
  %889 = vmatpush1.msra.mxu0 %v35
  %890 = vmatprep.subr.mxu0 %v40
  %891 = vmatpush1.msra.mxu0 %v39
  %892 = vmatprep.subr.mxu0 %v44
  %893 = vmatpush1.msra.mxu0 %v43
  %894 = vmatprep.subr.mxu0 %v48
  %895 = vmatpush1.msra.mxu0 %v47
  %896 = vmatprep.subr.mxu0 %v52
  %897 = vmatpush1.msra.mxu0 %v51
  %898 = vmatprep.subr.mxu0 %v56
  %899 = vmatpush1.msra.mxu0 %v55
  %900 = vmatprep.subr.mxu0 %v60
  %901 = vmatpush1.msra.mxu0 %v59
  %902 = vmatprep.subr.mxu0 %v64
  %903 = vmatpush1.msra.mxu0 %v63
  %904 = vmatprep.subr.mxu0 %v68
  %905 = vmatpush1.msra.mxu0 %v67
  %906 = vmatprep.subr.mxu0 %v72
  %907 = vmatpush1.msra.mxu0 %v71
  %908 = vmatprep.subr.mxu0 %v76
  %909 = vmatpush1.msra.mxu0 %v75
  %910 = vmatprep.subr.mxu0 %v80
  %911 = vmatpush1.msra.mxu0 %v79
  %912 = vmatprep.subr.mxu0 0.0
  %913 = vmatpush1.msra.mxu0 0.0
  %914 = vmatprep.subr.mxu0 0.0
  %915 = vmatpush1.msra.mxu0 0.0
  %916 = vmatprep.subr.mxu0 0.0
  %917 = vmatpush1.msra.mxu0 0.0
  %918 = vmatprep.subr.mxu0 0.0
  %919 = vmatpush1.msra.mxu0 0.0
  %920 = vmatprep.subr.mxu0 0.0
  %921 = vmatpush1.msra.mxu0 0.0
  %922 = vmatprep.subr.mxu0 0.0
  %923 = vmatpush1.msra.mxu0 0.0
  %924 = vmatprep.subr.mxu0 0.0
  %925 = vmatpush1.msra.mxu0 0.0
  %926 = vmatprep.subr.mxu0 0.0
  %927 = vmatpush1.msra.mxu0 0.0
  %928 = vmatprep.subr.mxu0 0.0
  %929 = vmatpush1.msra.mxu0 0.0
  %930 = vmatprep.subr.mxu0 0.0
  %931 = vmatpush1.msra.mxu0 0.0
  %932 = vmatprep.subr.mxu0 0.0
  %933 = vmatpush1.msra.mxu0 0.0
  %934 = vmatprep.subr.mxu0 0.0
  %935 = vmatpush1.msra.mxu0 0.0
  %936 = vmatprep.subr.mxu0 0.0
  %937 = vmatpush1.msra.mxu0 0.0
  %938 = vmatprep.subr.mxu0 0.0
  %939 = vmatpush1.msra.mxu0 0.0
  %940 = vmatprep.subr.mxu0 0.0
  %941 = vmatpush1.msra.mxu0 0.0
  %942 = vmatprep.subr.mxu0 0.0
  %943 = vmatpush1.msra.mxu0 0.0
  %944 = vmatprep.mubr.f32.mxu0 0.0
  %945 = vmatmul.mubr.f32.gmra.mrb[0].mxu0 %v808
  %v946 = vpop.f32.mrb[0].mxu0
  %v947 = vadd.f32 0.0, %v946
  %v948 = vpop.f32.mrb[0].mxu0
  %v949 = vadd.f32 0.0, %v948
  %950 = vdwg.mxu0
  %v951 = vadd.f32 %v804, %v876
  %v952 = vadd.f32 %v805, %v878
  %v953 = vadd.f32 %v806, %v947
  %v954 = vadd.f32 %v807, %v949
  %v955 = vxor.u32 %v951, 2147483648
  %v956 = vmul.f32 %v955, 1.442695
  %v957 = vpow.pop %v956
  %v958 = vadd.f32 %v957, 1.0
  %v959 = vrcp.pop %v958
  %v960 = vmul.f32 1.0, %v959
  %v961 = vxor.u32 %v952, 2147483648
  %v962 = vmul.f32 %v961, 1.442695
  %v963 = vpow.pop %v962
  %v964 = vadd.f32 %v963, 1.0
  %v965 = vrcp.pop %v964
  %v966 = vmul.f32 1.0, %v965
  %v967 = vtanh.pop %v953
  %v968 = vxor.u32 %v954, 2147483648
  %v969 = vmul.f32 %v968, 1.442695
  %v970 = vpow.pop %v969
  %v971 = vadd.f32 %v970, 1.0
  %v972 = vrcp.pop %v971
  %v973 = vmul.f32 1.0, %v972
  %v974 = vld [vmem:[#allocation3] sm:$0xff]
  %v975 = vmul.f32 %v966, %v974
  %v976 = vmul.f32 %v960, %v967
  %v977 = vadd.f32 %v975, %v976
  %v978 = vtanh.pop %v977
  %v979 = vmul.f32 %v973, %v978
  %980 = vst [vmem:[#allocation3] sm:$0xff] %v977
  %981 = vst [vmem:[#allocation2] sm:$0xff] %v979
  %s982 = scalar_lea.vmem %s2, 32
  %983 = vst [vmem:[%s982] sm:$0xff] %v979
  %s984 = scalar_lea.vmem %s0, 160
  %v985 = vld [vmem:[%s984] sm:$0xff]
  %v986 = vld [vmem:[%s984 + $0x8] sm:$0xff]
  %v987 = vld [vmem:[%s984 + $0x10] sm:$0xff]
  %v988 = vld [vmem:[%s984 + $0x18] sm:$0xff]
  %v989 = vld [vmem:[#allocation2] sm:$0xff]
  %990 = vmatprep.subr.mxu0 %v18
  %991 = vmatpush1.msra.mxu0 %v17
  %992 = vmatprep.subr.mxu0 %v22
  %993 = vmatpush1.msra.mxu0 %v21
  %994 = vmatprep.subr.mxu0 %v26
  %995 = vmatpush1.msra.mxu0 %v25
  %996 = vmatprep.subr.mxu0 %v30
  %997 = vmatpush1.msra.mxu0 %v29
  %998 = vmatprep.subr.mxu0 %v34
  %999 = vmatpush1.msra.mxu0 %v33
  %1000 = vmatprep.subr.mxu0 %v38
  %1001 = vmatpush1.msra.mxu0 %v37
  %1002 = vmatprep.subr.mxu0 %v42
  %1003 = vmatpush1.msra.mxu0 %v41
  %1004 = vmatprep.subr.mxu0 %v46
  %1005 = vmatpush1.msra.mxu0 %v45
  %1006 = vmatprep.subr.mxu0 %v50
  %1007 = vmatpush1.msra.mxu0 %v49
  %1008 = vmatprep.subr.mxu0 %v54
  %1009 = vmatpush1.msra.mxu0 %v53
  %1010 = vmatprep.subr.mxu0 %v58
  %1011 = vmatpush1.msra.mxu0 %v57
  %1012 = vmatprep.subr.mxu0 %v62
  %1013 = vmatpush1.msra.mxu0 %v61
  %1014 = vmatprep.subr.mxu0 %v66
  %1015 = vmatpush1.msra.mxu0 %v65
  %1016 = vmatprep.subr.mxu0 %v70
  %1017 = vmatpush1.msra.mxu0 %v69
  %1018 = vmatprep.subr.mxu0 %v74
  %1019 = vmatpush1.msra.mxu0 %v73
  %1020 = vmatprep.subr.mxu0 %v78
  %1021 = vmatpush1.msra.mxu0 %v77
  %1022 = vmatprep.subr.mxu0 0.0
  %1023 = vmatpush1.msra.mxu0 0.0
  %1024 = vmatprep.subr.mxu0 0.0
  %1025 = vmatpush1.msra.mxu0 0.0
  %1026 = vmatprep.subr.mxu0 0.0
  %1027 = vmatpush1.msra.mxu0 0.0
  %1028 = vmatprep.subr.mxu0 0.0
  %1029 = vmatpush1.msra.mxu0 0.0
  %1030 = vmatprep.subr.mxu0 0.0
  %1031 = vmatpush1.msra.mxu0 0.0
  %1032 = vmatprep.subr.mxu0 0.0
  %1033 = vmatpush1.msra.mxu0 0.0
  %1034 = vmatprep.subr.mxu0 0.0
  %1035 = vmatpush1.msra.mxu0 0.0
  %1036 = vmatprep.subr.mxu0 0.0
  %1037 = vmatpush1.msra.mxu0 0.0
  %1038 = vmatprep.subr.mxu0 0.0
  %1039 = vmatpush1.msra.mxu0 0.0
  %1040 = vmatprep.subr.mxu0 0.0
  %1041 = vmatpush1.msra.mxu0 0.0
  %1042 = vmatprep.subr.mxu0 0.0
  %1043 = vmatpush1.msra.mxu0 0.0
  %1044 = vmatprep.subr.mxu0 0.0
  %1045 = vmatpush1.msra.mxu0 0.0
  %1046 = vmatprep.subr.mxu0 0.0
  %1047 = vmatpush1.msra.mxu0 0.0
  %1048 = vmatprep.subr.mxu0 0.0
  %1049 = vmatpush1.msra.mxu0 0.0
  %1050 = vmatprep.subr.mxu0 0.0
  %1051 = vmatpush1.msra.mxu0 0.0
  %1052 = vmatprep.subr.mxu0 0.0
  %1053 = vmatpush1.msra.mxu0 0.0
  %1054 = vmatprep.mubr.f32.mxu0 0.0
  %1055 = vmatmul.mubr.f32.gmra.mrb[0].mxu0 %v989
  %v1056 = vpop.f32.mrb[0].mxu0
  %v1057 = vadd.f32 0.0, %v1056
  %v1058 = vpop.f32.mrb[0].mxu0
  %v1059 = vadd.f32 0.0, %v1058
  %1060 = vdwg.mxu0
  %1061 = vmatprep.subr.mxu0 %v20
  %1062 = vmatpush1.msra.mxu0 %v19
  %1063 = vmatprep.subr.mxu0 %v24
  %1064 = vmatpush1.msra.mxu0 %v23
  %1065 = vmatprep.subr.mxu0 %v28
  %1066 = vmatpush1.msra.mxu0 %v27
  %1067 = vmatprep.subr.mxu0 %v32
  %1068 = vmatpush1.msra.mxu0 %v31
  %1069 = vmatprep.subr.mxu0 %v36
  %1070 = vmatpush1.msra.mxu0 %v35
  %1071 = vmatprep.subr.mxu0 %v40
  %1072 = vmatpush1.msra.mxu0 %v39
  %1073 = vmatprep.subr.mxu0 %v44
  %1074 = vmatpush1.msra.mxu0 %v43
  %1075 = vmatprep.subr.mxu0 %v48
  %1076 = vmatpush1.msra.mxu0 %v47
  %1077 = vmatprep.subr.mxu0 %v52
  %1078 = vmatpush1.msra.mxu0 %v51
  %1079 = vmatprep.subr.mxu0 %v56
  %1080 = vmatpush1.msra.mxu0 %v55
  %1081 = vmatprep.subr.mxu0 %v60
  %1082 = vmatpush1.msra.mxu0 %v59
  %1083 = vmatprep.subr.mxu0 %v64
  %1084 = vmatpush1.msra.mxu0 %v63
  %1085 = vmatprep.subr.mxu0 %v68
  %1086 = vmatpush1.msra.mxu0 %v67
  %1087 = vmatprep.subr.mxu0 %v72
  %1088 = vmatpush1.msra.mxu0 %v71
  %1089 = vmatprep.subr.mxu0 %v76
  %1090 = vmatpush1.msra.mxu0 %v75
  %1091 = vmatprep.subr.mxu0 %v80
  %1092 = vmatpush1.msra.mxu0 %v79
  %1093 = vmatprep.subr.mxu0 0.0
  %1094 = vmatpush1.msra.mxu0 0.0
  %1095 = vmatprep.subr.mxu0 0.0
  %1096 = vmatpush1.msra.mxu0 0.0
  %1097 = vmatprep.subr.mxu0 0.0
  %1098 = vmatpush1.msra.mxu0 0.0
  %1099 = vmatprep.subr.mxu0 0.0
  %1100 = vmatpush1.msra.mxu0 0.0
  %1101 = vmatprep.subr.mxu0 0.0
  %1102 = vmatpush1.msra.mxu0 0.0
  %1103 = vmatprep.subr.mxu0 0.0
  %1104 = vmatpush1.msra.mxu0 0.0
  %1105 = vmatprep.subr.mxu0 0.0
  %1106 = vmatpush1.msra.mxu0 0.0
  %1107 = vmatprep.subr.mxu0 0.0
  %1108 = vmatpush1.msra.mxu0 0.0
  %1109 = vmatprep.subr.mxu0 0.0
  %1110 = vmatpush1.msra.mxu0 0.0
  %1111 = vmatprep.subr.mxu0 0.0
  %1112 = vmatpush1.msra.mxu0 0.0
  %1113 = vmatprep.subr.mxu0 0.0
  %1114 = vmatpush1.msra.mxu0 0.0
  %1115 = vmatprep.subr.mxu0 0.0
  %1116 = vmatpush1.msra.mxu0 0.0
  %1117 = vmatprep.subr.mxu0 0.0
  %1118 = vmatpush1.msra.mxu0 0.0
  %1119 = vmatprep.subr.mxu0 0.0
  %1120 = vmatpush1.msra.mxu0 0.0
  %1121 = vmatprep.subr.mxu0 0.0
  %1122 = vmatpush1.msra.mxu0 0.0
  %1123 = vmatprep.subr.mxu0 0.0
  %1124 = vmatpush1.msra.mxu0 0.0
  %1125 = vmatprep.mubr.f32.mxu0 0.0
  %1126 = vmatmul.mubr.f32.gmra.mrb[0].mxu0 %v989
  %v1127 = vpop.f32.mrb[0].mxu0
  %v1128 = vadd.f32 0.0, %v1127
  %v1129 = vpop.f32.mrb[0].mxu0
  %v1130 = vadd.f32 0.0, %v1129
  %1131 = vdwg.mxu0
  %v1132 = vadd.f32 %v985, %v1057
  %v1133 = vadd.f32 %v986, %v1059
  %v1134 = vadd.f32 %v987, %v1128
  %v1135 = vadd.f32 %v988, %v1130
  %v1136 = vxor.u32 %v1132, 2147483648
  %v1137 = vmul.f32 %v1136, 1.442695
  %v1138 = vpow.pop %v1137
  %v1139 = vadd.f32 %v1138, 1.0
  %v1140 = vrcp.pop %v1139
  %v1141 = vmul.f32 1.0, %v1140
  %v1142 = vxor.u32 %v1133, 2147483648
  %v1143 = vmul.f32 %v1142, 1.442695
  %v1144 = vpow.pop %v1143
  %v1145 = vadd.f32 %v1144, 1.0
  %v1146 = vrcp.pop %v1145
  %v1147 = vmul.f32 1.0, %v1146
  %v1148 = vtanh.pop %v1134
  %v1149 = vxor.u32 %v1135, 2147483648
  %v1150 = vmul.f32 %v1149, 1.442695
  %v1151 = vpow.pop %v1150
  %v1152 = vadd.f32 %v1151, 1.0
  %v1153 = vrcp.pop %v1152
  %v1154 = vmul.f32 1.0, %v1153
  %v1155 = vld [vmem:[#allocation3] sm:$0xff]
  %v1156 = vmul.f32 %v1147, %v1155
  %v1157 = vmul.f32 %v1141, %v1148
  %v1158 = vadd.f32 %v1156, %v1157
  %v1159 = vtanh.pop %v1158
  %v1160 = vmul.f32 %v1154, %v1159
  %1161 = vst [vmem:[#allocation3] sm:$0xff] %v1158
  %1162 = vst [vmem:[#allocation2] sm:$0xff] %v1160
  %s1163 = scalar_lea.vmem %s2, 40
  %1164 = vst [vmem:[%s1163] sm:$0xff] %v1160
  %s1165 = scalar_lea.vmem %s0, 192
  %v1166 = vld [vmem:[%s1165] sm:$0xff]
  %v1167 = vld [vmem:[%s1165 + $0x8] sm:$0xff]
  %v1168 = vld [vmem:[%s1165 + $0x10] sm:$0xff]
  %v1169 = vld [vmem:[%s1165 + $0x18] sm:$0xff]
  %v1170 = vld [vmem:[#allocation2] sm:$0xff]
  %1171 = vmatprep.subr.mxu0 %v18
  %1172 = vmatpush1.msra.mxu0 %v17
  %1173 = vmatprep.subr.mxu0 %v22
  %1174 = vmatpush1.msra.mxu0 %v21
  %1175 = vmatprep.subr.mxu0 %v26
  %1176 = vmatpush1.msra.mxu0 %v25
  %1177 = vmatprep.subr.mxu0 %v30
  %1178 = vmatpush1.msra.mxu0 %v29
  %1179 = vmatprep.subr.mxu0 %v34
  %1180 = vmatpush1.msra.mxu0 %v33
  %1181 = vmatprep.subr.mxu0 %v38
  %1182 = vmatpush1.msra.mxu0 %v37
  %1183 = vmatprep.subr.mxu0 %v42
  %1184 = vmatpush1.msra.mxu0 %v41
  %1185 = vmatprep.subr.mxu0 %v46
  %1186 = vmatpush1.msra.mxu0 %v45
  %1187 = vmatprep.subr.mxu0 %v50
  %1188 = vmatpush1.msra.mxu0 %v49
  %1189 = vmatprep.subr.mxu0 %v54
  %1190 = vmatpush1.msra.mxu0 %v53
  %1191 = vmatprep.subr.mxu0 %v58
  %1192 = vmatpush1.msra.mxu0 %v57
  %1193 = vmatprep.subr.mxu0 %v62
  %1194 = vmatpush1.msra.mxu0 %v61
  %1195 = vmatprep.subr.mxu0 %v66
  %1196 = vmatpush1.msra.mxu0 %v65
  %1197 = vmatprep.subr.mxu0 %v70
  %1198 = vmatpush1.msra.mxu0 %v69
  %1199 = vmatprep.subr.mxu0 %v74
  %1200 = vmatpush1.msra.mxu0 %v73
  %1201 = vmatprep.subr.mxu0 %v78
  %1202 = vmatpush1.msra.mxu0 %v77
  %1203 = vmatprep.subr.mxu0 0.0
  %1204 = vmatpush1.msra.mxu0 0.0
  %1205 = vmatprep.subr.mxu0 0.0
  %1206 = vmatpush1.msra.mxu0 0.0
  %1207 = vmatprep.subr.mxu0 0.0
  %1208 = vmatpush1.msra.mxu0 0.0
  %1209 = vmatprep.subr.mxu0 0.0
  %1210 = vmatpush1.msra.mxu0 0.0
  %1211 = vmatprep.subr.mxu0 0.0
  %1212 = vmatpush1.msra.mxu0 0.0
  %1213 = vmatprep.subr.mxu0 0.0
  %1214 = vmatpush1.msra.mxu0 0.0
  %1215 = vmatprep.subr.mxu0 0.0
  %1216 = vmatpush1.msra.mxu0 0.0
  %1217 = vmatprep.subr.mxu0 0.0
  %1218 = vmatpush1.msra.mxu0 0.0
  %1219 = vmatprep.subr.mxu0 0.0
  %1220 = vmatpush1.msra.mxu0 0.0
  %1221 = vmatprep.subr.mxu0 0.0
  %1222 = vmatpush1.msra.mxu0 0.0
  %1223 = vmatprep.subr.mxu0 0.0
  %1224 = vmatpush1.msra.mxu0 0.0
  %1225 = vmatprep.subr.mxu0 0.0
  %1226 = vmatpush1.msra.mxu0 0.0
  %1227 = vmatprep.subr.mxu0 0.0
  %1228 = vmatpush1.msra.mxu0 0.0
  %1229 = vmatprep.subr.mxu0 0.0
  %1230 = vmatpush1.msra.mxu0 0.0
  %1231 = vmatprep.subr.mxu0 0.0
  %1232 = vmatpush1.msra.mxu0 0.0
  %1233 = vmatprep.subr.mxu0 0.0
  %1234 = vmatpush1.msra.mxu0 0.0
  %1235 = vmatprep.mubr.f32.mxu0 0.0
  %1236 = vmatmul.mubr.f32.gmra.mrb[0].mxu0 %v1170
  %v1237 = vpop.f32.mrb[0].mxu0
  %v1238 = vadd.f32 0.0, %v1237
  %v1239 = vpop.f32.mrb[0].mxu0
  %v1240 = vadd.f32 0.0, %v1239
  %1241 = vdwg.mxu0
  %1242 = vmatprep.subr.mxu0 %v20
  %1243 = vmatpush1.msra.mxu0 %v19
  %1244 = vmatprep.subr.mxu0 %v24
  %1245 = vmatpush1.msra.mxu0 %v23
  %1246 = vmatprep.subr.mxu0 %v28
  %1247 = vmatpush1.msra.mxu0 %v27
  %1248 = vmatprep.subr.mxu0 %v32
  %1249 = vmatpush1.msra.mxu0 %v31
  %1250 = vmatprep.subr.mxu0 %v36
  %1251 = vmatpush1.msra.mxu0 %v35
  %1252 = vmatprep.subr.mxu0 %v40
  %1253 = vmatpush1.msra.mxu0 %v39
  %1254 = vmatprep.subr.mxu0 %v44
  %1255 = vmatpush1.msra.mxu0 %v43
  %1256 = vmatprep.subr.mxu0 %v48
  %1257 = vmatpush1.msra.mxu0 %v47
  %1258 = vmatprep.subr.mxu0 %v52
  %1259 = vmatpush1.msra.mxu0 %v51
  %1260 = vmatprep.subr.mxu0 %v56
  %1261 = vmatpush1.msra.mxu0 %v55
  %1262 = vmatprep.subr.mxu0 %v60
  %1263 = vmatpush1.msra.mxu0 %v59
  %1264 = vmatprep.subr.mxu0 %v64
  %1265 = vmatpush1.msra.mxu0 %v63
  %1266 = vmatprep.subr.mxu0 %v68
  %1267 = vmatpush1.msra.mxu0 %v67
  %1268 = vmatprep.subr.mxu0 %v72
  %1269 = vmatpush1.msra.mxu0 %v71
  %1270 = vmatprep.subr.mxu0 %v76
  %1271 = vmatpush1.msra.mxu0 %v75
  %1272 = vmatprep.subr.mxu0 %v80
  %1273 = vmatpush1.msra.mxu0 %v79
  %1274 = vmatprep.subr.mxu0 0.0
  %1275 = vmatpush1.msra.mxu0 0.0
  %1276 = vmatprep.subr.mxu0 0.0
  %1277 = vmatpush1.msra.mxu0 0.0
  %1278 = vmatprep.subr.mxu0 0.0
  %1279 = vmatpush1.msra.mxu0 0.0
  %1280 = vmatprep.subr.mxu0 0.0
  %1281 = vmatpush1.msra.mxu0 0.0
  %1282 = vmatprep.subr.mxu0 0.0
  %1283 = vmatpush1.msra.mxu0 0.0
  %1284 = vmatprep.subr.mxu0 0.0
  %1285 = vmatpush1.msra.mxu0 0.0
  %1286 = vmatprep.subr.mxu0 0.0
  %1287 = vmatpush1.msra.mxu0 0.0
  %1288 = vmatprep.subr.mxu0 0.0
  %1289 = vmatpush1.msra.mxu0 0.0
  %1290 = vmatprep.subr.mxu0 0.0
  %1291 = vmatpush1.msra.mxu0 0.0
  %1292 = vmatprep.subr.mxu0 0.0
  %1293 = vmatpush1.msra.mxu0 0.0
  %1294 = vmatprep.subr.mxu0 0.0
  %1295 = vmatpush1.msra.mxu0 0.0
  %1296 = vmatprep.subr.mxu0 0.0
  %1297 = vmatpush1.msra.mxu0 0.0
  %1298 = vmatprep.subr.mxu0 0.0
  %1299 = vmatpush1.msra.mxu0 0.0
  %1300 = vmatprep.subr.mxu0 0.0
  %1301 = vmatpush1.msra.mxu0 0.0
  %1302 = vmatprep.subr.mxu0 0.0
  %1303 = vmatpush1.msra.mxu0 0.0
  %1304 = vmatprep.subr.mxu0 0.0
  %1305 = vmatpush1.msra.mxu0 0.0
  %1306 = vmatprep.mubr.f32.mxu0 0.0
  %1307 = vmatmul.mubr.f32.gmra.mrb[0].mxu0 %v1170
  %v1308 = vpop.f32.mrb[0].mxu0
  %v1309 = vadd.f32 0.0, %v1308
  %v1310 = vpop.f32.mrb[0].mxu0
  %v1311 = vadd.f32 0.0, %v1310
  %1312 = vdwg.mxu0
  %v1313 = vadd.f32 %v1166, %v1238
  %v1314 = vadd.f32 %v1167, %v1240
  %v1315 = vadd.f32 %v1168, %v1309
  %v1316 = vadd.f32 %v1169, %v1311
  %v1317 = vxor.u32 %v1313, 2147483648
  %v1318 = vmul.f32 %v1317, 1.442695
  %v1319 = vpow.pop %v1318
  %v1320 = vadd.f32 %v1319, 1.0
  %v1321 = vrcp.pop %v1320
  %v1322 = vmul.f32 1.0, %v1321
  %v1323 = vxor.u32 %v1314, 2147483648
  %v1324 = vmul.f32 %v1323, 1.442695
  %v1325 = vpow.pop %v1324
  %v1326 = vadd.f32 %v1325, 1.0
  %v1327 = vrcp.pop %v1326
  %v1328 = vmul.f32 1.0, %v1327
  %v1329 = vtanh.pop %v1315
  %v1330 = vxor.u32 %v1316, 2147483648
  %v1331 = vmul.f32 %v1330, 1.442695
  %v1332 = vpow.pop %v1331
  %v1333 = vadd.f32 %v1332, 1.0
  %v1334 = vrcp.pop %v1333
  %v1335 = vmul.f32 1.0, %v1334
  %v1336 = vld [vmem:[#allocation3] sm:$0xff]
  %v1337 = vmul.f32 %v1328, %v1336
  %v1338 = vmul.f32 %v1322, %v1329
  %v1339 = vadd.f32 %v1337, %v1338
  %v1340 = vtanh.pop %v1339
  %v1341 = vmul.f32 %v1335, %v1340
  %1342 = vst [vmem:[#allocation3] sm:$0xff] %v1339
  %1343 = vst [vmem:[#allocation2] sm:$0xff] %v1341
  %s1344 = scalar_lea.vmem %s2, 48
  %1345 = vst [vmem:[%s1344] sm:$0xff] %v1341
  %s1346 = scalar_lea.vmem %s0, 224
  %v1347 = vld [vmem:[%s1346] sm:$0xff]
  %v1348 = vld [vmem:[%s1346 + $0x8] sm:$0xff]
  %v1349 = vld [vmem:[%s1346 + $0x10] sm:$0xff]
  %v1350 = vld [vmem:[%s1346 + $0x18] sm:$0xff]
  %v1351 = vld [vmem:[#allocation2] sm:$0xff]
  %1352 = vmatprep.subr.mxu0 %v18
  %1353 = vmatpush1.msra.mxu0 %v17
  %1354 = vmatprep.subr.mxu0 %v22
  %1355 = vmatpush1.msra.mxu0 %v21
  %1356 = vmatprep.subr.mxu0 %v26
  %1357 = vmatpush1.msra.mxu0 %v25
  %1358 = vmatprep.subr.mxu0 %v30
  %1359 = vmatpush1.msra.mxu0 %v29
  %1360 = vmatprep.subr.mxu0 %v34
  %1361 = vmatpush1.msra.mxu0 %v33
  %1362 = vmatprep.subr.mxu0 %v38
  %1363 = vmatpush1.msra.mxu0 %v37
  %1364 = vmatprep.subr.mxu0 %v42
  %1365 = vmatpush1.msra.mxu0 %v41
  %1366 = vmatprep.subr.mxu0 %v46
  %1367 = vmatpush1.msra.mxu0 %v45
  %1368 = vmatprep.subr.mxu0 %v50
  %1369 = vmatpush1.msra.mxu0 %v49
  %1370 = vmatprep.subr.mxu0 %v54
  %1371 = vmatpush1.msra.mxu0 %v53
  %1372 = vmatprep.subr.mxu0 %v58
  %1373 = vmatpush1.msra.mxu0 %v57
  %1374 = vmatprep.subr.mxu0 %v62
  %1375 = vmatpush1.msra.mxu0 %v61
  %1376 = vmatprep.subr.mxu0 %v66
  %1377 = vmatpush1.msra.mxu0 %v65
  %1378 = vmatprep.subr.mxu0 %v70
  %1379 = vmatpush1.msra.mxu0 %v69
  %1380 = vmatprep.subr.mxu0 %v74
  %1381 = vmatpush1.msra.mxu0 %v73
  %1382 = vmatprep.subr.mxu0 %v78
  %1383 = vmatpush1.msra.mxu0 %v77
  %1384 = vmatprep.subr.mxu0 0.0
  %1385 = vmatpush1.msra.mxu0 0.0
  %1386 = vmatprep.subr.mxu0 0.0
  %1387 = vmatpush1.msra.mxu0 0.0
  %1388 = vmatprep.subr.mxu0 0.0
  %1389 = vmatpush1.msra.mxu0 0.0
  %1390 = vmatprep.subr.mxu0 0.0
  %1391 = vmatpush1.msra.mxu0 0.0
  %1392 = vmatprep.subr.mxu0 0.0
  %1393 = vmatpush1.msra.mxu0 0.0
  %1394 = vmatprep.subr.mxu0 0.0
  %1395 = vmatpush1.msra.mxu0 0.0
  %1396 = vmatprep.subr.mxu0 0.0
  %1397 = vmatpush1.msra.mxu0 0.0
  %1398 = vmatprep.subr.mxu0 0.0
  %1399 = vmatpush1.msra.mxu0 0.0
  %1400 = vmatprep.subr.mxu0 0.0
  %1401 = vmatpush1.msra.mxu0 0.0
  %1402 = vmatprep.subr.mxu0 0.0
  %1403 = vmatpush1.msra.mxu0 0.0
  %1404 = vmatprep.subr.mxu0 0.0
  %1405 = vmatpush1.msra.mxu0 0.0
  %1406 = vmatprep.subr.mxu0 0.0
  %1407 = vmatpush1.msra.mxu0 0.0
  %1408 = vmatprep.subr.mxu0 0.0
  %1409 = vmatpush1.msra.mxu0 0.0
  %1410 = vmatprep.subr.mxu0 0.0
  %1411 = vmatpush1.msra.mxu0 0.0
  %1412 = vmatprep.subr.mxu0 0.0
  %1413 = vmatpush1.msra.mxu0 0.0
  %1414 = vmatprep.subr.mxu0 0.0
  %1415 = vmatpush1.msra.mxu0 0.0
  %1416 = vmatprep.mubr.f32.mxu0 0.0
  %1417 = vmatmul.mubr.f32.gmra.mrb[0].mxu0 %v1351
  %v1418 = vpop.f32.mrb[0].mxu0
  %v1419 = vadd.f32 0.0, %v1418
  %v1420 = vpop.f32.mrb[0].mxu0
  %v1421 = vadd.f32 0.0, %v1420
  %1422 = vdwg.mxu0
  %1423 = vmatprep.subr.mxu0 %v20
  %1424 = vmatpush1.msra.mxu0 %v19
  %1425 = vmatprep.subr.mxu0 %v24
  %1426 = vmatpush1.msra.mxu0 %v23
  %1427 = vmatprep.subr.mxu0 %v28
  %1428 = vmatpush1.msra.mxu0 %v27
  %1429 = vmatprep.subr.mxu0 %v32
  %1430 = vmatpush1.msra.mxu0 %v31
  %1431 = vmatprep.subr.mxu0 %v36
  %1432 = vmatpush1.msra.mxu0 %v35
  %1433 = vmatprep.subr.mxu0 %v40
  %1434 = vmatpush1.msra.mxu0 %v39
  %1435 = vmatprep.subr.mxu0 %v44
  %1436 = vmatpush1.msra.mxu0 %v43
  %1437 = vmatprep.subr.mxu0 %v48
  %1438 = vmatpush1.msra.mxu0 %v47
  %1439 = vmatprep.subr.mxu0 %v52
  %1440 = vmatpush1.msra.mxu0 %v51
  %1441 = vmatprep.subr.mxu0 %v56
  %1442 = vmatpush1.msra.mxu0 %v55
  %1443 = vmatprep.subr.mxu0 %v60
  %1444 = vmatpush1.msra.mxu0 %v59
  %1445 = vmatprep.subr.mxu0 %v64
  %1446 = vmatpush1.msra.mxu0 %v63
  %1447 = vmatprep.subr.mxu0 %v68
  %1448 = vmatpush1.msra.mxu0 %v67
  %1449 = vmatprep.subr.mxu0 %v72
  %1450 = vmatpush1.msra.mxu0 %v71
  %1451 = vmatprep.subr.mxu0 %v76
  %1452 = vmatpush1.msra.mxu0 %v75
  %1453 = vmatprep.subr.mxu0 %v80
  %1454 = vmatpush1.msra.mxu0 %v79
  %1455 = vmatprep.subr.mxu0 0.0
  %1456 = vmatpush1.msra.mxu0 0.0
  %1457 = vmatprep.subr.mxu0 0.0
  %1458 = vmatpush1.msra.mxu0 0.0
  %1459 = vmatprep.subr.mxu0 0.0
  %1460 = vmatpush1.msra.mxu0 0.0
  %1461 = vmatprep.subr.mxu0 0.0
  %1462 = vmatpush1.msra.mxu0 0.0
  %1463 = vmatprep.subr.mxu0 0.0
  %1464 = vmatpush1.msra.mxu0 0.0
  %1465 = vmatprep.subr.mxu0 0.0
  %1466 = vmatpush1.msra.mxu0 0.0
  %1467 = vmatprep.subr.mxu0 0.0
  %1468 = vmatpush1.msra.mxu0 0.0
  %1469 = vmatprep.subr.mxu0 0.0
  %1470 = vmatpush1.msra.mxu0 0.0
  %1471 = vmatprep.subr.mxu0 0.0
  %1472 = vmatpush1.msra.mxu0 0.0
  %1473 = vmatprep.subr.mxu0 0.0
  %1474 = vmatpush1.msra.mxu0 0.0
  %1475 = vmatprep.subr.mxu0 0.0
  %1476 = vmatpush1.msra.mxu0 0.0
  %1477 = vmatprep.subr.mxu0 0.0
  %1478 = vmatpush1.msra.mxu0 0.0
  %1479 = vmatprep.subr.mxu0 0.0
  %1480 = vmatpush1.msra.mxu0 0.0
  %1481 = vmatprep.subr.mxu0 0.0
  %1482 = vmatpush1.msra.mxu0 0.0
  %1483 = vmatprep.subr.mxu0 0.0
  %1484 = vmatpush1.msra.mxu0 0.0
  %1485 = vmatprep.subr.mxu0 0.0
  %1486 = vmatpush1.msra.mxu0 0.0
  %1487 = vmatprep.mubr.f32.mxu0 0.0
  %1488 = vmatmul.mubr.f32.gmra.mrb[0].mxu0 %v1351
  %v1489 = vpop.f32.mrb[0].mxu0
  %v1490 = vadd.f32 0.0, %v1489
  %v1491 = vpop.f32.mrb[0].mxu0
  %v1492 = vadd.f32 0.0, %v1491
  %1493 = vdwg.mxu0
  %v1494 = vadd.f32 %v1347, %v1419
  %v1495 = vadd.f32 %v1348, %v1421
  %v1496 = vadd.f32 %v1349, %v1490
  %v1497 = vadd.f32 %v1350, %v1492
  %v1498 = vxor.u32 %v1494, 2147483648
  %v1499 = vmul.f32 %v1498, 1.442695
  %v1500 = vpow.pop %v1499
  %v1501 = vadd.f32 %v1500, 1.0
  %v1502 = vrcp.pop %v1501
  %v1503 = vmul.f32 1.0, %v1502
  %v1504 = vxor.u32 %v1495, 2147483648
  %v1505 = vmul.f32 %v1504, 1.442695
  %v1506 = vpow.pop %v1505
  %v1507 = vadd.f32 %v1506, 1.0
  %v1508 = vrcp.pop %v1507
  %v1509 = vmul.f32 1.0, %v1508
  %v1510 = vtanh.pop %v1496
  %v1511 = vxor.u32 %v1497, 2147483648
  %v1512 = vmul.f32 %v1511, 1.442695
  %v1513 = vpow.pop %v1512
  %v1514 = vadd.f32 %v1513, 1.0
  %v1515 = vrcp.pop %v1514
  %v1516 = vmul.f32 1.0, %v1515
  %v1517 = vld [vmem:[#allocation3] sm:$0xff]
  %v1518 = vmul.f32 %v1509, %v1517
  %v1519 = vmul.f32 %v1503, %v1510
  %v1520 = vadd.f32 %v1518, %v1519
  %v1521 = vtanh.pop %v1520
  %v1522 = vmul.f32 %v1516, %v1521
  %1523 = vst [vmem:[#allocation3] sm:$0xff] %v1520
  %1524 = vst [vmem:[#allocation2] sm:$0xff] %v1522
  %s1525 = scalar_lea.vmem %s2, 56
  %1526 = vst [vmem:[%s1525] sm:$0xff] %v1522
  // Predicated region
  $region14: #{lstm_model_forward.5} parent=0 // pred_check
    _
  $region15: #{lstm_model_forward.5} parent=0 // pred_check_branch
    %1528 = sbr.rel (0) target = $region17
  $region16: #{lstm_model_forward.5} parent=0 // pred_region
    _
  $region17: #{lstm_model_forward.5} parent=0 // pred_fallthru
    _
  // Predicated region
  $region18: #{lstm_model_forward.5} parent=0 // pred_check
    _
  $region19: #{lstm_model_forward.5} parent=0 // pred_check_branch
    %1530 = sbr.rel (0) target = $region21
  $region20: #{lstm_model_forward.5} parent=0 // pred_region
    _
  $region21: #{lstm_model_forward.5} parent=0 // pred_fallthru
    _

// kernel: lstm_model_forward.7
$region0: #{lstm_model_forward.7}
  #allocation0 [shape = 'u32[]', space=smem, size = 0x4, offset = 0x4, fixed_abs, tag = 'smem constant byte address 0x4 - core index']
  #allocation1 [shape = 'u32[144,128]{1,0:T(1,128)}', space=vmem, size = 0x12000, scoped, tag = 'internal scratch']
  #allocation2 [shape = 'f32[8,128]{1,0:T(8,128)}', space=vmem, size = 0x1000, scoped, tag = 'scratch operand']
  #allocation3 [shape = 'f32[8,128]{1,0:T(8,128)}', space=vmem, size = 0x1000, scoped, tag = 'scratch operand']
  %s0 = inlined_call_operand.vmem [shape: f32[8,8,512], index: 0, kind: input, shape index: {}]
  %s1 = inlined_call_operand.vmem [shape: f32[128,512], index: 1, kind: input, shape index: {}]
  %s2 = inlined_call_operand.vmem [shape: f32[128,128], index: 2, kind: input, shape index: {}]
  %s3 = inlined_call_operand.vmem [shape: f32[1,128], index: 3, kind: input, shape index: {}]
  %s4 = inlined_call_operand.vmem [shape: f32[8,128], index: 4, kind: output, shape index: {}]
  %s5 = sld [smem:[#allocation0]]
  $region34: #{lstm_model_forward.7} parent=0
    _
  %s7 = ssub.s32 1, %s5
  %s8 = scalar_select 0, %s7, %s5
  // Predicated region
  $region2: #{lstm_model_forward.7} parent=0 // pred_check
    _
  $region3: #{lstm_model_forward.7} parent=0 // pred_check_branch
    %10 = sbr.rel (0) target = $region5
  $region4: #{lstm_model_forward.7} parent=0 // pred_region
    _
  $region5: #{lstm_model_forward.7} parent=0 // pred_fallthru
    _
  // Predicated region
  $region6: #{lstm_model_forward.7} parent=0 // pred_check
    _
  $region7: #{lstm_model_forward.7} parent=0 // pred_check_branch
    %12 = sbr.rel (0) target = $region9
  $region8: #{lstm_model_forward.7} parent=0 // pred_region
    _
  $region9: #{lstm_model_forward.7} parent=0 // pred_fallthru
    _
  // Predicated region
  $region10: #{lstm_model_forward.7} parent=0 // pred_check
    _
  $region11: #{lstm_model_forward.7} parent=0 // pred_check_branch
    %14 = sbr.rel (0) target = $region13
  $region12: #{lstm_model_forward.7} parent=0 // pred_region
    _
  $region13: #{lstm_model_forward.7} parent=0 // pred_fallthru
    _
  // Predicated region
  $region14: #{lstm_model_forward.7} parent=0 // pred_check
    _
  $region15: #{lstm_model_forward.7} parent=0 // pred_check_branch
    %16 = sbr.rel (0) target = $region17
  $region16: #{lstm_model_forward.7} parent=0 // pred_region
    _
  $region17: #{lstm_model_forward.7} parent=0 // pred_fallthru
    _
  %p17 = scmp.eq.s32.totalorder 0, 0
  // Predicated region
  $region18: #{lstm_model_forward.7} parent=0 // pred_check
    %p18 = pneg %p17
  $region19: #{lstm_model_forward.7} parent=0 // pred_check_branch
    %20 = sbr.rel (%p18) target = $region21
  $region20: #{lstm_model_forward.7} parent=0 // pred_region
    %21 = vst [vmem:[#allocation2] sm:$0xff] 0.0
    %22 = vst [vmem:[#allocation3] sm:$0xff] 0.0
  $region21: #{lstm_model_forward.7} parent=0 // pred_fallthru
    _
  %v23 = vld [vmem:[%s1] sm:$0xff]
  %v24 = vld [vmem:[%s1 + $0x8] sm:$0xff]
  %v25 = vld [vmem:[%s1 + $0x10] sm:$0xff]
  %v26 = vld [vmem:[%s1 + $0x18] sm:$0xff]
  %v27 = vld [vmem:[%s1 + $0x20] sm:$0xff]
  %v28 = vld [vmem:[%s1 + $0x28] sm:$0xff]
  %v29 = vld [vmem:[%s1 + $0x30] sm:$0xff]
  %v30 = vld [vmem:[%s1 + $0x38] sm:$0xff]
  %v31 = vld [vmem:[%s1 + $0x40] sm:$0xff]
  %v32 = vld [vmem:[%s1 + $0x48] sm:$0xff]
  %v33 = vld [vmem:[%s1 + $0x50] sm:$0xff]
  %v34 = vld [vmem:[%s1 + $0x58] sm:$0xff]
  %v35 = vld [vmem:[%s1 + $0x60] sm:$0xff]
  %v36 = vld [vmem:[%s1 + $0x68] sm:$0xff]
  %v37 = vld [vmem:[%s1 + $0x70] sm:$0xff]
  %v38 = vld [vmem:[%s1 + $0x78] sm:$0xff]
  %v39 = vld [vmem:[%s1 + $0x80] sm:$0xff]
  %v40 = vld [vmem:[%s1 + $0x88] sm:$0xff]
  %v41 = vld [vmem:[%s1 + $0x90] sm:$0xff]
  %v42 = vld [vmem:[%s1 + $0x98] sm:$0xff]
  %v43 = vld [vmem:[%s1 + $0xa0] sm:$0xff]
  %v44 = vld [vmem:[%s1 + $0xa8] sm:$0xff]
  %v45 = vld [vmem:[%s1 + $0xb0] sm:$0xff]
  %v46 = vld [vmem:[%s1 + $0xb8] sm:$0xff]
  %v47 = vld [vmem:[%s1 + $0xc0] sm:$0xff]
  %v48 = vld [vmem:[%s1 + $0xc8] sm:$0xff]
  %v49 = vld [vmem:[%s1 + $0xd0] sm:$0xff]
  %v50 = vld [vmem:[%s1 + $0xd8] sm:$0xff]
  %v51 = vld [vmem:[%s1 + $0xe0] sm:$0xff]
  %v52 = vld [vmem:[%s1 + $0xe8] sm:$0xff]
  %v53 = vld [vmem:[%s1 + $0xf0] sm:$0xff]
  %v54 = vld [vmem:[%s1 + $0xf8] sm:$0xff]
  %v55 = vld [vmem:[%s1 + $0x100] sm:$0xff]
  %v56 = vld [vmem:[%s1 + $0x108] sm:$0xff]
  %v57 = vld [vmem:[%s1 + $0x110] sm:$0xff]
  %v58 = vld [vmem:[%s1 + $0x118] sm:$0xff]
  %v59 = vld [vmem:[%s1 + $0x120] sm:$0xff]
  %v60 = vld [vmem:[%s1 + $0x128] sm:$0xff]
  %v61 = vld [vmem:[%s1 + $0x130] sm:$0xff]
  %v62 = vld [vmem:[%s1 + $0x138] sm:$0xff]
  %v63 = vld [vmem:[%s1 + $0x140] sm:$0xff]
  %v64 = vld [vmem:[%s1 + $0x148] sm:$0xff]
  %v65 = vld [vmem:[%s1 + $0x150] sm:$0xff]
  %v66 = vld [vmem:[%s1 + $0x158] sm:$0xff]
  %v67 = vld [vmem:[%s1 + $0x160] sm:$0xff]
  %v68 = vld [vmem:[%s1 + $0x168] sm:$0xff]
  %v69 = vld [vmem:[%s1 + $0x170] sm:$0xff]
  %v70 = vld [vmem:[%s1 + $0x178] sm:$0xff]
  %v71 = vld [vmem:[%s1 + $0x180] sm:$0xff]
  %v72 = vld [vmem:[%s1 + $0x188] sm:$0xff]
  %v73 = vld [vmem:[%s1 + $0x190] sm:$0xff]
  %v74 = vld [vmem:[%s1 + $0x198] sm:$0xff]
  %v75 = vld [vmem:[%s1 + $0x1a0] sm:$0xff]
  %v76 = vld [vmem:[%s1 + $0x1a8] sm:$0xff]
  %v77 = vld [vmem:[%s1 + $0x1b0] sm:$0xff]
  %v78 = vld [vmem:[%s1 + $0x1b8] sm:$0xff]
  %v79 = vld [vmem:[%s1 + $0x1c0] sm:$0xff]
  %v80 = vld [vmem:[%s1 + $0x1c8] sm:$0xff]
  %v81 = vld [vmem:[%s1 + $0x1d0] sm:$0xff]
  %v82 = vld [vmem:[%s1 + $0x1d8] sm:$0xff]
  %v83 = vld [vmem:[%s1 + $0x1e0] sm:$0xff]
  %v84 = vld [vmem:[%s1 + $0x1e8] sm:$0xff]
  %v85 = vld [vmem:[%s1 + $0x1f0] sm:$0xff]
  %v86 = vld [vmem:[%s1 + $0x1f8] sm:$0xff]
  %v87 = vld [vmem:[%s0] sm:$0xff]
  %v88 = vld [vmem:[%s0 + $0x8] sm:$0xff]
  %v89 = vld [vmem:[%s0 + $0x10] sm:$0xff]
  %v90 = vld [vmem:[%s0 + $0x18] sm:$0xff]
  %v91 = vld [vmem:[#allocation2] sm:$0xff]
  %92 = vmatprep.subr.mxu0 %v24
  %93 = vmatpush1.msra.mxu0 %v23
  %94 = vmatprep.subr.mxu0 %v28
  %95 = vmatpush1.msra.mxu0 %v27
  %96 = vmatprep.subr.mxu0 %v32
  %97 = vmatpush1.msra.mxu0 %v31
  %98 = vmatprep.subr.mxu0 %v36
  %99 = vmatpush1.msra.mxu0 %v35
  %100 = vmatprep.subr.mxu0 %v40
  %101 = vmatpush1.msra.mxu0 %v39
  %102 = vmatprep.subr.mxu0 %v44
  %103 = vmatpush1.msra.mxu0 %v43
  %104 = vmatprep.subr.mxu0 %v48
  %105 = vmatpush1.msra.mxu0 %v47
  %106 = vmatprep.subr.mxu0 %v52
  %107 = vmatpush1.msra.mxu0 %v51
  %108 = vmatprep.subr.mxu0 %v56
  %109 = vmatpush1.msra.mxu0 %v55
  %110 = vmatprep.subr.mxu0 %v60
  %111 = vmatpush1.msra.mxu0 %v59
  %112 = vmatprep.subr.mxu0 %v64
  %113 = vmatpush1.msra.mxu0 %v63
  %114 = vmatprep.subr.mxu0 %v68
  %115 = vmatpush1.msra.mxu0 %v67
  %116 = vmatprep.subr.mxu0 %v72
  %117 = vmatpush1.msra.mxu0 %v71
  %118 = vmatprep.subr.mxu0 %v76
  %119 = vmatpush1.msra.mxu0 %v75
  %120 = vmatprep.subr.mxu0 %v80
  %121 = vmatpush1.msra.mxu0 %v79
  %122 = vmatprep.subr.mxu0 %v84
  %123 = vmatpush1.msra.mxu0 %v83
  %124 = vmatprep.subr.mxu0 0.0
  %125 = vmatpush1.msra.mxu0 0.0
  %126 = vmatprep.subr.mxu0 0.0
  %127 = vmatpush1.msra.mxu0 0.0
  %128 = vmatprep.subr.mxu0 0.0
  %129 = vmatpush1.msra.mxu0 0.0
  %130 = vmatprep.subr.mxu0 0.0
  %131 = vmatpush1.msra.mxu0 0.0
  %132 = vmatprep.subr.mxu0 0.0
  %133 = vmatpush1.msra.mxu0 0.0
  %134 = vmatprep.subr.mxu0 0.0
  %135 = vmatpush1.msra.mxu0 0.0
  %136 = vmatprep.subr.mxu0 0.0
  %137 = vmatpush1.msra.mxu0 0.0
  %138 = vmatprep.subr.mxu0 0.0
  %139 = vmatpush1.msra.mxu0 0.0
  %140 = vmatprep.subr.mxu0 0.0
  %141 = vmatpush1.msra.mxu0 0.0
  %142 = vmatprep.subr.mxu0 0.0
  %143 = vmatpush1.msra.mxu0 0.0
  %144 = vmatprep.subr.mxu0 0.0
  %145 = vmatpush1.msra.mxu0 0.0
  %146 = vmatprep.subr.mxu0 0.0
  %147 = vmatpush1.msra.mxu0 0.0
  %148 = vmatprep.subr.mxu0 0.0
  %149 = vmatpush1.msra.mxu0 0.0
  %150 = vmatprep.subr.mxu0 0.0
  %151 = vmatpush1.msra.mxu0 0.0
  %152 = vmatprep.subr.mxu0 0.0
  %153 = vmatpush1.msra.mxu0 0.0
  %154 = vmatprep.subr.mxu0 0.0
  %155 = vmatpush1.msra.mxu0 0.0
  %156 = vmatprep.mubr.f32.mxu0 0.0
  %157 = vmatmul.mubr.f32.gmra.mrb[0].mxu0 %v91
  %v158 = vpop.f32.mrb[0].mxu0
  %v159 = vadd.f32 0.0, %v158
  %v160 = vpop.f32.mrb[0].mxu0
  %v161 = vadd.f32 0.0, %v160
  %162 = vdwg.mxu0
  %163 = vmatprep.subr.mxu0 %v26
  %164 = vmatpush1.msra.mxu0 %v25
  %165 = vmatprep.subr.mxu0 %v30
  %166 = vmatpush1.msra.mxu0 %v29
  %167 = vmatprep.subr.mxu0 %v34
  %168 = vmatpush1.msra.mxu0 %v33
  %169 = vmatprep.subr.mxu0 %v38
  %170 = vmatpush1.msra.mxu0 %v37
  %171 = vmatprep.subr.mxu0 %v42
  %172 = vmatpush1.msra.mxu0 %v41
  %173 = vmatprep.subr.mxu0 %v46
  %174 = vmatpush1.msra.mxu0 %v45
  %175 = vmatprep.subr.mxu0 %v50
  %176 = vmatpush1.msra.mxu0 %v49
  %177 = vmatprep.subr.mxu0 %v54
  %178 = vmatpush1.msra.mxu0 %v53
  %179 = vmatprep.subr.mxu0 %v58
  %180 = vmatpush1.msra.mxu0 %v57
  %181 = vmatprep.subr.mxu0 %v62
  %182 = vmatpush1.msra.mxu0 %v61
  %183 = vmatprep.subr.mxu0 %v66
  %184 = vmatpush1.msra.mxu0 %v65
  %185 = vmatprep.subr.mxu0 %v70
  %186 = vmatpush1.msra.mxu0 %v69
  %187 = vmatprep.subr.mxu0 %v74
  %188 = vmatpush1.msra.mxu0 %v73
  %189 = vmatprep.subr.mxu0 %v78
  %190 = vmatpush1.msra.mxu0 %v77
  %191 = vmatprep.subr.mxu0 %v82
  %192 = vmatpush1.msra.mxu0 %v81
  %193 = vmatprep.subr.mxu0 %v86
  %194 = vmatpush1.msra.mxu0 %v85
  %195 = vmatprep.subr.mxu0 0.0
  %196 = vmatpush1.msra.mxu0 0.0
  %197 = vmatprep.subr.mxu0 0.0
  %198 = vmatpush1.msra.mxu0 0.0
  %199 = vmatprep.subr.mxu0 0.0
  %200 = vmatpush1.msra.mxu0 0.0
  %201 = vmatprep.subr.mxu0 0.0
  %202 = vmatpush1.msra.mxu0 0.0
  %203 = vmatprep.subr.mxu0 0.0
  %204 = vmatpush1.msra.mxu0 0.0
  %205 = vmatprep.subr.mxu0 0.0
  %206 = vmatpush1.msra.mxu0 0.0
  %207 = vmatprep.subr.mxu0 0.0
  %208 = vmatpush1.msra.mxu0 0.0
  %209 = vmatprep.subr.mxu0 0.0
  %210 = vmatpush1.msra.mxu0 0.0
  %211 = vmatprep.subr.mxu0 0.0
  %212 = vmatpush1.msra.mxu0 0.0
  %213 = vmatprep.subr.mxu0 0.0
  %214 = vmatpush1.msra.mxu0 0.0
  %215 = vmatprep.subr.mxu0 0.0
  %216 = vmatpush1.msra.mxu0 0.0
  %217 = vmatprep.subr.mxu0 0.0
  %218 = vmatpush1.msra.mxu0 0.0
  %219 = vmatprep.subr.mxu0 0.0
  %220 = vmatpush1.msra.mxu0 0.0
  %221 = vmatprep.subr.mxu0 0.0
  %222 = vmatpush1.msra.mxu0 0.0
  %223 = vmatprep.subr.mxu0 0.0
  %224 = vmatpush1.msra.mxu0 0.0
  %225 = vmatprep.subr.mxu0 0.0
  %226 = vmatpush1.msra.mxu0 0.0
  %227 = vmatprep.mubr.f32.mxu0 0.0
  %228 = vmatmul.mubr.f32.gmra.mrb[0].mxu0 %v91
  %v229 = vpop.f32.mrb[0].mxu0
  %v230 = vadd.f32 0.0, %v229
  %v231 = vpop.f32.mrb[0].mxu0
  %v232 = vadd.f32 0.0, %v231
  %233 = vdwg.mxu0
  %v234 = vadd.f32 %v87, %v159
  %v235 = vadd.f32 %v88, %v161
  %v236 = vadd.f32 %v89, %v230
  %v237 = vadd.f32 %v90, %v232
  %v238 = vxor.u32 %v234, 2147483648
  %v239 = vmul.f32 %v238, 1.442695
  %v240 = vpow.pop %v239
  %v241 = vadd.f32 %v240, 1.0
  %v242 = vrcp.pop %v241
  %v243 = vmul.f32 1.0, %v242
  %v244 = vxor.u32 %v235, 2147483648
  %v245 = vmul.f32 %v244, 1.442695
  %v246 = vpow.pop %v245
  %v247 = vadd.f32 %v246, 1.0
  %v248 = vrcp.pop %v247
  %v249 = vmul.f32 1.0, %v248
  %v250 = vtanh.pop %v236
  %v251 = vxor.u32 %v237, 2147483648
  %v252 = vmul.f32 %v251, 1.442695
  %v253 = vpow.pop %v252
  %v254 = vadd.f32 %v253, 1.0
  %v255 = vrcp.pop %v254
  %v256 = vmul.f32 1.0, %v255
  %v257 = vld [vmem:[#allocation3] sm:$0xff]
  %v258 = vmul.f32 %v249, %v257
  %v259 = vmul.f32 %v243, %v250
  %v260 = vadd.f32 %v258, %v259
  %v261 = vtanh.pop %v260
  %v262 = vmul.f32 %v256, %v261
  %263 = vst [vmem:[#allocation3] sm:$0xff] %v260
  %264 = vst [vmem:[#allocation2] sm:$0xff] %v262
  %s265 = scalar_lea.vmem %s0, 32
  %v266 = vld [vmem:[%s265] sm:$0xff]
  %v267 = vld [vmem:[%s265 + $0x8] sm:$0xff]
  %v268 = vld [vmem:[%s265 + $0x10] sm:$0xff]
  %v269 = vld [vmem:[%s265 + $0x18] sm:$0xff]
  %v270 = vld [vmem:[#allocation2] sm:$0xff]
  %271 = vmatprep.subr.mxu0 %v24
  %272 = vmatpush1.msra.mxu0 %v23
  %273 = vmatprep.subr.mxu0 %v28
  %274 = vmatpush1.msra.mxu0 %v27
  %275 = vmatprep.subr.mxu0 %v32
  %276 = vmatpush1.msra.mxu0 %v31
  %277 = vmatprep.subr.mxu0 %v36
  %278 = vmatpush1.msra.mxu0 %v35
  %279 = vmatprep.subr.mxu0 %v40
  %280 = vmatpush1.msra.mxu0 %v39
  %281 = vmatprep.subr.mxu0 %v44
  %282 = vmatpush1.msra.mxu0 %v43
  %283 = vmatprep.subr.mxu0 %v48
  %284 = vmatpush1.msra.mxu0 %v47
  %285 = vmatprep.subr.mxu0 %v52
  %286 = vmatpush1.msra.mxu0 %v51
  %287 = vmatprep.subr.mxu0 %v56
  %288 = vmatpush1.msra.mxu0 %v55
  %289 = vmatprep.subr.mxu0 %v60
  %290 = vmatpush1.msra.mxu0 %v59
  %291 = vmatprep.subr.mxu0 %v64
  %292 = vmatpush1.msra.mxu0 %v63
  %293 = vmatprep.subr.mxu0 %v68
  %294 = vmatpush1.msra.mxu0 %v67
  %295 = vmatprep.subr.mxu0 %v72
  %296 = vmatpush1.msra.mxu0 %v71
  %297 = vmatprep.subr.mxu0 %v76
  %298 = vmatpush1.msra.mxu0 %v75
  %299 = vmatprep.subr.mxu0 %v80
  %300 = vmatpush1.msra.mxu0 %v79
  %301 = vmatprep.subr.mxu0 %v84
  %302 = vmatpush1.msra.mxu0 %v83
  %303 = vmatprep.subr.mxu0 0.0
  %304 = vmatpush1.msra.mxu0 0.0
  %305 = vmatprep.subr.mxu0 0.0
  %306 = vmatpush1.msra.mxu0 0.0
  %307 = vmatprep.subr.mxu0 0.0
  %308 = vmatpush1.msra.mxu0 0.0
  %309 = vmatprep.subr.mxu0 0.0
  %310 = vmatpush1.msra.mxu0 0.0
  %311 = vmatprep.subr.mxu0 0.0
  %312 = vmatpush1.msra.mxu0 0.0
  %313 = vmatprep.subr.mxu0 0.0
  %314 = vmatpush1.msra.mxu0 0.0
  %315 = vmatprep.subr.mxu0 0.0
  %316 = vmatpush1.msra.mxu0 0.0
  %317 = vmatprep.subr.mxu0 0.0
  %318 = vmatpush1.msra.mxu0 0.0
  %319 = vmatprep.subr.mxu0 0.0
  %320 = vmatpush1.msra.mxu0 0.0
  %321 = vmatprep.subr.mxu0 0.0
  %322 = vmatpush1.msra.mxu0 0.0
  %323 = vmatprep.subr.mxu0 0.0
  %324 = vmatpush1.msra.mxu0 0.0
  %325 = vmatprep.subr.mxu0 0.0
  %326 = vmatpush1.msra.mxu0 0.0
  %327 = vmatprep.subr.mxu0 0.0
  %328 = vmatpush1.msra.mxu0 0.0
  %329 = vmatprep.subr.mxu0 0.0
  %330 = vmatpush1.msra.mxu0 0.0
  %331 = vmatprep.subr.mxu0 0.0
  %332 = vmatpush1.msra.mxu0 0.0
  %333 = vmatprep.subr.mxu0 0.0
  %334 = vmatpush1.msra.mxu0 0.0
  %335 = vmatprep.mubr.f32.mxu0 0.0
  %336 = vmatmul.mubr.f32.gmra.mrb[0].mxu0 %v270
  %v337 = vpop.f32.mrb[0].mxu0
  %v338 = vadd.f32 0.0, %v337
  %v339 = vpop.f32.mrb[0].mxu0
  %v340 = vadd.f32 0.0, %v339
  %341 = vdwg.mxu0
  %342 = vmatprep.subr.mxu0 %v26
  %343 = vmatpush1.msra.mxu0 %v25
  %344 = vmatprep.subr.mxu0 %v30
  %345 = vmatpush1.msra.mxu0 %v29
  %346 = vmatprep.subr.mxu0 %v34
  %347 = vmatpush1.msra.mxu0 %v33
  %348 = vmatprep.subr.mxu0 %v38
  %349 = vmatpush1.msra.mxu0 %v37
  %350 = vmatprep.subr.mxu0 %v42
  %351 = vmatpush1.msra.mxu0 %v41
  %352 = vmatprep.subr.mxu0 %v46
  %353 = vmatpush1.msra.mxu0 %v45
  %354 = vmatprep.subr.mxu0 %v50
  %355 = vmatpush1.msra.mxu0 %v49
  %356 = vmatprep.subr.mxu0 %v54
  %357 = vmatpush1.msra.mxu0 %v53
  %358 = vmatprep.subr.mxu0 %v58
  %359 = vmatpush1.msra.mxu0 %v57
  %360 = vmatprep.subr.mxu0 %v62
  %361 = vmatpush1.msra.mxu0 %v61
  %362 = vmatprep.subr.mxu0 %v66
  %363 = vmatpush1.msra.mxu0 %v65
  %364 = vmatprep.subr.mxu0 %v70
  %365 = vmatpush1.msra.mxu0 %v69
  %366 = vmatprep.subr.mxu0 %v74
  %367 = vmatpush1.msra.mxu0 %v73
  %368 = vmatprep.subr.mxu0 %v78
  %369 = vmatpush1.msra.mxu0 %v77
  %370 = vmatprep.subr.mxu0 %v82
  %371 = vmatpush1.msra.mxu0 %v81
  %372 = vmatprep.subr.mxu0 %v86
  %373 = vmatpush1.msra.mxu0 %v85
  %374 = vmatprep.subr.mxu0 0.0
  %375 = vmatpush1.msra.mxu0 0.0
  %376 = vmatprep.subr.mxu0 0.0
  %377 = vmatpush1.msra.mxu0 0.0
  %378 = vmatprep.subr.mxu0 0.0
  %379 = vmatpush1.msra.mxu0 0.0
  %380 = vmatprep.subr.mxu0 0.0
  %381 = vmatpush1.msra.mxu0 0.0
  %382 = vmatprep.subr.mxu0 0.0
  %383 = vmatpush1.msra.mxu0 0.0
  %384 = vmatprep.subr.mxu0 0.0
  %385 = vmatpush1.msra.mxu0 0.0
  %386 = vmatprep.subr.mxu0 0.0
  %387 = vmatpush1.msra.mxu0 0.0
  %388 = vmatprep.subr.mxu0 0.0
  %389 = vmatpush1.msra.mxu0 0.0
  %390 = vmatprep.subr.mxu0 0.0
  %391 = vmatpush1.msra.mxu0 0.0
  %392 = vmatprep.subr.mxu0 0.0
  %393 = vmatpush1.msra.mxu0 0.0
  %394 = vmatprep.subr.mxu0 0.0
  %395 = vmatpush1.msra.mxu0 0.0
  %396 = vmatprep.subr.mxu0 0.0
  %397 = vmatpush1.msra.mxu0 0.0
  %398 = vmatprep.subr.mxu0 0.0
  %399 = vmatpush1.msra.mxu0 0.0
  %400 = vmatprep.subr.mxu0 0.0
  %401 = vmatpush1.msra.mxu0 0.0
  %402 = vmatprep.subr.mxu0 0.0
  %403 = vmatpush1.msra.mxu0 0.0
  %404 = vmatprep.subr.mxu0 0.0
  %405 = vmatpush1.msra.mxu0 0.0
  %406 = vmatprep.mubr.f32.mxu0 0.0
  %407 = vmatmul.mubr.f32.gmra.mrb[0].mxu0 %v270
  %v408 = vpop.f32.mrb[0].mxu0
  %v409 = vadd.f32 0.0, %v408
  %v410 = vpop.f32.mrb[0].mxu0
  %v411 = vadd.f32 0.0, %v410
  %412 = vdwg.mxu0
  %v413 = vadd.f32 %v266, %v338
  %v414 = vadd.f32 %v267, %v340
  %v415 = vadd.f32 %v268, %v409
  %v416 = vadd.f32 %v269, %v411
  %v417 = vxor.u32 %v413, 2147483648
  %v418 = vmul.f32 %v417, 1.442695
  %v419 = vpow.pop %v418
  %v420 = vadd.f32 %v419, 1.0
  %v421 = vrcp.pop %v420
  %v422 = vmul.f32 1.0, %v421
  %v423 = vxor.u32 %v414, 2147483648
  %v424 = vmul.f32 %v423, 1.442695
  %v425 = vpow.pop %v424
  %v426 = vadd.f32 %v425, 1.0
  %v427 = vrcp.pop %v426
  %v428 = vmul.f32 1.0, %v427
  %v429 = vtanh.pop %v415
  %v430 = vxor.u32 %v416, 2147483648
  %v431 = vmul.f32 %v430, 1.442695
  %v432 = vpow.pop %v431
  %v433 = vadd.f32 %v432, 1.0
  %v434 = vrcp.pop %v433
  %v435 = vmul.f32 1.0, %v434
  %v436 = vld [vmem:[#allocation3] sm:$0xff]
  %v437 = vmul.f32 %v428, %v436
  %v438 = vmul.f32 %v422, %v429
  %v439 = vadd.f32 %v437, %v438
  %v440 = vtanh.pop %v439
  %v441 = vmul.f32 %v435, %v440
  %442 = vst [vmem:[#allocation3] sm:$0xff] %v439
  %443 = vst [vmem:[#allocation2] sm:$0xff] %v441
  %s444 = scalar_lea.vmem %s0, 64
  %v445 = vld [vmem:[%s444] sm:$0xff]
  %v446 = vld [vmem:[%s444 + $0x8] sm:$0xff]
  %v447 = vld [vmem:[%s444 + $0x10] sm:$0xff]
  %v448 = vld [vmem:[%s444 + $0x18] sm:$0xff]
  %v449 = vld [vmem:[#allocation2] sm:$0xff]
  %450 = vmatprep.subr.mxu0 %v24
  %451 = vmatpush1.msra.mxu0 %v23
  %452 = vmatprep.subr.mxu0 %v28
  %453 = vmatpush1.msra.mxu0 %v27
  %454 = vmatprep.subr.mxu0 %v32
  %455 = vmatpush1.msra.mxu0 %v31
  %456 = vmatprep.subr.mxu0 %v36
  %457 = vmatpush1.msra.mxu0 %v35
  %458 = vmatprep.subr.mxu0 %v40
  %459 = vmatpush1.msra.mxu0 %v39
  %460 = vmatprep.subr.mxu0 %v44
  %461 = vmatpush1.msra.mxu0 %v43
  %462 = vmatprep.subr.mxu0 %v48
  %463 = vmatpush1.msra.mxu0 %v47
  %464 = vmatprep.subr.mxu0 %v52
  %465 = vmatpush1.msra.mxu0 %v51
  %466 = vmatprep.subr.mxu0 %v56
  %467 = vmatpush1.msra.mxu0 %v55
  %468 = vmatprep.subr.mxu0 %v60
  %469 = vmatpush1.msra.mxu0 %v59
  %470 = vmatprep.subr.mxu0 %v64
  %471 = vmatpush1.msra.mxu0 %v63
  %472 = vmatprep.subr.mxu0 %v68
  %473 = vmatpush1.msra.mxu0 %v67
  %474 = vmatprep.subr.mxu0 %v72
  %475 = vmatpush1.msra.mxu0 %v71
  %476 = vmatprep.subr.mxu0 %v76
  %477 = vmatpush1.msra.mxu0 %v75
  %478 = vmatprep.subr.mxu0 %v80
  %479 = vmatpush1.msra.mxu0 %v79
  %480 = vmatprep.subr.mxu0 %v84
  %481 = vmatpush1.msra.mxu0 %v83
  %482 = vmatprep.subr.mxu0 0.0
  %483 = vmatpush1.msra.mxu0 0.0
  %484 = vmatprep.subr.mxu0 0.0
  %485 = vmatpush1.msra.mxu0 0.0
  %486 = vmatprep.subr.mxu0 0.0
  %487 = vmatpush1.msra.mxu0 0.0
  %488 = vmatprep.subr.mxu0 0.0
  %489 = vmatpush1.msra.mxu0 0.0
  %490 = vmatprep.subr.mxu0 0.0
  %491 = vmatpush1.msra.mxu0 0.0
  %492 = vmatprep.subr.mxu0 0.0
  %493 = vmatpush1.msra.mxu0 0.0
  %494 = vmatprep.subr.mxu0 0.0
  %495 = vmatpush1.msra.mxu0 0.0
  %496 = vmatprep.subr.mxu0 0.0
  %497 = vmatpush1.msra.mxu0 0.0
  %498 = vmatprep.subr.mxu0 0.0
  %499 = vmatpush1.msra.mxu0 0.0
  %500 = vmatprep.subr.mxu0 0.0
  %501 = vmatpush1.msra.mxu0 0.0
  %502 = vmatprep.subr.mxu0 0.0
  %503 = vmatpush1.msra.mxu0 0.0
  %504 = vmatprep.subr.mxu0 0.0
  %505 = vmatpush1.msra.mxu0 0.0
  %506 = vmatprep.subr.mxu0 0.0
  %507 = vmatpush1.msra.mxu0 0.0
  %508 = vmatprep.subr.mxu0 0.0
  %509 = vmatpush1.msra.mxu0 0.0
  %510 = vmatprep.subr.mxu0 0.0
  %511 = vmatpush1.msra.mxu0 0.0
  %512 = vmatprep.subr.mxu0 0.0
  %513 = vmatpush1.msra.mxu0 0.0
  %514 = vmatprep.mubr.f32.mxu0 0.0
  %515 = vmatmul.mubr.f32.gmra.mrb[0].mxu0 %v449
  %v516 = vpop.f32.mrb[0].mxu0
  %v517 = vadd.f32 0.0, %v516
  %v518 = vpop.f32.mrb[0].mxu0
  %v519 = vadd.f32 0.0, %v518
  %520 = vdwg.mxu0
  %521 = vmatprep.subr.mxu0 %v26
  %522 = vmatpush1.msra.mxu0 %v25
  %523 = vmatprep.subr.mxu0 %v30
  %524 = vmatpush1.msra.mxu0 %v29
  %525 = vmatprep.subr.mxu0 %v34
  %526 = vmatpush1.msra.mxu0 %v33
  %527 = vmatprep.subr.mxu0 %v38
  %528 = vmatpush1.msra.mxu0 %v37
  %529 = vmatprep.subr.mxu0 %v42
  %530 = vmatpush1.msra.mxu0 %v41
  %531 = vmatprep.subr.mxu0 %v46
  %532 = vmatpush1.msra.mxu0 %v45
  %533 = vmatprep.subr.mxu0 %v50
  %534 = vmatpush1.msra.mxu0 %v49
  %535 = vmatprep.subr.mxu0 %v54
  %536 = vmatpush1.msra.mxu0 %v53
  %537 = vmatprep.subr.mxu0 %v58
  %538 = vmatpush1.msra.mxu0 %v57
  %539 = vmatprep.subr.mxu0 %v62
  %540 = vmatpush1.msra.mxu0 %v61
  %541 = vmatprep.subr.mxu0 %v66
  %542 = vmatpush1.msra.mxu0 %v65
  %543 = vmatprep.subr.mxu0 %v70
  %544 = vmatpush1.msra.mxu0 %v69
  %545 = vmatprep.subr.mxu0 %v74
  %546 = vmatpush1.msra.mxu0 %v73
  %547 = vmatprep.subr.mxu0 %v78
  %548 = vmatpush1.msra.mxu0 %v77
  %549 = vmatprep.subr.mxu0 %v82
  %550 = vmatpush1.msra.mxu0 %v81
  %551 = vmatprep.subr.mxu0 %v86
  %552 = vmatpush1.msra.mxu0 %v85
  %553 = vmatprep.subr.mxu0 0.0
  %554 = vmatpush1.msra.mxu0 0.0
  %555 = vmatprep.subr.mxu0 0.0
  %556 = vmatpush1.msra.mxu0 0.0
  %557 = vmatprep.subr.mxu0 0.0
  %558 = vmatpush1.msra.mxu0 0.0
  %559 = vmatprep.subr.mxu0 0.0
  %560 = vmatpush1.msra.mxu0 0.0
  %561 = vmatprep.subr.mxu0 0.0
  %562 = vmatpush1.msra.mxu0 0.0
  %563 = vmatprep.subr.mxu0 0.0
  %564 = vmatpush1.msra.mxu0 0.0
  %565 = vmatprep.subr.mxu0 0.0
  %566 = vmatpush1.msra.mxu0 0.0
  %567 = vmatprep.subr.mxu0 0.0
  %568 = vmatpush1.msra.mxu0 0.0
  %569 = vmatprep.subr.mxu0 0.0
  %570 = vmatpush1.msra.mxu0 0.0
  %571 = vmatprep.subr.mxu0 0.0
  %572 = vmatpush1.msra.mxu0 0.0
  %573 = vmatprep.subr.mxu0 0.0
  %574 = vmatpush1.msra.mxu0 0.0
  %575 = vmatprep.subr.mxu0 0.0
  %576 = vmatpush1.msra.mxu0 0.0
  %577 = vmatprep.subr.mxu0 0.0
  %578 = vmatpush1.msra.mxu0 0.0
  %579 = vmatprep.subr.mxu0 0.0
  %580 = vmatpush1.msra.mxu0 0.0
  %581 = vmatprep.subr.mxu0 0.0
  %582 = vmatpush1.msra.mxu0 0.0
  %583 = vmatprep.subr.mxu0 0.0
  %584 = vmatpush1.msra.mxu0 0.0
  %585 = vmatprep.mubr.f32.mxu0 0.0
  %586 = vmatmul.mubr.f32.gmra.mrb[0].mxu0 %v449
  %v587 = vpop.f32.mrb[0].mxu0
  %v588 = vadd.f32 0.0, %v587
  %v589 = vpop.f32.mrb[0].mxu0
  %v590 = vadd.f32 0.0, %v589
  %591 = vdwg.mxu0
  %v592 = vadd.f32 %v445, %v517
  %v593 = vadd.f32 %v446, %v519
  %v594 = vadd.f32 %v447, %v588
  %v595 = vadd.f32 %v448, %v590
  %v596 = vxor.u32 %v592, 2147483648
  %v597 = vmul.f32 %v596, 1.442695
  %v598 = vpow.pop %v597
  %v599 = vadd.f32 %v598, 1.0
  %v600 = vrcp.pop %v599
  %v601 = vmul.f32 1.0, %v600
  %v602 = vxor.u32 %v593, 2147483648
  %v603 = vmul.f32 %v602, 1.442695
  %v604 = vpow.pop %v603
  %v605 = vadd.f32 %v604, 1.0
  %v606 = vrcp.pop %v605
  %v607 = vmul.f32 1.0, %v606
  %v608 = vtanh.pop %v594
  %v609 = vxor.u32 %v595, 2147483648
  %v610 = vmul.f32 %v609, 1.442695
  %v611 = vpow.pop %v610
  %v612 = vadd.f32 %v611, 1.0
  %v613 = vrcp.pop %v612
  %v614 = vmul.f32 1.0, %v613
  %v615 = vld [vmem:[#allocation3] sm:$0xff]
  %v616 = vmul.f32 %v607, %v615
  %v617 = vmul.f32 %v601, %v608
  %v618 = vadd.f32 %v616, %v617
  %v619 = vtanh.pop %v618
  %v620 = vmul.f32 %v614, %v619
  %621 = vst [vmem:[#allocation3] sm:$0xff] %v618
  %622 = vst [vmem:[#allocation2] sm:$0xff] %v620
  %s623 = scalar_lea.vmem %s0, 96
  %v624 = vld [vmem:[%s623] sm:$0xff]
  %v625 = vld [vmem:[%s623 + $0x8] sm:$0xff]
  %v626 = vld [vmem:[%s623 + $0x10] sm:$0xff]
  %v627 = vld [vmem:[%s623 + $0x18] sm:$0xff]
  %v628 = vld [vmem:[#allocation2] sm:$0xff]
  %629 = vmatprep.subr.mxu0 %v24
  %630 = vmatpush1.msra.mxu0 %v23
  %631 = vmatprep.subr.mxu0 %v28
  %632 = vmatpush1.msra.mxu0 %v27
  %633 = vmatprep.subr.mxu0 %v32
  %634 = vmatpush1.msra.mxu0 %v31
  %635 = vmatprep.subr.mxu0 %v36
  %636 = vmatpush1.msra.mxu0 %v35
  %637 = vmatprep.subr.mxu0 %v40
  %638 = vmatpush1.msra.mxu0 %v39
  %639 = vmatprep.subr.mxu0 %v44
  %640 = vmatpush1.msra.mxu0 %v43
  %641 = vmatprep.subr.mxu0 %v48
  %642 = vmatpush1.msra.mxu0 %v47
  %643 = vmatprep.subr.mxu0 %v52
  %644 = vmatpush1.msra.mxu0 %v51
  %645 = vmatprep.subr.mxu0 %v56
  %646 = vmatpush1.msra.mxu0 %v55
  %647 = vmatprep.subr.mxu0 %v60
  %648 = vmatpush1.msra.mxu0 %v59
  %649 = vmatprep.subr.mxu0 %v64
  %650 = vmatpush1.msra.mxu0 %v63
  %651 = vmatprep.subr.mxu0 %v68
  %652 = vmatpush1.msra.mxu0 %v67
  %653 = vmatprep.subr.mxu0 %v72
  %654 = vmatpush1.msra.mxu0 %v71
  %655 = vmatprep.subr.mxu0 %v76
  %656 = vmatpush1.msra.mxu0 %v75
  %657 = vmatprep.subr.mxu0 %v80
  %658 = vmatpush1.msra.mxu0 %v79
  %659 = vmatprep.subr.mxu0 %v84
  %660 = vmatpush1.msra.mxu0 %v83
  %661 = vmatprep.subr.mxu0 0.0
  %662 = vmatpush1.msra.mxu0 0.0
  %663 = vmatprep.subr.mxu0 0.0
  %664 = vmatpush1.msra.mxu0 0.0
  %665 = vmatprep.subr.mxu0 0.0
  %666 = vmatpush1.msra.mxu0 0.0
  %667 = vmatprep.subr.mxu0 0.0
  %668 = vmatpush1.msra.mxu0 0.0
  %669 = vmatprep.subr.mxu0 0.0
  %670 = vmatpush1.msra.mxu0 0.0
  %671 = vmatprep.subr.mxu0 0.0
  %672 = vmatpush1.msra.mxu0 0.0
  %673 = vmatprep.subr.mxu0 0.0
  %674 = vmatpush1.msra.mxu0 0.0
  %675 = vmatprep.subr.mxu0 0.0
  %676 = vmatpush1.msra.mxu0 0.0
  %677 = vmatprep.subr.mxu0 0.0
  %678 = vmatpush1.msra.mxu0 0.0
  %679 = vmatprep.subr.mxu0 0.0
  %680 = vmatpush1.msra.mxu0 0.0
  %681 = vmatprep.subr.mxu0 0.0
  %682 = vmatpush1.msra.mxu0 0.0
  %683 = vmatprep.subr.mxu0 0.0
  %684 = vmatpush1.msra.mxu0 0.0
  %685 = vmatprep.subr.mxu0 0.0
  %686 = vmatpush1.msra.mxu0 0.0
  %687 = vmatprep.subr.mxu0 0.0
  %688 = vmatpush1.msra.mxu0 0.0
  %689 = vmatprep.subr.mxu0 0.0
  %690 = vmatpush1.msra.mxu0 0.0
  %691 = vmatprep.subr.mxu0 0.0
  %692 = vmatpush1.msra.mxu0 0.0
  %693 = vmatprep.mubr.f32.mxu0 0.0
  %694 = vmatmul.mubr.f32.gmra.mrb[0].mxu0 %v628
  %v695 = vpop.f32.mrb[0].mxu0
  %v696 = vadd.f32 0.0, %v695
  %v697 = vpop.f32.mrb[0].mxu0
  %v698 = vadd.f32 0.0, %v697
  %699 = vdwg.mxu0
  %700 = vmatprep.subr.mxu0 %v26
  %701 = vmatpush1.msra.mxu0 %v25
  %702 = vmatprep.subr.mxu0 %v30
  %703 = vmatpush1.msra.mxu0 %v29
  %704 = vmatprep.subr.mxu0 %v34
  %705 = vmatpush1.msra.mxu0 %v33
  %706 = vmatprep.subr.mxu0 %v38
  %707 = vmatpush1.msra.mxu0 %v37
  %708 = vmatprep.subr.mxu0 %v42
  %709 = vmatpush1.msra.mxu0 %v41
  %710 = vmatprep.subr.mxu0 %v46
  %711 = vmatpush1.msra.mxu0 %v45
  %712 = vmatprep.subr.mxu0 %v50
  %713 = vmatpush1.msra.mxu0 %v49
  %714 = vmatprep.subr.mxu0 %v54
  %715 = vmatpush1.msra.mxu0 %v53
  %716 = vmatprep.subr.mxu0 %v58
  %717 = vmatpush1.msra.mxu0 %v57
  %718 = vmatprep.subr.mxu0 %v62
  %719 = vmatpush1.msra.mxu0 %v61
  %720 = vmatprep.subr.mxu0 %v66
  %721 = vmatpush1.msra.mxu0 %v65
  %722 = vmatprep.subr.mxu0 %v70
  %723 = vmatpush1.msra.mxu0 %v69
  %724 = vmatprep.subr.mxu0 %v74
  %725 = vmatpush1.msra.mxu0 %v73
  %726 = vmatprep.subr.mxu0 %v78
  %727 = vmatpush1.msra.mxu0 %v77
  %728 = vmatprep.subr.mxu0 %v82
  %729 = vmatpush1.msra.mxu0 %v81
  %730 = vmatprep.subr.mxu0 %v86
  %731 = vmatpush1.msra.mxu0 %v85
  %732 = vmatprep.subr.mxu0 0.0
  %733 = vmatpush1.msra.mxu0 0.0
  %734 = vmatprep.subr.mxu0 0.0
  %735 = vmatpush1.msra.mxu0 0.0
  %736 = vmatprep.subr.mxu0 0.0
  %737 = vmatpush1.msra.mxu0 0.0
  %738 = vmatprep.subr.mxu0 0.0
  %739 = vmatpush1.msra.mxu0 0.0
  %740 = vmatprep.subr.mxu0 0.0
  %741 = vmatpush1.msra.mxu0 0.0
  %742 = vmatprep.subr.mxu0 0.0
  %743 = vmatpush1.msra.mxu0 0.0
  %744 = vmatprep.subr.mxu0 0.0
  %745 = vmatpush1.msra.mxu0 0.0
  %746 = vmatprep.subr.mxu0 0.0
  %747 = vmatpush1.msra.mxu0 0.0
  %748 = vmatprep.subr.mxu0 0.0
  %749 = vmatpush1.msra.mxu0 0.0
  %750 = vmatprep.subr.mxu0 0.0
  %751 = vmatpush1.msra.mxu0 0.0
  %752 = vmatprep.subr.mxu0 0.0
  %753 = vmatpush1.msra.mxu0 0.0
  %754 = vmatprep.subr.mxu0 0.0
  %755 = vmatpush1.msra.mxu0 0.0
  %756 = vmatprep.subr.mxu0 0.0
  %757 = vmatpush1.msra.mxu0 0.0
  %758 = vmatprep.subr.mxu0 0.0
  %759 = vmatpush1.msra.mxu0 0.0
  %760 = vmatprep.subr.mxu0 0.0
  %761 = vmatpush1.msra.mxu0 0.0
  %762 = vmatprep.subr.mxu0 0.0
  %763 = vmatpush1.msra.mxu0 0.0
  %764 = vmatprep.mubr.f32.mxu0 0.0
  %765 = vmatmul.mubr.f32.gmra.mrb[0].mxu0 %v628
  %v766 = vpop.f32.mrb[0].mxu0
  %v767 = vadd.f32 0.0, %v766
  %v768 = vpop.f32.mrb[0].mxu0
  %v769 = vadd.f32 0.0, %v768
  %770 = vdwg.mxu0
  %v771 = vadd.f32 %v624, %v696
  %v772 = vadd.f32 %v625, %v698
  %v773 = vadd.f32 %v626, %v767
  %v774 = vadd.f32 %v627, %v769
  %v775 = vxor.u32 %v771, 2147483648
  %v776 = vmul.f32 %v775, 1.442695
  %v777 = vpow.pop %v776
  %v778 = vadd.f32 %v777, 1.0
  %v779 = vrcp.pop %v778
  %v780 = vmul.f32 1.0, %v779
  %v781 = vxor.u32 %v772, 2147483648
  %v782 = vmul.f32 %v781, 1.442695
  %v783 = vpow.pop %v782
  %v784 = vadd.f32 %v783, 1.0
  %v785 = vrcp.pop %v784
  %v786 = vmul.f32 1.0, %v785
  %v787 = vtanh.pop %v773
  %v788 = vxor.u32 %v774, 2147483648
  %v789 = vmul.f32 %v788, 1.442695
  %v790 = vpow.pop %v789
  %v791 = vadd.f32 %v790, 1.0
  %v792 = vrcp.pop %v791
  %v793 = vmul.f32 1.0, %v792
  %v794 = vld [vmem:[#allocation3] sm:$0xff]
  %v795 = vmul.f32 %v786, %v794
  %v796 = vmul.f32 %v780, %v787
  %v797 = vadd.f32 %v795, %v796
  %v798 = vtanh.pop %v797
  %v799 = vmul.f32 %v793, %v798
  %800 = vst [vmem:[#allocation3] sm:$0xff] %v797
  %801 = vst [vmem:[#allocation2] sm:$0xff] %v799
  %s802 = scalar_lea.vmem %s0, 128
  %v803 = vld [vmem:[%s802] sm:$0xff]
  %v804 = vld [vmem:[%s802 + $0x8] sm:$0xff]
  %v805 = vld [vmem:[%s802 + $0x10] sm:$0xff]
  %v806 = vld [vmem:[%s802 + $0x18] sm:$0xff]
  %v807 = vld [vmem:[#allocation2] sm:$0xff]
  %808 = vmatprep.subr.mxu0 %v24
  %809 = vmatpush1.msra.mxu0 %v23
  %810 = vmatprep.subr.mxu0 %v28
  %811 = vmatpush1.msra.mxu0 %v27
  %812 = vmatprep.subr.mxu0 %v32
  %813 = vmatpush1.msra.mxu0 %v31
  %814 = vmatprep.subr.mxu0 %v36
  %815 = vmatpush1.msra.mxu0 %v35
  %816 = vmatprep.subr.mxu0 %v40
  %817 = vmatpush1.msra.mxu0 %v39
  %818 = vmatprep.subr.mxu0 %v44
  %819 = vmatpush1.msra.mxu0 %v43
  %820 = vmatprep.subr.mxu0 %v48
  %821 = vmatpush1.msra.mxu0 %v47
  %822 = vmatprep.subr.mxu0 %v52
  %823 = vmatpush1.msra.mxu0 %v51
  %824 = vmatprep.subr.mxu0 %v56
  %825 = vmatpush1.msra.mxu0 %v55
  %826 = vmatprep.subr.mxu0 %v60
  %827 = vmatpush1.msra.mxu0 %v59
  %828 = vmatprep.subr.mxu0 %v64
  %829 = vmatpush1.msra.mxu0 %v63
  %830 = vmatprep.subr.mxu0 %v68
  %831 = vmatpush1.msra.mxu0 %v67
  %832 = vmatprep.subr.mxu0 %v72
  %833 = vmatpush1.msra.mxu0 %v71
  %834 = vmatprep.subr.mxu0 %v76
  %835 = vmatpush1.msra.mxu0 %v75
  %836 = vmatprep.subr.mxu0 %v80
  %837 = vmatpush1.msra.mxu0 %v79
  %838 = vmatprep.subr.mxu0 %v84
  %839 = vmatpush1.msra.mxu0 %v83
  %840 = vmatprep.subr.mxu0 0.0
  %841 = vmatpush1.msra.mxu0 0.0
  %842 = vmatprep.subr.mxu0 0.0
  %843 = vmatpush1.msra.mxu0 0.0
  %844 = vmatprep.subr.mxu0 0.0
  %845 = vmatpush1.msra.mxu0 0.0
  %846 = vmatprep.subr.mxu0 0.0
  %847 = vmatpush1.msra.mxu0 0.0
  %848 = vmatprep.subr.mxu0 0.0
  %849 = vmatpush1.msra.mxu0 0.0
  %850 = vmatprep.subr.mxu0 0.0
  %851 = vmatpush1.msra.mxu0 0.0
  %852 = vmatprep.subr.mxu0 0.0
  %853 = vmatpush1.msra.mxu0 0.0
  %854 = vmatprep.subr.mxu0 0.0
  %855 = vmatpush1.msra.mxu0 0.0
  %856 = vmatprep.subr.mxu0 0.0
  %857 = vmatpush1.msra.mxu0 0.0
  %858 = vmatprep.subr.mxu0 0.0
  %859 = vmatpush1.msra.mxu0 0.0
  %860 = vmatprep.subr.mxu0 0.0
  %861 = vmatpush1.msra.mxu0 0.0
  %862 = vmatprep.subr.mxu0 0.0
  %863 = vmatpush1.msra.mxu0 0.0
  %864 = vmatprep.subr.mxu0 0.0
  %865 = vmatpush1.msra.mxu0 0.0
  %866 = vmatprep.subr.mxu0 0.0
  %867 = vmatpush1.msra.mxu0 0.0
  %868 = vmatprep.subr.mxu0 0.0
  %869 = vmatpush1.msra.mxu0 0.0
  %870 = vmatprep.subr.mxu0 0.0
  %871 = vmatpush1.msra.mxu0 0.0
  %872 = vmatprep.mubr.f32.mxu0 0.0
  %873 = vmatmul.mubr.f32.gmra.mrb[0].mxu0 %v807
  %v874 = vpop.f32.mrb[0].mxu0
  %v875 = vadd.f32 0.0, %v874
  %v876 = vpop.f32.mrb[0].mxu0
  %v877 = vadd.f32 0.0, %v876
  %878 = vdwg.mxu0
  %879 = vmatprep.subr.mxu0 %v26
  %880 = vmatpush1.msra.mxu0 %v25
  %881 = vmatprep.subr.mxu0 %v30
  %882 = vmatpush1.msra.mxu0 %v29
  %883 = vmatprep.subr.mxu0 %v34
  %884 = vmatpush1.msra.mxu0 %v33
  %885 = vmatprep.subr.mxu0 %v38
  %886 = vmatpush1.msra.mxu0 %v37
  %887 = vmatprep.subr.mxu0 %v42
  %888 = vmatpush1.msra.mxu0 %v41
  %889 = vmatprep.subr.mxu0 %v46
  %890 = vmatpush1.msra.mxu0 %v45
  %891 = vmatprep.subr.mxu0 %v50
  %892 = vmatpush1.msra.mxu0 %v49
  %893 = vmatprep.subr.mxu0 %v54
  %894 = vmatpush1.msra.mxu0 %v53
  %895 = vmatprep.subr.mxu0 %v58
  %896 = vmatpush1.msra.mxu0 %v57
  %897 = vmatprep.subr.mxu0 %v62
  %898 = vmatpush1.msra.mxu0 %v61
  %899 = vmatprep.subr.mxu0 %v66
  %900 = vmatpush1.msra.mxu0 %v65
  %901 = vmatprep.subr.mxu0 %v70
  %902 = vmatpush1.msra.mxu0 %v69
  %903 = vmatprep.subr.mxu0 %v74
  %904 = vmatpush1.msra.mxu0 %v73
  %905 = vmatprep.subr.mxu0 %v78
  %906 = vmatpush1.msra.mxu0 %v77
  %907 = vmatprep.subr.mxu0 %v82
  %908 = vmatpush1.msra.mxu0 %v81
  %909 = vmatprep.subr.mxu0 %v86
  %910 = vmatpush1.msra.mxu0 %v85
  %911 = vmatprep.subr.mxu0 0.0
  %912 = vmatpush1.msra.mxu0 0.0
  %913 = vmatprep.subr.mxu0 0.0
  %914 = vmatpush1.msra.mxu0 0.0
  %915 = vmatprep.subr.mxu0 0.0
  %916 = vmatpush1.msra.mxu0 0.0
  %917 = vmatprep.subr.mxu0 0.0
  %918 = vmatpush1.msra.mxu0 0.0
  %919 = vmatprep.subr.mxu0 0.0
  %920 = vmatpush1.msra.mxu0 0.0
  %921 = vmatprep.subr.mxu0 0.0
  %922 = vmatpush1.msra.mxu0 0.0
  %923 = vmatprep.subr.mxu0 0.0
  %924 = vmatpush1.msra.mxu0 0.0
  %925 = vmatprep.subr.mxu0 0.0
  %926 = vmatpush1.msra.mxu0 0.0
  %927 = vmatprep.subr.mxu0 0.0
  %928 = vmatpush1.msra.mxu0 0.0
  %929 = vmatprep.subr.mxu0 0.0
  %930 = vmatpush1.msra.mxu0 0.0
  %931 = vmatprep.subr.mxu0 0.0
  %932 = vmatpush1.msra.mxu0 0.0
  %933 = vmatprep.subr.mxu0 0.0
  %934 = vmatpush1.msra.mxu0 0.0
  %935 = vmatprep.subr.mxu0 0.0
  %936 = vmatpush1.msra.mxu0 0.0
  %937 = vmatprep.subr.mxu0 0.0
  %938 = vmatpush1.msra.mxu0 0.0
  %939 = vmatprep.subr.mxu0 0.0
  %940 = vmatpush1.msra.mxu0 0.0
  %941 = vmatprep.subr.mxu0 0.0
  %942 = vmatpush1.msra.mxu0 0.0
  %943 = vmatprep.mubr.f32.mxu0 0.0
  %944 = vmatmul.mubr.f32.gmra.mrb[0].mxu0 %v807
  %v945 = vpop.f32.mrb[0].mxu0
  %v946 = vadd.f32 0.0, %v945
  %v947 = vpop.f32.mrb[0].mxu0
  %v948 = vadd.f32 0.0, %v947
  %949 = vdwg.mxu0
  %v950 = vadd.f32 %v803, %v875
  %v951 = vadd.f32 %v804, %v877
  %v952 = vadd.f32 %v805, %v946
  %v953 = vadd.f32 %v806, %v948
  %v954 = vxor.u32 %v950, 2147483648
  %v955 = vmul.f32 %v954, 1.442695
  %v956 = vpow.pop %v955
  %v957 = vadd.f32 %v956, 1.0
  %v958 = vrcp.pop %v957
  %v959 = vmul.f32 1.0, %v958
  %v960 = vxor.u32 %v951, 2147483648
  %v961 = vmul.f32 %v960, 1.442695
  %v962 = vpow.pop %v961
  %v963 = vadd.f32 %v962, 1.0
  %v964 = vrcp.pop %v963
  %v965 = vmul.f32 1.0, %v964
  %v966 = vtanh.pop %v952
  %v967 = vxor.u32 %v953, 2147483648
  %v968 = vmul.f32 %v967, 1.442695
  %v969 = vpow.pop %v968
  %v970 = vadd.f32 %v969, 1.0
  %v971 = vrcp.pop %v970
  %v972 = vmul.f32 1.0, %v971
  %v973 = vld [vmem:[#allocation3] sm:$0xff]
  %v974 = vmul.f32 %v965, %v973
  %v975 = vmul.f32 %v959, %v966
  %v976 = vadd.f32 %v974, %v975
  %v977 = vtanh.pop %v976
  %v978 = vmul.f32 %v972, %v977
  %979 = vst [vmem:[#allocation3] sm:$0xff] %v976
  %980 = vst [vmem:[#allocation2] sm:$0xff] %v978
  %s981 = scalar_lea.vmem %s0, 160
  %v982 = vld [vmem:[%s981] sm:$0xff]
  %v983 = vld [vmem:[%s981 + $0x8] sm:$0xff]
  %v984 = vld [vmem:[%s981 + $0x10] sm:$0xff]
  %v985 = vld [vmem:[%s981 + $0x18] sm:$0xff]
  %v986 = vld [vmem:[#allocation2] sm:$0xff]
  %987 = vmatprep.subr.mxu0 %v24
  %988 = vmatpush1.msra.mxu0 %v23
  %989 = vmatprep.subr.mxu0 %v28
  %990 = vmatpush1.msra.mxu0 %v27
  %991 = vmatprep.subr.mxu0 %v32
  %992 = vmatpush1.msra.mxu0 %v31
  %993 = vmatprep.subr.mxu0 %v36
  %994 = vmatpush1.msra.mxu0 %v35
  %995 = vmatprep.subr.mxu0 %v40
  %996 = vmatpush1.msra.mxu0 %v39
  %997 = vmatprep.subr.mxu0 %v44
  %998 = vmatpush1.msra.mxu0 %v43
  %999 = vmatprep.subr.mxu0 %v48
  %1000 = vmatpush1.msra.mxu0 %v47
  %1001 = vmatprep.subr.mxu0 %v52
  %1002 = vmatpush1.msra.mxu0 %v51
  %1003 = vmatprep.subr.mxu0 %v56
  %1004 = vmatpush1.msra.mxu0 %v55
  %1005 = vmatprep.subr.mxu0 %v60
  %1006 = vmatpush1.msra.mxu0 %v59
  %1007 = vmatprep.subr.mxu0 %v64
  %1008 = vmatpush1.msra.mxu0 %v63
  %1009 = vmatprep.subr.mxu0 %v68
  %1010 = vmatpush1.msra.mxu0 %v67
  %1011 = vmatprep.subr.mxu0 %v72
  %1012 = vmatpush1.msra.mxu0 %v71
  %1013 = vmatprep.subr.mxu0 %v76
  %1014 = vmatpush1.msra.mxu0 %v75
  %1015 = vmatprep.subr.mxu0 %v80
  %1016 = vmatpush1.msra.mxu0 %v79
  %1017 = vmatprep.subr.mxu0 %v84
  %1018 = vmatpush1.msra.mxu0 %v83
  %1019 = vmatprep.subr.mxu0 0.0
  %1020 = vmatpush1.msra.mxu0 0.0
  %1021 = vmatprep.subr.mxu0 0.0
  %1022 = vmatpush1.msra.mxu0 0.0
  %1023 = vmatprep.subr.mxu0 0.0
  %1024 = vmatpush1.msra.mxu0 0.0
  %1025 = vmatprep.subr.mxu0 0.0
  %1026 = vmatpush1.msra.mxu0 0.0
  %1027 = vmatprep.subr.mxu0 0.0
  %1028 = vmatpush1.msra.mxu0 0.0
  %1029 = vmatprep.subr.mxu0 0.0
  %1030 = vmatpush1.msra.mxu0 0.0
  %1031 = vmatprep.subr.mxu0 0.0
  %1032 = vmatpush1.msra.mxu0 0.0
  %1033 = vmatprep.subr.mxu0 0.0
  %1034 = vmatpush1.msra.mxu0 0.0
  %1035 = vmatprep.subr.mxu0 0.0
  %1036 = vmatpush1.msra.mxu0 0.0
  %1037 = vmatprep.subr.mxu0 0.0
  %1038 = vmatpush1.msra.mxu0 0.0
  %1039 = vmatprep.subr.mxu0 0.0
  %1040 = vmatpush1.msra.mxu0 0.0
  %1041 = vmatprep.subr.mxu0 0.0
  %1042 = vmatpush1.msra.mxu0 0.0
  %1043 = vmatprep.subr.mxu0 0.0
  %1044 = vmatpush1.msra.mxu0 0.0
  %1045 = vmatprep.subr.mxu0 0.0
  %1046 = vmatpush1.msra.mxu0 0.0
  %1047 = vmatprep.subr.mxu0 0.0
  %1048 = vmatpush1.msra.mxu0 0.0
  %1049 = vmatprep.subr.mxu0 0.0
  %1050 = vmatpush1.msra.mxu0 0.0
  %1051 = vmatprep.mubr.f32.mxu0 0.0
  %1052 = vmatmul.mubr.f32.gmra.mrb[0].mxu0 %v986
  %v1053 = vpop.f32.mrb[0].mxu0
  %v1054 = vadd.f32 0.0, %v1053
  %v1055 = vpop.f32.mrb[0].mxu0
  %v1056 = vadd.f32 0.0, %v1055
  %1057 = vdwg.mxu0
  %1058 = vmatprep.subr.mxu0 %v26
  %1059 = vmatpush1.msra.mxu0 %v25
  %1060 = vmatprep.subr.mxu0 %v30
  %1061 = vmatpush1.msra.mxu0 %v29
  %1062 = vmatprep.subr.mxu0 %v34
  %1063 = vmatpush1.msra.mxu0 %v33
  %1064 = vmatprep.subr.mxu0 %v38
  %1065 = vmatpush1.msra.mxu0 %v37
  %1066 = vmatprep.subr.mxu0 %v42
  %1067 = vmatpush1.msra.mxu0 %v41
  %1068 = vmatprep.subr.mxu0 %v46
  %1069 = vmatpush1.msra.mxu0 %v45
  %1070 = vmatprep.subr.mxu0 %v50
  %1071 = vmatpush1.msra.mxu0 %v49
  %1072 = vmatprep.subr.mxu0 %v54
  %1073 = vmatpush1.msra.mxu0 %v53
  %1074 = vmatprep.subr.mxu0 %v58
  %1075 = vmatpush1.msra.mxu0 %v57
  %1076 = vmatprep.subr.mxu0 %v62
  %1077 = vmatpush1.msra.mxu0 %v61
  %1078 = vmatprep.subr.mxu0 %v66
  %1079 = vmatpush1.msra.mxu0 %v65
  %1080 = vmatprep.subr.mxu0 %v70
  %1081 = vmatpush1.msra.mxu0 %v69
  %1082 = vmatprep.subr.mxu0 %v74
  %1083 = vmatpush1.msra.mxu0 %v73
  %1084 = vmatprep.subr.mxu0 %v78
  %1085 = vmatpush1.msra.mxu0 %v77
  %1086 = vmatprep.subr.mxu0 %v82
  %1087 = vmatpush1.msra.mxu0 %v81
  %1088 = vmatprep.subr.mxu0 %v86
  %1089 = vmatpush1.msra.mxu0 %v85
  %1090 = vmatprep.subr.mxu0 0.0
  %1091 = vmatpush1.msra.mxu0 0.0
  %1092 = vmatprep.subr.mxu0 0.0
  %1093 = vmatpush1.msra.mxu0 0.0
  %1094 = vmatprep.subr.mxu0 0.0
  %1095 = vmatpush1.msra.mxu0 0.0
  %1096 = vmatprep.subr.mxu0 0.0
  %1097 = vmatpush1.msra.mxu0 0.0
  %1098 = vmatprep.subr.mxu0 0.0
  %1099 = vmatpush1.msra.mxu0 0.0
  %1100 = vmatprep.subr.mxu0 0.0
  %1101 = vmatpush1.msra.mxu0 0.0
  %1102 = vmatprep.subr.mxu0 0.0
  %1103 = vmatpush1.msra.mxu0 0.0
  %1104 = vmatprep.subr.mxu0 0.0
  %1105 = vmatpush1.msra.mxu0 0.0
  %1106 = vmatprep.subr.mxu0 0.0
  %1107 = vmatpush1.msra.mxu0 0.0
  %1108 = vmatprep.subr.mxu0 0.0
  %1109 = vmatpush1.msra.mxu0 0.0
  %1110 = vmatprep.subr.mxu0 0.0
  %1111 = vmatpush1.msra.mxu0 0.0
  %1112 = vmatprep.subr.mxu0 0.0
  %1113 = vmatpush1.msra.mxu0 0.0
  %1114 = vmatprep.subr.mxu0 0.0
  %1115 = vmatpush1.msra.mxu0 0.0
  %1116 = vmatprep.subr.mxu0 0.0
  %1117 = vmatpush1.msra.mxu0 0.0
  %1118 = vmatprep.subr.mxu0 0.0
  %1119 = vmatpush1.msra.mxu0 0.0
  %1120 = vmatprep.subr.mxu0 0.0
  %1121 = vmatpush1.msra.mxu0 0.0
  %1122 = vmatprep.mubr.f32.mxu0 0.0
  %1123 = vmatmul.mubr.f32.gmra.mrb[0].mxu0 %v986
  %v1124 = vpop.f32.mrb[0].mxu0
  %v1125 = vadd.f32 0.0, %v1124
  %v1126 = vpop.f32.mrb[0].mxu0
  %v1127 = vadd.f32 0.0, %v1126
  %1128 = vdwg.mxu0
  %v1129 = vadd.f32 %v982, %v1054
  %v1130 = vadd.f32 %v983, %v1056
  %v1131 = vadd.f32 %v984, %v1125
  %v1132 = vadd.f32 %v985, %v1127
  %v1133 = vxor.u32 %v1129, 2147483648
  %v1134 = vmul.f32 %v1133, 1.442695
  %v1135 = vpow.pop %v1134
  %v1136 = vadd.f32 %v1135, 1.0
  %v1137 = vrcp.pop %v1136
  %v1138 = vmul.f32 1.0, %v1137
  %v1139 = vxor.u32 %v1130, 2147483648
  %v1140 = vmul.f32 %v1139, 1.442695
  %v1141 = vpow.pop %v1140
  %v1142 = vadd.f32 %v1141, 1.0
  %v1143 = vrcp.pop %v1142
  %v1144 = vmul.f32 1.0, %v1143
  %v1145 = vtanh.pop %v1131
  %v1146 = vxor.u32 %v1132, 2147483648
  %v1147 = vmul.f32 %v1146, 1.442695
  %v1148 = vpow.pop %v1147
  %v1149 = vadd.f32 %v1148, 1.0
  %v1150 = vrcp.pop %v1149
  %v1151 = vmul.f32 1.0, %v1150
  %v1152 = vld [vmem:[#allocation3] sm:$0xff]
  %v1153 = vmul.f32 %v1144, %v1152
  %v1154 = vmul.f32 %v1138, %v1145
  %v1155 = vadd.f32 %v1153, %v1154
  %v1156 = vtanh.pop %v1155
  %v1157 = vmul.f32 %v1151, %v1156
  %1158 = vst [vmem:[#allocation3] sm:$0xff] %v1155
  %1159 = vst [vmem:[#allocation2] sm:$0xff] %v1157
  %s1160 = scalar_lea.vmem %s0, 192
  %v1161 = vld [vmem:[%s1160] sm:$0xff]
  %v1162 = vld [vmem:[%s1160 + $0x8] sm:$0xff]
  %v1163 = vld [vmem:[%s1160 + $0x10] sm:$0xff]
  %v1164 = vld [vmem:[%s1160 + $0x18] sm:$0xff]
  %v1165 = vld [vmem:[#allocation2] sm:$0xff]
  %1166 = vmatprep.subr.mxu0 %v24
  %1167 = vmatpush1.msra.mxu0 %v23
  %1168 = vmatprep.subr.mxu0 %v28
  %1169 = vmatpush1.msra.mxu0 %v27
  %1170 = vmatprep.subr.mxu0 %v32
  %1171 = vmatpush1.msra.mxu0 %v31
  %1172 = vmatprep.subr.mxu0 %v36
  %1173 = vmatpush1.msra.mxu0 %v35
  %1174 = vmatprep.subr.mxu0 %v40
  %1175 = vmatpush1.msra.mxu0 %v39
  %1176 = vmatprep.subr.mxu0 %v44
  %1177 = vmatpush1.msra.mxu0 %v43
  %1178 = vmatprep.subr.mxu0 %v48
  %1179 = vmatpush1.msra.mxu0 %v47
  %1180 = vmatprep.subr.mxu0 %v52
  %1181 = vmatpush1.msra.mxu0 %v51
  %1182 = vmatprep.subr.mxu0 %v56
  %1183 = vmatpush1.msra.mxu0 %v55
  %1184 = vmatprep.subr.mxu0 %v60
  %1185 = vmatpush1.msra.mxu0 %v59
  %1186 = vmatprep.subr.mxu0 %v64
  %1187 = vmatpush1.msra.mxu0 %v63
  %1188 = vmatprep.subr.mxu0 %v68
  %1189 = vmatpush1.msra.mxu0 %v67
  %1190 = vmatprep.subr.mxu0 %v72
  %1191 = vmatpush1.msra.mxu0 %v71
  %1192 = vmatprep.subr.mxu0 %v76
  %1193 = vmatpush1.msra.mxu0 %v75
  %1194 = vmatprep.subr.mxu0 %v80
  %1195 = vmatpush1.msra.mxu0 %v79
  %1196 = vmatprep.subr.mxu0 %v84
  %1197 = vmatpush1.msra.mxu0 %v83
  %1198 = vmatprep.subr.mxu0 0.0
  %1199 = vmatpush1.msra.mxu0 0.0
  %1200 = vmatprep.subr.mxu0 0.0
  %1201 = vmatpush1.msra.mxu0 0.0
  %1202 = vmatprep.subr.mxu0 0.0
  %1203 = vmatpush1.msra.mxu0 0.0
  %1204 = vmatprep.subr.mxu0 0.0
  %1205 = vmatpush1.msra.mxu0 0.0
  %1206 = vmatprep.subr.mxu0 0.0
  %1207 = vmatpush1.msra.mxu0 0.0
  %1208 = vmatprep.subr.mxu0 0.0
  %1209 = vmatpush1.msra.mxu0 0.0
  %1210 = vmatprep.subr.mxu0 0.0
  %1211 = vmatpush1.msra.mxu0 0.0
  %1212 = vmatprep.subr.mxu0 0.0
  %1213 = vmatpush1.msra.mxu0 0.0
  %1214 = vmatprep.subr.mxu0 0.0
  %1215 = vmatpush1.msra.mxu0 0.0
  %1216 = vmatprep.subr.mxu0 0.0
  %1217 = vmatpush1.msra.mxu0 0.0
  %1218 = vmatprep.subr.mxu0 0.0
  %1219 = vmatpush1.msra.mxu0 0.0
  %1220 = vmatprep.subr.mxu0 0.0
  %1221 = vmatpush1.msra.mxu0 0.0
  %1222 = vmatprep.subr.mxu0 0.0
  %1223 = vmatpush1.msra.mxu0 0.0
  %1224 = vmatprep.subr.mxu0 0.0
  %1225 = vmatpush1.msra.mxu0 0.0
  %1226 = vmatprep.subr.mxu0 0.0
  %1227 = vmatpush1.msra.mxu0 0.0
  %1228 = vmatprep.subr.mxu0 0.0
  %1229 = vmatpush1.msra.mxu0 0.0
  %1230 = vmatprep.mubr.f32.mxu0 0.0
  %1231 = vmatmul.mubr.f32.gmra.mrb[0].mxu0 %v1165
  %v1232 = vpop.f32.mrb[0].mxu0
  %v1233 = vadd.f32 0.0, %v1232
  %v1234 = vpop.f32.mrb[0].mxu0
  %v1235 = vadd.f32 0.0, %v1234
  %1236 = vdwg.mxu0
  %1237 = vmatprep.subr.mxu0 %v26
  %1238 = vmatpush1.msra.mxu0 %v25
  %1239 = vmatprep.subr.mxu0 %v30
  %1240 = vmatpush1.msra.mxu0 %v29
  %1241 = vmatprep.subr.mxu0 %v34
  %1242 = vmatpush1.msra.mxu0 %v33
  %1243 = vmatprep.subr.mxu0 %v38
  %1244 = vmatpush1.msra.mxu0 %v37
  %1245 = vmatprep.subr.mxu0 %v42
  %1246 = vmatpush1.msra.mxu0 %v41
  %1247 = vmatprep.subr.mxu0 %v46
  %1248 = vmatpush1.msra.mxu0 %v45
  %1249 = vmatprep.subr.mxu0 %v50
  %1250 = vmatpush1.msra.mxu0 %v49
  %1251 = vmatprep.subr.mxu0 %v54
  %1252 = vmatpush1.msra.mxu0 %v53
  %1253 = vmatprep.subr.mxu0 %v58
  %1254 = vmatpush1.msra.mxu0 %v57
  %1255 = vmatprep.subr.mxu0 %v62
  %1256 = vmatpush1.msra.mxu0 %v61
  %1257 = vmatprep.subr.mxu0 %v66
  %1258 = vmatpush1.msra.mxu0 %v65
  %1259 = vmatprep.subr.mxu0 %v70
  %1260 = vmatpush1.msra.mxu0 %v69
  %1261 = vmatprep.subr.mxu0 %v74
  %1262 = vmatpush1.msra.mxu0 %v73
  %1263 = vmatprep.subr.mxu0 %v78
  %1264 = vmatpush1.msra.mxu0 %v77
  %1265 = vmatprep.subr.mxu0 %v82
  %1266 = vmatpush1.msra.mxu0 %v81
  %1267 = vmatprep.subr.mxu0 %v86
  %1268 = vmatpush1.msra.mxu0 %v85
  %1269 = vmatprep.subr.mxu0 0.0
  %1270 = vmatpush1.msra.mxu0 0.0
  %1271 = vmatprep.subr.mxu0 0.0
  %1272 = vmatpush1.msra.mxu0 0.0
  %1273 = vmatprep.subr.mxu0 0.0
  %1274 = vmatpush1.msra.mxu0 0.0
  %1275 = vmatprep.subr.mxu0 0.0
  %1276 = vmatpush1.msra.mxu0 0.0
  %1277 = vmatprep.subr.mxu0 0.0
  %1278 = vmatpush1.msra.mxu0 0.0
  %1279 = vmatprep.subr.mxu0 0.0
  %1280 = vmatpush1.msra.mxu0 0.0
  %1281 = vmatprep.subr.mxu0 0.0
  %1282 = vmatpush1.msra.mxu0 0.0
  %1283 = vmatprep.subr.mxu0 0.0
  %1284 = vmatpush1.msra.mxu0 0.0
  %1285 = vmatprep.subr.mxu0 0.0
  %1286 = vmatpush1.msra.mxu0 0.0
  %1287 = vmatprep.subr.mxu0 0.0
  %1288 = vmatpush1.msra.mxu0 0.0
  %1289 = vmatprep.subr.mxu0 0.0
  %1290 = vmatpush1.msra.mxu0 0.0
  %1291 = vmatprep.subr.mxu0 0.0
  %1292 = vmatpush1.msra.mxu0 0.0
  %1293 = vmatprep.subr.mxu0 0.0
  %1294 = vmatpush1.msra.mxu0 0.0
  %1295 = vmatprep.subr.mxu0 0.0
  %1296 = vmatpush1.msra.mxu0 0.0
  %1297 = vmatprep.subr.mxu0 0.0
  %1298 = vmatpush1.msra.mxu0 0.0
  %1299 = vmatprep.subr.mxu0 0.0
  %1300 = vmatpush1.msra.mxu0 0.0
  %1301 = vmatprep.mubr.f32.mxu0 0.0
  %1302 = vmatmul.mubr.f32.gmra.mrb[0].mxu0 %v1165
  %v1303 = vpop.f32.mrb[0].mxu0
  %v1304 = vadd.f32 0.0, %v1303
  %v1305 = vpop.f32.mrb[0].mxu0
  %v1306 = vadd.f32 0.0, %v1305
  %1307 = vdwg.mxu0
  %v1308 = vadd.f32 %v1161, %v1233
  %v1309 = vadd.f32 %v1162, %v1235
  %v1310 = vadd.f32 %v1163, %v1304
  %v1311 = vadd.f32 %v1164, %v1306
  %v1312 = vxor.u32 %v1308, 2147483648
  %v1313 = vmul.f32 %v1312, 1.442695
  %v1314 = vpow.pop %v1313
  %v1315 = vadd.f32 %v1314, 1.0
  %v1316 = vrcp.pop %v1315
  %v1317 = vmul.f32 1.0, %v1316
  %v1318 = vxor.u32 %v1309, 2147483648
  %v1319 = vmul.f32 %v1318, 1.442695
  %v1320 = vpow.pop %v1319
  %v1321 = vadd.f32 %v1320, 1.0
  %v1322 = vrcp.pop %v1321
  %v1323 = vmul.f32 1.0, %v1322
  %v1324 = vtanh.pop %v1310
  %v1325 = vxor.u32 %v1311, 2147483648
  %v1326 = vmul.f32 %v1325, 1.442695
  %v1327 = vpow.pop %v1326
  %v1328 = vadd.f32 %v1327, 1.0
  %v1329 = vrcp.pop %v1328
  %v1330 = vmul.f32 1.0, %v1329
  %v1331 = vld [vmem:[#allocation3] sm:$0xff]
  %v1332 = vmul.f32 %v1323, %v1331
  %v1333 = vmul.f32 %v1317, %v1324
  %v1334 = vadd.f32 %v1332, %v1333
  %v1335 = vtanh.pop %v1334
  %v1336 = vmul.f32 %v1330, %v1335
  %1337 = vst [vmem:[#allocation3] sm:$0xff] %v1334
  %1338 = vst [vmem:[#allocation2] sm:$0xff] %v1336
  %s1339 = scalar_lea.vmem %s0, 224
  %v1340 = vld [vmem:[%s1339] sm:$0xff]
  %v1341 = vld [vmem:[%s1339 + $0x8] sm:$0xff]
  %v1342 = vld [vmem:[%s1339 + $0x10] sm:$0xff]
  %v1343 = vld [vmem:[%s1339 + $0x18] sm:$0xff]
  %v1344 = vld [vmem:[#allocation2] sm:$0xff]
  %1345 = vmatprep.subr.mxu0 %v24
  %1346 = vmatpush1.msra.mxu0 %v23
  %1347 = vmatprep.subr.mxu0 %v28
  %1348 = vmatpush1.msra.mxu0 %v27
  %1349 = vmatprep.subr.mxu0 %v32
  %1350 = vmatpush1.msra.mxu0 %v31
  %1351 = vmatprep.subr.mxu0 %v36
  %1352 = vmatpush1.msra.mxu0 %v35
  %1353 = vmatprep.subr.mxu0 %v40
  %1354 = vmatpush1.msra.mxu0 %v39
  %1355 = vmatprep.subr.mxu0 %v44
  %1356 = vmatpush1.msra.mxu0 %v43
  %1357 = vmatprep.subr.mxu0 %v48
  %1358 = vmatpush1.msra.mxu0 %v47
  %1359 = vmatprep.subr.mxu0 %v52
  %1360 = vmatpush1.msra.mxu0 %v51
  %1361 = vmatprep.subr.mxu0 %v56
  %1362 = vmatpush1.msra.mxu0 %v55
  %1363 = vmatprep.subr.mxu0 %v60
  %1364 = vmatpush1.msra.mxu0 %v59
  %1365 = vmatprep.subr.mxu0 %v64
  %1366 = vmatpush1.msra.mxu0 %v63
  %1367 = vmatprep.subr.mxu0 %v68
  %1368 = vmatpush1.msra.mxu0 %v67
  %1369 = vmatprep.subr.mxu0 %v72
  %1370 = vmatpush1.msra.mxu0 %v71
  %1371 = vmatprep.subr.mxu0 %v76
  %1372 = vmatpush1.msra.mxu0 %v75
  %1373 = vmatprep.subr.mxu0 %v80
  %1374 = vmatpush1.msra.mxu0 %v79
  %1375 = vmatprep.subr.mxu0 %v84
  %1376 = vmatpush1.msra.mxu0 %v83
  %1377 = vmatprep.subr.mxu0 0.0
  %1378 = vmatpush1.msra.mxu0 0.0
  %1379 = vmatprep.subr.mxu0 0.0
  %1380 = vmatpush1.msra.mxu0 0.0
  %1381 = vmatprep.subr.mxu0 0.0
  %1382 = vmatpush1.msra.mxu0 0.0
  %1383 = vmatprep.subr.mxu0 0.0
  %1384 = vmatpush1.msra.mxu0 0.0
  %1385 = vmatprep.subr.mxu0 0.0
  %1386 = vmatpush1.msra.mxu0 0.0
  %1387 = vmatprep.subr.mxu0 0.0
  %1388 = vmatpush1.msra.mxu0 0.0
  %1389 = vmatprep.subr.mxu0 0.0
  %1390 = vmatpush1.msra.mxu0 0.0
  %1391 = vmatprep.subr.mxu0 0.0
  %1392 = vmatpush1.msra.mxu0 0.0
  %1393 = vmatprep.subr.mxu0 0.0
  %1394 = vmatpush1.msra.mxu0 0.0
  %1395 = vmatprep.subr.mxu0 0.0
  %1396 = vmatpush1.msra.mxu0 0.0
  %1397 = vmatprep.subr.mxu0 0.0
  %1398 = vmatpush1.msra.mxu0 0.0
  %1399 = vmatprep.subr.mxu0 0.0
  %1400 = vmatpush1.msra.mxu0 0.0
  %1401 = vmatprep.subr.mxu0 0.0
  %1402 = vmatpush1.msra.mxu0 0.0
  %1403 = vmatprep.subr.mxu0 0.0
  %1404 = vmatpush1.msra.mxu0 0.0
  %1405 = vmatprep.subr.mxu0 0.0
  %1406 = vmatpush1.msra.mxu0 0.0
  %1407 = vmatprep.subr.mxu0 0.0
  %1408 = vmatpush1.msra.mxu0 0.0
  %1409 = vmatprep.mubr.f32.mxu0 0.0
  %1410 = vmatmul.mubr.f32.gmra.mrb[0].mxu0 %v1344
  %v1411 = vpop.f32.mrb[0].mxu0
  %v1412 = vadd.f32 0.0, %v1411
  %v1413 = vpop.f32.mrb[0].mxu0
  %v1414 = vadd.f32 0.0, %v1413
  %1415 = vdwg.mxu0
  %1416 = vmatprep.subr.mxu0 %v26
  %1417 = vmatpush1.msra.mxu0 %v25
  %1418 = vmatprep.subr.mxu0 %v30
  %1419 = vmatpush1.msra.mxu0 %v29
  %1420 = vmatprep.subr.mxu0 %v34
  %1421 = vmatpush1.msra.mxu0 %v33
  %1422 = vmatprep.subr.mxu0 %v38
  %1423 = vmatpush1.msra.mxu0 %v37
  %1424 = vmatprep.subr.mxu0 %v42
  %1425 = vmatpush1.msra.mxu0 %v41
  %1426 = vmatprep.subr.mxu0 %v46
  %1427 = vmatpush1.msra.mxu0 %v45
  %1428 = vmatprep.subr.mxu0 %v50
  %1429 = vmatpush1.msra.mxu0 %v49
  %1430 = vmatprep.subr.mxu0 %v54
  %1431 = vmatpush1.msra.mxu0 %v53
  %1432 = vmatprep.subr.mxu0 %v58
  %1433 = vmatpush1.msra.mxu0 %v57
  %1434 = vmatprep.subr.mxu0 %v62
  %1435 = vmatpush1.msra.mxu0 %v61
  %1436 = vmatprep.subr.mxu0 %v66
  %1437 = vmatpush1.msra.mxu0 %v65
  %1438 = vmatprep.subr.mxu0 %v70
  %1439 = vmatpush1.msra.mxu0 %v69
  %1440 = vmatprep.subr.mxu0 %v74
  %1441 = vmatpush1.msra.mxu0 %v73
  %1442 = vmatprep.subr.mxu0 %v78
  %1443 = vmatpush1.msra.mxu0 %v77
  %1444 = vmatprep.subr.mxu0 %v82
  %1445 = vmatpush1.msra.mxu0 %v81
  %1446 = vmatprep.subr.mxu0 %v86
  %1447 = vmatpush1.msra.mxu0 %v85
  %1448 = vmatprep.subr.mxu0 0.0
  %1449 = vmatpush1.msra.mxu0 0.0
  %1450 = vmatprep.subr.mxu0 0.0
  %1451 = vmatpush1.msra.mxu0 0.0
  %1452 = vmatprep.subr.mxu0 0.0
  %1453 = vmatpush1.msra.mxu0 0.0
  %1454 = vmatprep.subr.mxu0 0.0
  %1455 = vmatpush1.msra.mxu0 0.0
  %1456 = vmatprep.subr.mxu0 0.0
  %1457 = vmatpush1.msra.mxu0 0.0
  %1458 = vmatprep.subr.mxu0 0.0
  %1459 = vmatpush1.msra.mxu0 0.0
  %1460 = vmatprep.subr.mxu0 0.0
  %1461 = vmatpush1.msra.mxu0 0.0
  %1462 = vmatprep.subr.mxu0 0.0
  %1463 = vmatpush1.msra.mxu0 0.0
  %1464 = vmatprep.subr.mxu0 0.0
  %1465 = vmatpush1.msra.mxu0 0.0
  %1466 = vmatprep.subr.mxu0 0.0
  %1467 = vmatpush1.msra.mxu0 0.0
  %1468 = vmatprep.subr.mxu0 0.0
  %1469 = vmatpush1.msra.mxu0 0.0
  %1470 = vmatprep.subr.mxu0 0.0
  %1471 = vmatpush1.msra.mxu0 0.0
  %1472 = vmatprep.subr.mxu0 0.0
  %1473 = vmatpush1.msra.mxu0 0.0
  %1474 = vmatprep.subr.mxu0 0.0
  %1475 = vmatpush1.msra.mxu0 0.0
  %1476 = vmatprep.subr.mxu0 0.0
  %1477 = vmatpush1.msra.mxu0 0.0
  %1478 = vmatprep.subr.mxu0 0.0
  %1479 = vmatpush1.msra.mxu0 0.0
  %1480 = vmatprep.mubr.f32.mxu0 0.0
  %1481 = vmatmul.mubr.f32.gmra.mrb[0].mxu0 %v1344
  %v1482 = vpop.f32.mrb[0].mxu0
  %v1483 = vadd.f32 0.0, %v1482
  %v1484 = vpop.f32.mrb[0].mxu0
  %v1485 = vadd.f32 0.0, %v1484
  %1486 = vdwg.mxu0
  %v1487 = vadd.f32 %v1340, %v1412
  %v1488 = vadd.f32 %v1341, %v1414
  %v1489 = vadd.f32 %v1342, %v1483
  %v1490 = vadd.f32 %v1343, %v1485
  %v1491 = vxor.u32 %v1487, 2147483648
  %v1492 = vmul.f32 %v1491, 1.442695
  %v1493 = vpow.pop %v1492
  %v1494 = vadd.f32 %v1493, 1.0
  %v1495 = vrcp.pop %v1494
  %v1496 = vmul.f32 1.0, %v1495
  %v1497 = vxor.u32 %v1488, 2147483648
  %v1498 = vmul.f32 %v1497, 1.442695
  %v1499 = vpow.pop %v1498
  %v1500 = vadd.f32 %v1499, 1.0
  %v1501 = vrcp.pop %v1500
  %v1502 = vmul.f32 1.0, %v1501
  %v1503 = vtanh.pop %v1489
  %v1504 = vxor.u32 %v1490, 2147483648
  %v1505 = vmul.f32 %v1504, 1.442695
  %v1506 = vpow.pop %v1505
  %v1507 = vadd.f32 %v1506, 1.0
  %v1508 = vrcp.pop %v1507
  %v1509 = vmul.f32 1.0, %v1508
  %v1510 = vld [vmem:[#allocation3] sm:$0xff]
  %v1511 = vmul.f32 %v1502, %v1510
  %v1512 = vmul.f32 %v1496, %v1503
  %v1513 = vadd.f32 %v1511, %v1512
  %v1514 = vtanh.pop %v1513
  %v1515 = vmul.f32 %v1509, %v1514
  %1516 = vst [vmem:[#allocation3] sm:$0xff] %v1513
  %1517 = vst [vmem:[#allocation2] sm:$0xff] %v1515
  // Predicated region
  $region22: #{lstm_model_forward.7} parent=0 // pred_check
    %p1518 = pneg %p17
  $region23: #{lstm_model_forward.7} parent=0 // pred_check_branch
    %1520 = sbr.rel (%p1518) target = $region25
  $region24: #{lstm_model_forward.7} parent=0 // pred_region
    %v1521 = vld [vmem:[%s2] sm:$0xff]
    %v1522 = vld [vmem:[%s2 + $0x8] sm:$0xff]
    %v1523 = vld [vmem:[%s2 + $0x10] sm:$0xff]
    %v1524 = vld [vmem:[%s2 + $0x18] sm:$0xff]
    %v1525 = vld [vmem:[%s2 + $0x20] sm:$0xff]
    %v1526 = vld [vmem:[%s2 + $0x28] sm:$0xff]
    %v1527 = vld [vmem:[%s2 + $0x30] sm:$0xff]
    %v1528 = vld [vmem:[%s2 + $0x38] sm:$0xff]
    %v1529 = vld [vmem:[%s2 + $0x40] sm:$0xff]
    %v1530 = vld [vmem:[%s2 + $0x48] sm:$0xff]
    %v1531 = vld [vmem:[%s2 + $0x50] sm:$0xff]
    %v1532 = vld [vmem:[%s2 + $0x58] sm:$0xff]
    %v1533 = vld [vmem:[%s2 + $0x60] sm:$0xff]
    %v1534 = vld [vmem:[%s2 + $0x68] sm:$0xff]
    %v1535 = vld [vmem:[%s2 + $0x70] sm:$0xff]
    %v1536 = vld [vmem:[%s2 + $0x78] sm:$0xff]
    %v1537 = vld [vmem:[#allocation2] sm:$0xff]
    %v1538 = vld [vmem:[%s3] sm:$0x1]
    %v1540 = vlaneseq
    %v1541 = vshrl.u32 %v1540, 7
    %v1542 = vsub.s32 0, %v1541
    %v1543 = vrot.slane %v1538, %v1542
    %1545 = vmatprep.subr.mxu0 0.0
    %1546 = vmatpush1.msra.mxu0 %v1521
    %1547 = vmatprep.subr.mxu0 0.0
    %1548 = vmatpush1.msra.mxu0 %v1522
    %1549 = vmatprep.subr.mxu0 0.0
    %1550 = vmatpush1.msra.mxu0 %v1523
    %1551 = vmatprep.subr.mxu0 0.0
    %1552 = vmatpush1.msra.mxu0 %v1524
    %1553 = vmatprep.subr.mxu0 0.0
    %1554 = vmatpush1.msra.mxu0 %v1525
    %1555 = vmatprep.subr.mxu0 0.0
    %1556 = vmatpush1.msra.mxu0 %v1526
    %1557 = vmatprep.subr.mxu0 0.0
    %1558 = vmatpush1.msra.mxu0 %v1527
    %1559 = vmatprep.subr.mxu0 0.0
    %1560 = vmatpush1.msra.mxu0 %v1528
    %1561 = vmatprep.subr.mxu0 0.0
    %1562 = vmatpush1.msra.mxu0 %v1529
    %1563 = vmatprep.subr.mxu0 0.0
    %1564 = vmatpush1.msra.mxu0 %v1530
    %1565 = vmatprep.subr.mxu0 0.0
    %1566 = vmatpush1.msra.mxu0 %v1531
    %1567 = vmatprep.subr.mxu0 0.0
    %1568 = vmatpush1.msra.mxu0 %v1532
    %1569 = vmatprep.subr.mxu0 0.0
    %1570 = vmatpush1.msra.mxu0 %v1533
    %1571 = vmatprep.subr.mxu0 0.0
    %1572 = vmatpush1.msra.mxu0 %v1534
    %1573 = vmatprep.subr.mxu0 0.0
    %1574 = vmatpush1.msra.mxu0 %v1535
    %1575 = vmatprep.subr.mxu0 0.0
    %1576 = vmatpush1.msra.mxu0 %v1536
    %1577 = vmatprep.subr.mxu0 0.0
    %1578 = vmatpush1.msra.mxu0 0.0
    %1579 = vmatprep.subr.mxu0 0.0
    %1580 = vmatpush1.msra.mxu0 0.0
    %1581 = vmatprep.subr.mxu0 0.0
    %1582 = vmatpush1.msra.mxu0 0.0
    %1583 = vmatprep.subr.mxu0 0.0
    %1584 = vmatpush1.msra.mxu0 0.0
    %1585 = vmatprep.subr.mxu0 0.0
    %1586 = vmatpush1.msra.mxu0 0.0
    %1587 = vmatprep.subr.mxu0 0.0
    %1588 = vmatpush1.msra.mxu0 0.0
    %1589 = vmatprep.subr.mxu0 0.0
    %1590 = vmatpush1.msra.mxu0 0.0
    %1591 = vmatprep.subr.mxu0 0.0
    %1592 = vmatpush1.msra.mxu0 0.0
    %1593 = vmatprep.subr.mxu0 0.0
    %1594 = vmatpush1.msra.mxu0 0.0
    %1595 = vmatprep.subr.mxu0 0.0
    %1596 = vmatpush1.msra.mxu0 0.0
    %1597 = vmatprep.subr.mxu0 0.0
    %1598 = vmatpush1.msra.mxu0 0.0
    %1599 = vmatprep.subr.mxu0 0.0
    %1600 = vmatpush1.msra.mxu0 0.0
    %1601 = vmatprep.subr.mxu0 0.0
    %1602 = vmatpush1.msra.mxu0 0.0
    %1603 = vmatprep.subr.mxu0 0.0
    %1604 = vmatpush1.msra.mxu0 0.0
    %1605 = vmatprep.subr.mxu0 0.0
    %1606 = vmatpush1.msra.mxu0 0.0
    %1607 = vmatprep.subr.mxu0 0.0
    %1608 = vmatpush1.msra.mxu0 0.0
    %1609 = vmatprep.mubr.f32.mxu0 0.0
    %1610 = vmatmul.mubr.f32.gmra.mrb[0].mxu0 %v1537
    %v1611 = vpop.f32.mrb[0].mxu0
    %v1612 = vadd.f32 %v1543, %v1611
    %v1613 = vpop.f32.mrb[0].mxu0
    %1614 = vdwg.mxu0
    %1615 = vst [vmem:[%s4] sm:$0xff] %v1612
  $region25: #{lstm_model_forward.7} parent=0 // pred_fallthru
    _
  // Predicated region
  $region26: #{lstm_model_forward.7} parent=0 // pred_check
    _
  $region27: #{lstm_model_forward.7} parent=0 // pred_check_branch
    %1617 = sbr.rel (0) target = $region29
  $region28: #{lstm_model_forward.7} parent=0 // pred_region
    _
  $region29: #{lstm_model_forward.7} parent=0 // pred_fallthru
    _
  // Predicated region
  $region30: #{lstm_model_forward.7} parent=0 // pred_check
    _
  $region31: #{lstm_model_forward.7} parent=0 // pred_check_branch
    %1619 = sbr.rel (0) target = $region33
  $region32: #{lstm_model_forward.7} parent=0 // pred_region
    _
  $region33: #{lstm_model_forward.7} parent=0 // pred_fallthru
    _

</llo_original>
